<compile_context>
chip_gen: v5e
topology: v5e:2x2
jax: 0.10.0
libtpu: 0.0.40
codegen_flags: <defaults>
</compile_context>

<pallas_src>
import math
import functools

import jax
import jax.numpy as jnp
from jax.experimental import pallas as pl
from jax.experimental.pallas import tpu as pltpu

# f32-accurate matmuls for the pure-JAX reference (kernel passes HIGHEST
# explicitly); keeps kernel-vs-reference divergence at ~1e-6.
jax.config.update("jax_default_matmul_precision", "highest")

# ----- model dims (small, consistent with the module's forward) -------------
B = 2          # batch
S = 8          # sequence length
D = 32         # d_model
H = 4          # number of heads
DK = D // H    # head dim
DFF = 64       # feed-forward hidden dim
EPS = 1e-6

_HI = jax.lax.Precision.HIGHEST


def _layernorm(v, g, b):
    mean = jnp.mean(v, axis=-1, keepdims=True)
    var = jnp.mean((v - mean) ** 2, axis=-1, keepdims=True)
    return (v - mean) * jax.lax.rsqrt(var + EPS) * g + b


def encoder_block_kernel(x_ref, mask_ref, wqkv_ref, wo_ref, w1_ref, w2_ref,
                         small_ref, out_ref, *, bpb):
    """One grid step == `bpb` batch elements, flattened to (bpb*S, D) rows."""
    f32 = jnp.float32
    x = x_ref[...]                                            # (bpb*S, D)

    # Small-parameter slab: one DMA, sublane-indexed reads inside the kernel.
    bqkv  = small_ref[0, :3 * D]
    bo    = small_ref[1, :D]
    ln1_g = small_ref[2, :D]
    ln1_b = small_ref[3, :D]
    b1    = small_ref[4, :DFF]
    b2    = small_ref[5, :D]
    ln2_g = small_ref[6, :D]
    ln2_b = small_ref[7, :D]

    # ---------------- residual connection 0: self-attention -----------------
    xn = _layernorm(x, ln1_g, ln1_b)

    # Fused, head-major QKV projection: one (bpb*S, D) @ (D, 3D) MXU push.
    qkv = jnp.dot(xn, wqkv_ref[...], precision=_HI,
                  preferred_element_type=f32) + bqkv          # (bpb*S, 3D)

    scale = 1.0 / math.sqrt(DK)
    dn = (((1,), (1,)), ((), ()))     # q @ k^T by contracting last dims (no XLU transpose)

    # Per-head score tiles (MXU), collected for one batched softmax pass.
    score_tiles, v_tiles = [], []
    for b in range(bpb):                       # static unrolled; bpb <= 2
        r0 = b * S
        for h in range(H):                     # static unrolled over heads
            c0 = h * 3 * DK
            blk = qkv[r0:r0 + S, c0:c0 + 3 * DK]   # one contiguous 24-lane head slice
            qh = blk[:, 0:DK]
            kh = blk[:, DK:2 * DK]
            v_tiles.append(blk[:, 2 * DK:3 * DK])
            score_tiles.append(
                jax.lax.dot_general(qh, kh, dn, precision=_HI,
                                    preferred_element_type=f32))   # (S, S)

    # Batched softmax: ONE max / exp / sum / reciprocal over the sublane stack.
    scores = jnp.concatenate(score_tiles, axis=0)             # (bpb*H*S, S)
    mask_rows = jnp.concatenate(
        [mask_ref[b] for b in range(bpb) for _ in range(H)], axis=0)
    # masked_fill parity with the reference: replace, don't add a bias.
    scores = jnp.where(mask_rows == 0.0, -1e9, scores * scale)
    m = jnp.max(scores, axis=-1, keepdims=True)               # one XLU pass
    p = jnp.exp(scores - m)                                    # one EUP pass
    p = p * pl.reciprocal(jnp.sum(p, axis=-1, keepdims=True),
                          approx=False)                        # exact, one pass

    # p @ v per head (sublane slices of the stack), heads folded back to
    # (bpb*S, D) and pushed through W_O with a single matmul.
    batch_rows = []
    for b in range(bpb):
        heads = []
        for h in range(H):
            t = b * H + h
            p_bh = p[t * S:(t + 1) * S, :]                     # sublane slice
            heads.append(jnp.dot(p_bh, v_tiles[t], precision=_HI,
                                 preferred_element_type=f32))  # (S, DK)
        batch_rows.append(jnp.concatenate(heads, axis=1))      # (S, D)
    attn_cat = (batch_rows[0] if bpb == 1
                else jnp.concatenate(batch_rows, axis=0))      # (bpb*S, D)

    attn = jnp.dot(attn_cat, wo_ref[...], precision=_HI,
                   preferred_element_type=f32)
    x1 = x + attn + bo                          # dropout == identity

    # ---------------- residual connection 1: feed-forward -------------------
    xn2 = _layernorm(x1, ln2_g, ln2_b)
    h1 = jnp.maximum(jnp.dot(xn2, w1_ref[...], precision=_HI,
                             preferred_element_type=f32) + b1, 0.0)
    ff = jnp.dot(h1, w2_ref[...], precision=_HI,
                 preferred_element_type=f32) + b2

    # Single full-slab store. (Lane-dense (bpb, S*D) variant skipped: the
    # in-kernel sublane->lane fold costs about what the unmasked vst saves.)
    out_ref[...] = x1 + ff


def prepare_params(params):
    """One-time parameter preparation (hoisted out of the forward wrapper):
    head-major fused QKV weights and a single (8, 128) slab of small vectors."""
    (wq, bq, wk, bk, wv, bv, wo, bo,
     ln1_g, ln1_b, w1, b1, w2, b2, ln2_g, ln2_b) = params

    def head_major(mq, mk, mv):
        # per head h: columns [q_h | k_h | v_h], each DK wide
        return jnp.concatenate(
            [mq.reshape(-1, H, DK), mk.reshape(-1, H, DK), mv.reshape(-1, H, DK)],
            axis=2).reshape(mq.shape[0], 3 * D)

    wqkv = head_major(wq, wk, wv)                   # (D, 3D)
    bqkv = head_major(bq, bk, bv)                   # (1, 3D)

    def row(v):
        v = v.reshape(-1)
        return jnp.pad(v, (0, 128 - v.shape[0]))

    small = jnp.stack([row(bqkv), row(bo), row(ln1_g), row(ln1_b),
                       row(b1), row(b2), row(ln2_g), row(ln2_b)], axis=0)  # (8, 128)
    return (wqkv, wo, w1, w2, small)


@functools.partial(jax.jit, static_argnames=("num_row_blocks",))
def encoder_block(x, src_mask, prepared, num_row_blocks=1):
    """x: (B, S, D) f32, src_mask: (B, S, S) f32 (1=attend, 0=masked)."""
    wqkv, wo, w1, w2, small = prepared
    assert B % num_row_blocks == 0
    bpb = B // num_row_blocks

    # Flatten the batch into the row (sublane) dimension.
    x2 = x.reshape(B * S, D)

    # TODO(synk): if B/S/D grow to realistic sizes, re-tile rows-per-step so
    # rows*(3D+DFF+D)*4B*2 fits scoped VMEM (v7x: 64 MiB physical) and set
    # vmem_limit_bytes explicitly; at these toy sizes VMEM is a non-issue.
    out = pl.pallas_call(
        functools.partial(encoder_block_kernel, bpb=bpb),
        out_shape=jax.ShapeDtypeStruct((B * S, D), jnp.float32),
        grid_spec=pltpu.PrefetchScalarGridSpec(
            num_scalar_prefetch=0,
            grid=(num_row_blocks,),
            in_specs=[
                pl.BlockSpec((bpb * S, D), lambda i: (i, 0)),
                pl.BlockSpec((bpb, S, S), lambda i: (i, 0, 0)),
                pl.BlockSpec(wqkv.shape, lambda i: (0, 0)),
                pl.BlockSpec(wo.shape, lambda i: (0, 0)),
                pl.BlockSpec(w1.shape, lambda i: (0, 0)),
                pl.BlockSpec(w2.shape, lambda i: (0, 0)),
                pl.BlockSpec(small.shape, lambda i: (0, 0)),
            ],
            out_specs=pl.BlockSpec((bpb * S, D), lambda i: (i, 0)),
        ),
        compiler_params=pltpu.CompilerParams(
            dimension_semantics=("parallel",)),
    )(x2, src_mask, wqkv, wo, w1, w2, small)
    return out.reshape(B, S, D)


def make_params(key):
    """Deterministic synthetic parameters (non-zero biases so the packed-slab
    and head-major reordering paths are actually exercised by the test).

    Linear weights are stored as (in, out) (PyTorch weight transposed), so the
    kernel computes y = x @ W + b.  Biases / LN params are (1, dim).
    """
    ks = jax.random.split(key, 16)
    init = lambda k, shape, fan_in: (jax.random.normal(k, shape, jnp.float32)
                                     / math.sqrt(fan_in))
    wq = init(ks[0], (D, D), D)
    wk = init(ks[1], (D, D), D)
    wv = init(ks[2], (D, D), D)
    wo = init(ks[3], (D, D), D)
    bq = 0.1 * jax.random.normal(ks[4], (1, D), jnp.float32)
    bk = 0.1 * jax.random.normal(ks[5], (1, D), jnp.float32)
    bv = 0.1 * jax.random.normal(ks[6], (1, D), jnp.float32)
    bo = 0.1 * jax.random.normal(ks[7], (1, D), jnp.float32)
    w1 = init(ks[8], (D, DFF), D)
    b1 = 0.1 * jax.random.normal(ks[9], (1, DFF), jnp.float32)
    w2 = init(ks[10], (DFF, D), DFF)
    b2 = 0.1 * jax.random.normal(ks[11], (1, D), jnp.float32)
    ln1_g = 1.0 + 0.1 * jax.random.normal(ks[12], (1, D), jnp.float32)
    ln1_b = 0.1 * jax.random.normal(ks[13], (1, D), jnp.float32)
    ln2_g = 1.0 + 0.1 * jax.random.normal(ks[14], (1, D), jnp.float32)
    ln2_b = 0.1 * jax.random.normal(ks[15], (1, D), jnp.float32)
    return (wq, bq, wk, bk, wv, bv, wo, bo,
            ln1_g, ln1_b, w1, b1, w2, b2, ln2_g, ln2_b)


def encoder_block_ref(x, src_mask, params):
    """Pure-JAX reference (unfused, masked_fill-style masking)."""
    (wq, bq, wk, bk, wv, bv, wo, bo,
     ln1_g, ln1_b, w1, b1, w2, b2, ln2_g, ln2_b) = params

    def ln(v, g, b):
        m = jnp.mean(v, -1, keepdims=True)
        var = jnp.mean((v - m) ** 2, -1, keepdims=True)
        return (v - m) * jax.lax.rsqrt(var + EPS) * g + b

    xn = ln(x, ln1_g, ln1_b)
    q = xn @ wq + bq
    k = xn @ wk + bk
    v = xn @ wv + bv
    q = q.reshape(B, S, H, DK).transpose(0, 2, 1, 3)
    k = k.reshape(B, S, H, DK).transpose(0, 2, 1, 3)
    v = v.reshape(B, S, H, DK).transpose(0, 2, 1, 3)
    scores = jnp.einsum("bhqd,bhkd->bhqk", q, k) / math.sqrt(DK)
    scores = jnp.where(src_mask[:, None, :, :] == 0, -1e9, scores)
    p = jax.nn.softmax(scores, axis=-1)
    attn = jnp.einsum("bhqk,bhkd->bhqd", p, v).transpose(0, 2, 1, 3).reshape(B, S, D)
    x = x + (attn @ wo + bo)
    xn2 = ln(x, ln2_g, ln2_b)
    ff = jnp.maximum(xn2 @ w1 + b1, 0.0) @ w2 + b2
    return x + ff


if __name__ == "__main__":
    key = jax.random.PRNGKey(0)
    kx, km, kp = jax.random.split(key, 3)

    x = jax.random.normal(kx, (B, S, D), jnp.float32)
    # mask with 1 = attend, 0 = masked; keep the diagonal attendable so no
    # row is fully masked (degenerate-softmax case is out of scope here).
    src_mask = (jax.random.uniform(km, (B, S, S)) > 0.2).astype(jnp.float32)
    src_mask = jnp.maximum(src_mask, jnp.eye(S, dtype=jnp.float32)[None])

    params = make_params(kp)
    prepared = prepare_params(params)      # one-time packing, hoisted out of forward

    out = jax.block_until_ready(encoder_block(x, src_mask, prepared))

    ref = encoder_block_ref(x, src_mask, params)
    assert out.shape == (B, S, D)
    # With HIGHEST-precision matmuls and exact softmax normalisation on both
    # sides, kernel-vs-reference divergence is ~1e-6; 2e-3 leaves headroom.
    assert jnp.allclose(out, ref, atol=2e-3, rtol=2e-3), "mismatch vs reference"

    print("KERNEL_OK")
</pallas_src>

<mosaic_0001>
module attributes {stable_mosaic.version = 11 : i64} {
  func.func @encoder_block_kernel(%arg0: i32, %arg1: memref<16x32xf32, #tpu.memory_space<vmem>>, %arg2: memref<2x8x8xf32, #tpu.memory_space<vmem>>, %arg3: memref<32x96xf32, #tpu.memory_space<vmem>>, %arg4: memref<32x32xf32, #tpu.memory_space<vmem>>, %arg5: memref<32x64xf32, #tpu.memory_space<vmem>>, %arg6: memref<64x32xf32, #tpu.memory_space<vmem>>, %arg7: memref<8x128xf32, #tpu.memory_space<vmem>>, %arg8: memref<16x32xf32, #tpu.memory_space<vmem>>) attributes {dimension_semantics = [#tpu.dimension_semantics<parallel>], iteration_bounds = array<i64: 1>, scalar_prefetch = 0 : i64, scratch_operands = 0 : i64, tpu.core_type = #tpu.core_type<tc>, window_params = [{transform_indices = @transform_0, window_bounds = array<i64: 16, 32>}, {transform_indices = @transform_1, window_bounds = array<i64: 2, 8, 8>}, {pipeline_mode = #tpu.pipeline_mode<synchronous>, transform_indices = @transform_2, window_bounds = array<i64: 32, 96>}, {pipeline_mode = #tpu.pipeline_mode<synchronous>, transform_indices = @transform_3, window_bounds = array<i64: 32, 32>}, {pipeline_mode = #tpu.pipeline_mode<synchronous>, transform_indices = @transform_4, window_bounds = array<i64: 32, 64>}, {pipeline_mode = #tpu.pipeline_mode<synchronous>, transform_indices = @transform_5, window_bounds = array<i64: 64, 32>}, {pipeline_mode = #tpu.pipeline_mode<synchronous>, transform_indices = @transform_6, window_bounds = array<i64: 8, 128>}, {transform_indices = @transform_7, window_bounds = array<i64: 16, 32>}]} {
    %c0 = arith.constant 0 : index
    %c0_0 = arith.constant 0 : index
    %0 = vector.load %arg1[%c0, %c0_0] : memref<16x32xf32, #tpu.memory_space<vmem>>, vector<16x32xf32>
    %c0_1 = arith.constant 0 : index
    %c0_2 = arith.constant 0 : index
    %1 = vector.load %arg7[%c0_1, %c0_2] : memref<8x128xf32, #tpu.memory_space<vmem>>, vector<1x96xf32>
    %2 = vector.shape_cast %1 : vector<1x96xf32> to vector<96xf32>
    %c1 = arith.constant 1 : index
    %c0_3 = arith.constant 0 : index
    %3 = vector.load %arg7[%c1, %c0_3] : memref<8x128xf32, #tpu.memory_space<vmem>>, vector<1x32xf32>
    %4 = vector.shape_cast %3 : vector<1x32xf32> to vector<32xf32>
    %c2 = arith.constant 2 : index
    %c0_4 = arith.constant 0 : index
    %5 = vector.load %arg7[%c2, %c0_4] : memref<8x128xf32, #tpu.memory_space<vmem>>, vector<1x32xf32>
    %6 = vector.shape_cast %5 : vector<1x32xf32> to vector<32xf32>
    %c3 = arith.constant 3 : index
    %c0_5 = arith.constant 0 : index
    %7 = vector.load %arg7[%c3, %c0_5] : memref<8x128xf32, #tpu.memory_space<vmem>>, vector<1x32xf32>
    %8 = vector.shape_cast %7 : vector<1x32xf32> to vector<32xf32>
    %c4 = arith.constant 4 : index
    %c0_6 = arith.constant 0 : index
    %9 = vector.load %arg7[%c4, %c0_6] : memref<8x128xf32, #tpu.memory_space<vmem>>, vector<1x64xf32>
    %10 = vector.shape_cast %9 : vector<1x64xf32> to vector<64xf32>
    %c5 = arith.constant 5 : index
    %c0_7 = arith.constant 0 : index
    %11 = vector.load %arg7[%c5, %c0_7] : memref<8x128xf32, #tpu.memory_space<vmem>>, vector<1x32xf32>
    %12 = vector.shape_cast %11 : vector<1x32xf32> to vector<32xf32>
    %c6 = arith.constant 6 : index
    %c0_8 = arith.constant 0 : index
    %13 = vector.load %arg7[%c6, %c0_8] : memref<8x128xf32, #tpu.memory_space<vmem>>, vector<1x32xf32>
    %14 = vector.shape_cast %13 : vector<1x32xf32> to vector<32xf32>
    %c7 = arith.constant 7 : index
    %c0_9 = arith.constant 0 : index
    %15 = vector.load %arg7[%c7, %c0_9] : memref<8x128xf32, #tpu.memory_space<vmem>>, vector<1x32xf32>
    %16 = vector.shape_cast %15 : vector<1x32xf32> to vector<32xf32>
    %cst = arith.constant dense<0.000000e+00> : vector<16xf32>
    %17 = vector.multi_reduction <add>, %0, %cst [1] : vector<16x32xf32> to vector<16xf32>
    %18 = vector.shape_cast %17 : vector<16xf32> to vector<16x1xf32>
    %cst_10 = arith.constant 3.200000e+01 : f32
    %19 = vector.broadcast %cst_10 : f32 to vector<16x1xf32>
    %20 = arith.divf %18, %19 : vector<16x1xf32>
    %21 = vector.broadcast %20 : vector<16x1xf32> to vector<16x32xf32>
    %22 = arith.subf %0, %21 : vector<16x32xf32>
    %23 = arith.mulf %22, %22 : vector<16x32xf32>
    %cst_11 = arith.constant dense<0.000000e+00> : vector<16xf32>
    %24 = vector.multi_reduction <add>, %23, %cst_11 [1] : vector<16x32xf32> to vector<16xf32>
    %25 = vector.shape_cast %24 : vector<16xf32> to vector<16x1xf32>
    %cst_12 = arith.constant 3.200000e+01 : f32
    %26 = vector.broadcast %cst_12 : f32 to vector<16x1xf32>
    %27 = arith.divf %25, %26 : vector<16x1xf32>
    %28 = vector.broadcast %20 : vector<16x1xf32> to vector<16x32xf32>
    %29 = arith.subf %0, %28 : vector<16x32xf32>
    %cst_13 = arith.constant 9.99999997E-7 : f32
    %30 = vector.broadcast %cst_13 : f32 to vector<16x1xf32>
    %31 = arith.addf %27, %30 : vector<16x1xf32>
    %32 = math.rsqrt %31 : vector<16x1xf32>
    %33 = vector.broadcast %32 : vector<16x1xf32> to vector<16x32xf32>
    %34 = arith.mulf %29, %33 : vector<16x32xf32>
    %35 = vector.shape_cast %6 : vector<32xf32> to vector<1x32xf32>
    %36 = vector.broadcast %35 : vector<1x32xf32> to vector<16x32xf32>
    %37 = arith.mulf %34, %36 : vector<16x32xf32>
    %38 = vector.shape_cast %8 : vector<32xf32> to vector<1x32xf32>
    %39 = vector.broadcast %38 : vector<1x32xf32> to vector<16x32xf32>
    %40 = arith.addf %37, %39 : vector<16x32xf32>
    %c0_14 = arith.constant 0 : index
    %c0_15 = arith.constant 0 : index
    %41 = vector.load %arg3[%c0_14, %c0_15] : memref<32x96xf32, #tpu.memory_space<vmem>>, vector<32x96xf32>
    %cst_16 = arith.constant dense<0.000000e+00> : vector<16x96xf32>
    %42 = tpu.matmul %40, %41, %cst_16 {dimension_numbers = #tpu.dot_dimension_numbers<[1], [0], [0], [1], [0, 0, 1, 1], [], []>, precision = #tpu.contract_precision<fp32>} : vector<16x32xf32>, vector<32x96xf32>, vector<16x96xf32> -> vector<16x96xf32>
    %43 = vector.shape_cast %2 : vector<96xf32> to vector<1x96xf32>
    %44 = vector.broadcast %43 : vector<1x96xf32> to vector<16x96xf32>
    %45 = arith.addf %42, %44 : vector<16x96xf32>
    %46 = vector.extract_strided_slice %45 {offsets = [0, 0], sizes = [8, 24], strides = [1, 1]} : vector<16x96xf32> to vector<8x24xf32>
    %47 = vector.extract_strided_slice %46 {offsets = [0, 0], sizes = [8, 8], strides = [1, 1]} : vector<8x24xf32> to vector<8x8xf32>
    %48 = vector.extract_strided_slice %46 {offsets = [0, 8], sizes = [8, 8], strides = [1, 1]} : vector<8x24xf32> to vector<8x8xf32>
    %49 = vector.extract_strided_slice %46 {offsets = [0, 16], sizes = [8, 8], strides = [1, 1]} : vector<8x24xf32> to vector<8x8xf32>
    %cst_17 = arith.constant dense<0.000000e+00> : vector<8x8xf32>
    %50 = tpu.matmul %47, %48, %cst_17 {dimension_numbers = #tpu.dot_dimension_numbers<[1], [1], [0], [0], [0, 0, 1, 0], [], []>, precision = #tpu.contract_precision<fp32>} : vector<8x8xf32>, vector<8x8xf32>, vector<8x8xf32> -> vector<8x8xf32>
    %51 = vector.extract_strided_slice %45 {offsets = [0, 24], sizes = [8, 24], strides = [1, 1]} : vector<16x96xf32> to vector<8x24xf32>
    %52 = vector.extract_strided_slice %51 {offsets = [0, 0], sizes = [8, 8], strides = [1, 1]} : vector<8x24xf32> to vector<8x8xf32>
    %53 = vector.extract_strided_slice %51 {offsets = [0, 8], sizes = [8, 8], strides = [1, 1]} : vector<8x24xf32> to vector<8x8xf32>
    %54 = vector.extract_strided_slice %51 {offsets = [0, 16], sizes = [8, 8], strides = [1, 1]} : vector<8x24xf32> to vector<8x8xf32>
    %cst_18 = arith.constant dense<0.000000e+00> : vector<8x8xf32>
    %55 = tpu.matmul %52, %53, %cst_18 {dimension_numbers = #tpu.dot_dimension_numbers<[1], [1], [0], [0], [0, 0, 1, 0], [], []>, precision = #tpu.contract_precision<fp32>} : vector<8x8xf32>, vector<8x8xf32>, vector<8x8xf32> -> vector<8x8xf32>
    %56 = vector.extract_strided_slice %45 {offsets = [0, 48], sizes = [8, 24], strides = [1, 1]} : vector<16x96xf32> to vector<8x24xf32>
    %57 = vector.extract_strided_slice %56 {offsets = [0, 0], sizes = [8, 8], strides = [1, 1]} : vector<8x24xf32> to vector<8x8xf32>
    %58 = vector.extract_strided_slice %56 {offsets = [0, 8], sizes = [8, 8], strides = [1, 1]} : vector<8x24xf32> to vector<8x8xf32>
    %59 = vector.extract_strided_slice %56 {offsets = [0, 16], sizes = [8, 8], strides = [1, 1]} : vector<8x24xf32> to vector<8x8xf32>
    %cst_19 = arith.constant dense<0.000000e+00> : vector<8x8xf32>
    %60 = tpu.matmul %57, %58, %cst_19 {dimension_numbers = #tpu.dot_dimension_numbers<[1], [1], [0], [0], [0, 0, 1, 0], [], []>, precision = #tpu.contract_precision<fp32>} : vector<8x8xf32>, vector<8x8xf32>, vector<8x8xf32> -> vector<8x8xf32>
    %61 = vector.extract_strided_slice %45 {offsets = [0, 72], sizes = [8, 24], strides = [1, 1]} : vector<16x96xf32> to vector<8x24xf32>
    %62 = vector.extract_strided_slice %61 {offsets = [0, 0], sizes = [8, 8], strides = [1, 1]} : vector<8x24xf32> to vector<8x8xf32>
    %63 = vector.extract_strided_slice %61 {offsets = [0, 8], sizes = [8, 8], strides = [1, 1]} : vector<8x24xf32> to vector<8x8xf32>
    %64 = vector.extract_strided_slice %61 {offsets = [0, 16], sizes = [8, 8], strides = [1, 1]} : vector<8x24xf32> to vector<8x8xf32>
    %cst_20 = arith.constant dense<0.000000e+00> : vector<8x8xf32>
    %65 = tpu.matmul %62, %63, %cst_20 {dimension_numbers = #tpu.dot_dimension_numbers<[1], [1], [0], [0], [0, 0, 1, 0], [], []>, precision = #tpu.contract_precision<fp32>} : vector<8x8xf32>, vector<8x8xf32>, vector<8x8xf32> -> vector<8x8xf32>
    %66 = vector.extract_strided_slice %45 {offsets = [8, 0], sizes = [8, 24], strides = [1, 1]} : vector<16x96xf32> to vector<8x24xf32>
    %67 = vector.extract_strided_slice %66 {offsets = [0, 0], sizes = [8, 8], strides = [1, 1]} : vector<8x24xf32> to vector<8x8xf32>
    %68 = vector.extract_strided_slice %66 {offsets = [0, 8], sizes = [8, 8], strides = [1, 1]} : vector<8x24xf32> to vector<8x8xf32>
    %69 = vector.extract_strided_slice %66 {offsets = [0, 16], sizes = [8, 8], strides = [1, 1]} : vector<8x24xf32> to vector<8x8xf32>
    %cst_21 = arith.constant dense<0.000000e+00> : vector<8x8xf32>
    %70 = tpu.matmul %67, %68, %cst_21 {dimension_numbers = #tpu.dot_dimension_numbers<[1], [1], [0], [0], [0, 0, 1, 0], [], []>, precision = #tpu.contract_precision<fp32>} : vector<8x8xf32>, vector<8x8xf32>, vector<8x8xf32> -> vector<8x8xf32>
    %71 = vector.extract_strided_slice %45 {offsets = [8, 24], sizes = [8, 24], strides = [1, 1]} : vector<16x96xf32> to vector<8x24xf32>
    %72 = vector.extract_strided_slice %71 {offsets = [0, 0], sizes = [8, 8], strides = [1, 1]} : vector<8x24xf32> to vector<8x8xf32>
    %73 = vector.extract_strided_slice %71 {offsets = [0, 8], sizes = [8, 8], strides = [1, 1]} : vector<8x24xf32> to vector<8x8xf32>
    %74 = vector.extract_strided_slice %71 {offsets = [0, 16], sizes = [8, 8], strides = [1, 1]} : vector<8x24xf32> to vector<8x8xf32>
    %cst_22 = arith.constant dense<0.000000e+00> : vector<8x8xf32>
    %75 = tpu.matmul %72, %73, %cst_22 {dimension_numbers = #tpu.dot_dimension_numbers<[1], [1], [0], [0], [0, 0, 1, 0], [], []>, precision = #tpu.contract_precision<fp32>} : vector<8x8xf32>, vector<8x8xf32>, vector<8x8xf32> -> vector<8x8xf32>
    %76 = vector.extract_strided_slice %45 {offsets = [8, 48], sizes = [8, 24], strides = [1, 1]} : vector<16x96xf32> to vector<8x24xf32>
    %77 = vector.extract_strided_slice %76 {offsets = [0, 0], sizes = [8, 8], strides = [1, 1]} : vector<8x24xf32> to vector<8x8xf32>
    %78 = vector.extract_strided_slice %76 {offsets = [0, 8], sizes = [8, 8], strides = [1, 1]} : vector<8x24xf32> to vector<8x8xf32>
    %79 = vector.extract_strided_slice %76 {offsets = [0, 16], sizes = [8, 8], strides = [1, 1]} : vector<8x24xf32> to vector<8x8xf32>
    %cst_23 = arith.constant dense<0.000000e+00> : vector<8x8xf32>
    %80 = tpu.matmul %77, %78, %cst_23 {dimension_numbers = #tpu.dot_dimension_numbers<[1], [1], [0], [0], [0, 0, 1, 0], [], []>, precision = #tpu.contract_precision<fp32>} : vector<8x8xf32>, vector<8x8xf32>, vector<8x8xf32> -> vector<8x8xf32>
    %81 = vector.extract_strided_slice %45 {offsets = [8, 72], sizes = [8, 24], strides = [1, 1]} : vector<16x96xf32> to vector<8x24xf32>
    %82 = vector.extract_strided_slice %81 {offsets = [0, 0], sizes = [8, 8], strides = [1, 1]} : vector<8x24xf32> to vector<8x8xf32>
    %83 = vector.extract_strided_slice %81 {offsets = [0, 8], sizes = [8, 8], strides = [1, 1]} : vector<8x24xf32> to vector<8x8xf32>
    %84 = vector.extract_strided_slice %81 {offsets = [0, 16], sizes = [8, 8], strides = [1, 1]} : vector<8x24xf32> to vector<8x8xf32>
    %cst_24 = arith.constant dense<0.000000e+00> : vector<8x8xf32>
    %85 = tpu.matmul %82, %83, %cst_24 {dimension_numbers = #tpu.dot_dimension_numbers<[1], [1], [0], [0], [0, 0, 1, 0], [], []>, precision = #tpu.contract_precision<fp32>} : vector<8x8xf32>, vector<8x8xf32>, vector<8x8xf32> -> vector<8x8xf32>
    %86 = tpu.concatenate %50, %55, %60, %65, %70, %75, %80, %85 in 0 : vector<8x8xf32>, vector<8x8xf32>, vector<8x8xf32>, vector<8x8xf32>, vector<8x8xf32>, vector<8x8xf32>, vector<8x8xf32>, vector<8x8xf32> -> vector<64x8xf32>
    %c0_25 = arith.constant 0 : index
    %c0_26 = arith.constant 0 : index
    %c0_27 = arith.constant 0 : index
    %87 = vector.load %arg2[%c0_25, %c0_26, %c0_27] : memref<2x8x8xf32, #tpu.memory_space<vmem>>, vector<1x8x8xf32>
    %88 = vector.shape_cast %87 : vector<1x8x8xf32> to vector<8x8xf32>
    %c0_28 = arith.constant 0 : index
    %c0_29 = arith.constant 0 : index
    %c0_30 = arith.constant 0 : index
    %89 = vector.load %arg2[%c0_28, %c0_29, %c0_30] : memref<2x8x8xf32, #tpu.memory_space<vmem>>, vector<1x8x8xf32>
    %90 = vector.shape_cast %89 : vector<1x8x8xf32> to vector<8x8xf32>
    %c0_31 = arith.constant 0 : index
    %c0_32 = arith.constant 0 : index
    %c0_33 = arith.constant 0 : index
    %91 = vector.load %arg2[%c0_31, %c0_32, %c0_33] : memref<2x8x8xf32, #tpu.memory_space<vmem>>, vector<1x8x8xf32>
    %92 = vector.shape_cast %91 : vector<1x8x8xf32> to vector<8x8xf32>
    %c0_34 = arith.constant 0 : index
    %c0_35 = arith.constant 0 : index
    %c0_36 = arith.constant 0 : index
    %93 = vector.load %arg2[%c0_34, %c0_35, %c0_36] : memref<2x8x8xf32, #tpu.memory_space<vmem>>, vector<1x8x8xf32>
    %94 = vector.shape_cast %93 : vector<1x8x8xf32> to vector<8x8xf32>
    %c1_37 = arith.constant 1 : index
    %c0_38 = arith.constant 0 : index
    %c0_39 = arith.constant 0 : index
    %95 = vector.load %arg2[%c1_37, %c0_38, %c0_39] : memref<2x8x8xf32, #tpu.memory_space<vmem>>, vector<1x8x8xf32>
    %96 = vector.shape_cast %95 : vector<1x8x8xf32> to vector<8x8xf32>
    %c1_40 = arith.constant 1 : index
    %c0_41 = arith.constant 0 : index
    %c0_42 = arith.constant 0 : index
    %97 = vector.load %arg2[%c1_40, %c0_41, %c0_42] : memref<2x8x8xf32, #tpu.memory_space<vmem>>, vector<1x8x8xf32>
    %98 = vector.shape_cast %97 : vector<1x8x8xf32> to vector<8x8xf32>
    %c1_43 = arith.constant 1 : index
    %c0_44 = arith.constant 0 : index
    %c0_45 = arith.constant 0 : index
    %99 = vector.load %arg2[%c1_43, %c0_44, %c0_45] : memref<2x8x8xf32, #tpu.memory_space<vmem>>, vector<1x8x8xf32>
    %100 = vector.shape_cast %99 : vector<1x8x8xf32> to vector<8x8xf32>
    %c1_46 = arith.constant 1 : index
    %c0_47 = arith.constant 0 : index
    %c0_48 = arith.constant 0 : index
    %101 = vector.load %arg2[%c1_46, %c0_47, %c0_48] : memref<2x8x8xf32, #tpu.memory_space<vmem>>, vector<1x8x8xf32>
    %102 = vector.shape_cast %101 : vector<1x8x8xf32> to vector<8x8xf32>
    %103 = tpu.concatenate %88, %90, %92, %94, %96, %98, %100, %102 in 0 : vector<8x8xf32>, vector<8x8xf32>, vector<8x8xf32>, vector<8x8xf32>, vector<8x8xf32>, vector<8x8xf32>, vector<8x8xf32>, vector<8x8xf32> -> vector<64x8xf32>
    %cst_49 = arith.constant 0.000000e+00 : f32
    %104 = vector.broadcast %cst_49 : f32 to vector<64x8xf32>
    %105 = arith.cmpf oeq, %103, %104 : vector<64x8xf32>
    %cst_50 = arith.constant 0.353553385 : f32
    %106 = vector.broadcast %cst_50 : f32 to vector<64x8xf32>
    %107 = arith.mulf %86, %106 : vector<64x8xf32>
    %cst_51 = arith.constant -1.000000e+09 : f32
    %108 = vector.broadcast %cst_51 : f32 to vector<64x8xf32>
    %109 = arith.select %105, %108, %107 : vector<64x8xi1>, vector<64x8xf32>
    %cst_52 = arith.constant dense<0xFF800000> : vector<64xf32>
    %110 = vector.multi_reduction <maximumf>, %109, %cst_52 [1] : vector<64x8xf32> to vector<64xf32>
    %111 = vector.shape_cast %110 : vector<64xf32> to vector<64x1xf32>
    %112 = vector.broadcast %111 : vector<64x1xf32> to vector<64x8xf32>
    %113 = arith.subf %109, %112 : vector<64x8xf32>
    %114 = math.exp %113 : vector<64x8xf32>
    %cst_53 = arith.constant dense<0.000000e+00> : vector<64xf32>
    %115 = vector.multi_reduction <add>, %114, %cst_53 [1] : vector<64x8xf32> to vector<64xf32>
    %116 = vector.shape_cast %115 : vector<64xf32> to vector<64x1xf32>
    %117 = tpu.reciprocal %116 : vector<64x1xf32> -> vector<64x1xf32>
    %118 = vector.broadcast %117 : vector<64x1xf32> to vector<64x8xf32>
    %119 = arith.mulf %114, %118 : vector<64x8xf32>
    %120 = vector.extract_strided_slice %119 {offsets = [0, 0], sizes = [8, 8], strides = [1, 1]} : vector<64x8xf32> to vector<8x8xf32>
    %cst_54 = arith.constant dense<0.000000e+00> : vector<8x8xf32>
    %121 = tpu.matmul %120, %49, %cst_54 {dimension_numbers = #tpu.dot_dimension_numbers<[1], [0], [0], [1], [0, 0, 1, 1], [], []>, precision = #tpu.contract_precision<fp32>} : vector<8x8xf32>, vector<8x8xf32>, vector<8x8xf32> -> vector<8x8xf32>
    %122 = vector.extract_strided_slice %119 {offsets = [8, 0], sizes = [8, 8], strides = [1, 1]} : vector<64x8xf32> to vector<8x8xf32>
    %cst_55 = arith.constant dense<0.000000e+00> : vector<8x8xf32>
    %123 = tpu.matmul %122, %54, %cst_55 {dimension_numbers = #tpu.dot_dimension_numbers<[1], [0], [0], [1], [0, 0, 1, 1], [], []>, precision = #tpu.contract_precision<fp32>} : vector<8x8xf32>, vector<8x8xf32>, vector<8x8xf32> -> vector<8x8xf32>
    %124 = vector.extract_strided_slice %119 {offsets = [16, 0], sizes = [8, 8], strides = [1, 1]} : vector<64x8xf32> to vector<8x8xf32>
    %cst_56 = arith.constant dense<0.000000e+00> : vector<8x8xf32>
    %125 = tpu.matmul %124, %59, %cst_56 {dimension_numbers = #tpu.dot_dimension_numbers<[1], [0], [0], [1], [0, 0, 1, 1], [], []>, precision = #tpu.contract_precision<fp32>} : vector<8x8xf32>, vector<8x8xf32>, vector<8x8xf32> -> vector<8x8xf32>
    %126 = vector.extract_strided_slice %119 {offsets = [24, 0], sizes = [8, 8], strides = [1, 1]} : vector<64x8xf32> to vector<8x8xf32>
    %cst_57 = arith.constant dense<0.000000e+00> : vector<8x8xf32>
    %127 = tpu.matmul %126, %64, %cst_57 {dimension_numbers = #tpu.dot_dimension_numbers<[1], [0], [0], [1], [0, 0, 1, 1], [], []>, precision = #tpu.contract_precision<fp32>} : vector<8x8xf32>, vector<8x8xf32>, vector<8x8xf32> -> vector<8x8xf32>
    %128 = tpu.concatenate %121, %123, %125, %127 in 1 : vector<8x8xf32>, vector<8x8xf32>, vector<8x8xf32>, vector<8x8xf32> -> vector<8x32xf32>
    %129 = vector.extract_strided_slice %119 {offsets = [32, 0], sizes = [8, 8], strides = [1, 1]} : vector<64x8xf32> to vector<8x8xf32>
    %cst_58 = arith.constant dense<0.000000e+00> : vector<8x8xf32>
    %130 = tpu.matmul %129, %69, %cst_58 {dimension_numbers = #tpu.dot_dimension_numbers<[1], [0], [0], [1], [0, 0, 1, 1], [], []>, precision = #tpu.contract_precision<fp32>} : vector<8x8xf32>, vector<8x8xf32>, vector<8x8xf32> -> vector<8x8xf32>
    %131 = vector.extract_strided_slice %119 {offsets = [40, 0], sizes = [8, 8], strides = [1, 1]} : vector<64x8xf32> to vector<8x8xf32>
    %cst_59 = arith.constant dense<0.000000e+00> : vector<8x8xf32>
    %132 = tpu.matmul %131, %74, %cst_59 {dimension_numbers = #tpu.dot_dimension_numbers<[1], [0], [0], [1], [0, 0, 1, 1], [], []>, precision = #tpu.contract_precision<fp32>} : vector<8x8xf32>, vector<8x8xf32>, vector<8x8xf32> -> vector<8x8xf32>
    %133 = vector.extract_strided_slice %119 {offsets = [48, 0], sizes = [8, 8], strides = [1, 1]} : vector<64x8xf32> to vector<8x8xf32>
    %cst_60 = arith.constant dense<0.000000e+00> : vector<8x8xf32>
    %134 = tpu.matmul %133, %79, %cst_60 {dimension_numbers = #tpu.dot_dimension_numbers<[1], [0], [0], [1], [0, 0, 1, 1], [], []>, precision = #tpu.contract_precision<fp32>} : vector<8x8xf32>, vector<8x8xf32>, vector<8x8xf32> -> vector<8x8xf32>
    %135 = vector.extract_strided_slice %119 {offsets = [56, 0], sizes = [8, 8], strides = [1, 1]} : vector<64x8xf32> to vector<8x8xf32>
    %cst_61 = arith.constant dense<0.000000e+00> : vector<8x8xf32>
    %136 = tpu.matmul %135, %84, %cst_61 {dimension_numbers = #tpu.dot_dimension_numbers<[1], [0], [0], [1], [0, 0, 1, 1], [], []>, precision = #tpu.contract_precision<fp32>} : vector<8x8xf32>, vector<8x8xf32>, vector<8x8xf32> -> vector<8x8xf32>
    %137 = tpu.concatenate %130, %132, %134, %136 in 1 : vector<8x8xf32>, vector<8x8xf32>, vector<8x8xf32>, vector<8x8xf32> -> vector<8x32xf32>
    %138 = tpu.concatenate %128, %137 in 0 : vector<8x32xf32>, vector<8x32xf32> -> vector<16x32xf32>
    %c0_62 = arith.constant 0 : index
    %c0_63 = arith.constant 0 : index
    %139 = vector.load %arg4[%c0_62, %c0_63] : memref<32x32xf32, #tpu.memory_space<vmem>>, vector<32x32xf32>
    %cst_64 = arith.constant dense<0.000000e+00> : vector<16x32xf32>
    %140 = tpu.matmul %138, %139, %cst_64 {dimension_numbers = #tpu.dot_dimension_numbers<[1], [0], [0], [1], [0, 0, 1, 1], [], []>, precision = #tpu.contract_precision<fp32>} : vector<16x32xf32>, vector<32x32xf32>, vector<16x32xf32> -> vector<16x32xf32>
    %141 = arith.addf %0, %140 : vector<16x32xf32>
    %142 = vector.shape_cast %4 : vector<32xf32> to vector<1x32xf32>
    %143 = vector.broadcast %142 : vector<1x32xf32> to vector<16x32xf32>
    %144 = arith.addf %141, %143 : vector<16x32xf32>
    %cst_65 = arith.constant dense<0.000000e+00> : vector<16xf32>
    %145 = vector.multi_reduction <add>, %144, %cst_65 [1] : vector<16x32xf32> to vector<16xf32>
    %146 = vector.shape_cast %145 : vector<16xf32> to vector<16x1xf32>
    %cst_66 = arith.constant 3.200000e+01 : f32
    %147 = vector.broadcast %cst_66 : f32 to vector<16x1xf32>
    %148 = arith.divf %146, %147 : vector<16x1xf32>
    %149 = vector.broadcast %148 : vector<16x1xf32> to vector<16x32xf32>
    %150 = arith.subf %144, %149 : vector<16x32xf32>
    %151 = arith.mulf %150, %150 : vector<16x32xf32>
    %cst_67 = arith.constant dense<0.000000e+00> : vector<16xf32>
    %152 = vector.multi_reduction <add>, %151, %cst_67 [1] : vector<16x32xf32> to vector<16xf32>
    %153 = vector.shape_cast %152 : vector<16xf32> to vector<16x1xf32>
    %cst_68 = arith.constant 3.200000e+01 : f32
    %154 = vector.broadcast %cst_68 : f32 to vector<16x1xf32>
    %155 = arith.divf %153, %154 : vector<16x1xf32>
    %156 = vector.broadcast %148 : vector<16x1xf32> to vector<16x32xf32>
    %157 = arith.subf %144, %156 : vector<16x32xf32>
    %cst_69 = arith.constant 9.99999997E-7 : f32
    %158 = vector.broadcast %cst_69 : f32 to vector<16x1xf32>
    %159 = arith.addf %155, %158 : vector<16x1xf32>
    %160 = math.rsqrt %159 : vector<16x1xf32>
    %161 = vector.broadcast %160 : vector<16x1xf32> to vector<16x32xf32>
    %162 = arith.mulf %157, %161 : vector<16x32xf32>
    %163 = vector.shape_cast %14 : vector<32xf32> to vector<1x32xf32>
    %164 = vector.broadcast %163 : vector<1x32xf32> to vector<16x32xf32>
    %165 = arith.mulf %162, %164 : vector<16x32xf32>
    %166 = vector.shape_cast %16 : vector<32xf32> to vector<1x32xf32>
    %167 = vector.broadcast %166 : vector<1x32xf32> to vector<16x32xf32>
    %168 = arith.addf %165, %167 : vector<16x32xf32>
    %c0_70 = arith.constant 0 : index
    %c0_71 = arith.constant 0 : index
    %169 = vector.load %arg5[%c0_70, %c0_71] : memref<32x64xf32, #tpu.memory_space<vmem>>, vector<32x64xf32>
    %cst_72 = arith.constant dense<0.000000e+00> : vector<16x64xf32>
    %170 = tpu.matmul %168, %169, %cst_72 {dimension_numbers = #tpu.dot_dimension_numbers<[1], [0], [0], [1], [0, 0, 1, 1], [], []>, precision = #tpu.contract_precision<fp32>} : vector<16x32xf32>, vector<32x64xf32>, vector<16x64xf32> -> vector<16x64xf32>
    %171 = vector.shape_cast %10 : vector<64xf32> to vector<1x64xf32>
    %172 = vector.broadcast %171 : vector<1x64xf32> to vector<16x64xf32>
    %173 = arith.addf %170, %172 : vector<16x64xf32>
    %cst_73 = arith.constant 0.000000e+00 : f32
    %174 = vector.broadcast %cst_73 : f32 to vector<16x64xf32>
    %175 = arith.maximumf %173, %174 : vector<16x64xf32>
    %c0_74 = arith.constant 0 : index
    %c0_75 = arith.constant 0 : index
    %176 = vector.load %arg6[%c0_74, %c0_75] : memref<64x32xf32, #tpu.memory_space<vmem>>, vector<64x32xf32>
    %cst_76 = arith.constant dense<0.000000e+00> : vector<16x32xf32>
    %177 = tpu.matmul %175, %176, %cst_76 {dimension_numbers = #tpu.dot_dimension_numbers<[1], [0], [0], [1], [0, 0, 1, 1], [], []>, precision = #tpu.contract_precision<fp32>} : vector<16x64xf32>, vector<64x32xf32>, vector<16x32xf32> -> vector<16x32xf32>
    %178 = vector.shape_cast %12 : vector<32xf32> to vector<1x32xf32>
    %179 = vector.broadcast %178 : vector<1x32xf32> to vector<16x32xf32>
    %180 = arith.addf %177, %179 : vector<16x32xf32>
    %181 = arith.addf %144, %180 : vector<16x32xf32>
    %c0_77 = arith.constant 0 : index
    %c0_78 = arith.constant 0 : index
    %182 = vector.load %arg8[%c0_77, %c0_78] : memref<16x32xf32, #tpu.memory_space<vmem>>, vector<16x32xf32>
    tpu.vector_store %arg8[%c0_77, %c0_78], %181 {strides = array<i32>} : memref<16x32xf32, #tpu.memory_space<vmem>>, vector<16x32xf32>,
    return
  }
  func.func @transform_0(%arg0: i32) -> (i32, i32) {
    %c0_i32 = arith.constant 0 : i32
    %c0_i32_0 = arith.constant 0 : i32
    return %arg0, %c0_i32 : i32, i32
  }
  func.func @transform_1(%arg0: i32) -> (i32, i32, i32) {
    %c0_i32 = arith.constant 0 : i32
    %c0_i32_0 = arith.constant 0 : i32
    %c0_i32_1 = arith.constant 0 : i32
    return %arg0, %c0_i32, %c0_i32_0 : i32, i32, i32
  }
  func.func @transform_2(%arg0: i32) -> (i32, i32) {
    %c0_i32 = arith.constant 0 : i32
    %c0_i32_0 = arith.constant 0 : i32
    %c0_i32_1 = arith.constant 0 : i32
    return %c0_i32, %c0_i32_0 : i32, i32
  }
  func.func @transform_3(%arg0: i32) -> (i32, i32) {
    %c0_i32 = arith.constant 0 : i32
    %c0_i32_0 = arith.constant 0 : i32
    %c0_i32_1 = arith.constant 0 : i32
    return %c0_i32, %c0_i32_0 : i32, i32
  }
  func.func @transform_4(%arg0: i32) -> (i32, i32) {
    %c0_i32 = arith.constant 0 : i32
    %c0_i32_0 = arith.constant 0 : i32
    %c0_i32_1 = arith.constant 0 : i32
    return %c0_i32, %c0_i32_0 : i32, i32
  }
  func.func @transform_5(%arg0: i32) -> (i32, i32) {
    %c0_i32 = arith.constant 0 : i32
    %c0_i32_0 = arith.constant 0 : i32
    %c0_i32_1 = arith.constant 0 : i32
    return %c0_i32, %c0_i32_0 : i32, i32
  }
  func.func @transform_6(%arg0: i32) -> (i32, i32) {
    %c0_i32 = arith.constant 0 : i32
    %c0_i32_0 = arith.constant 0 : i32
    %c0_i32_1 = arith.constant 0 : i32
    return %c0_i32, %c0_i32_0 : i32, i32
  }
  func.func @transform_7(%arg0: i32) -> (i32, i32) {
    %c0_i32 = arith.constant 0 : i32
    %c0_i32_0 = arith.constant 0 : i32
    return %arg0, %c0_i32 : i32, i32
  }
}

</mosaic_0001>

<llo_original>
// kernel: encoder_block.1
$region0: #{encoder_block.1}
  #allocation0 [shape = 'u32[]', space=smem, size = 0x4, offset = 0x4, fixed_abs, tag = 'smem constant byte address 0x4 - core index']
  #allocation1 [shape = 'u32[72,128]{1,0:T(1,128)}', space=vmem, size = 0x9000, scoped, tag = 'internal scratch']
  %s0 = inlined_call_operand.hbm [shape: f32[16,32], index: 0, kind: input, shape index: {}]
  %s1 = inlined_call_operand.hbm [shape: f32[2,8,8], index: 1, kind: input, shape index: {}]
  %s2 = inlined_call_operand.vmem [shape: f32[32,96], index: 2, kind: input, shape index: {}]
  %s3 = inlined_call_operand.vmem [shape: f32[32,32], index: 3, kind: input, shape index: {}]
  %s4 = inlined_call_operand.vmem [shape: f32[32,64], index: 4, kind: input, shape index: {}]
  %s5 = inlined_call_operand.vmem [shape: f32[64,32], index: 5, kind: input, shape index: {}]
  %s6 = inlined_call_operand.hbm [shape: f32[8,128], index: 6, kind: input, shape index: {}]
  %s7 = inlined_call_operand.hbm [shape: f32[16,32], index: 7, kind: output, shape index: {}]
  %s8 = sld [smem:[#allocation0]]
  $region50: #{encoder_block.1} parent=0
    _
  %s10 = ssub.s32 1, %s8
  %s11 = scalar_select 0, %s10, %s8
  $region1: #{encoder_block.1} parent=0
    #allocation2 [shape = 'u8[8192]{0}', space=vmem, size = 0x2000, scoped, tag = 'input window, operand 0, single buffered']
    #allocation3 [shape = 's32[1]{0}', space=sflag, size = 0x4, scoped, tag = 'scoped memory for encoder_block.1']
    #allocation4 [shape = 's32[1]{0}', space=sflag, size = 0x4, scoped, tag = 'scoped memory for encoder_block.1']
    #allocation5 [shape = 'u8[8192]{0}', space=vmem, size = 0x2000, scoped, tag = 'input window, operand 1, single buffered']
    #allocation6 [shape = 's32[1]{0}', space=sflag, size = 0x4, scoped, tag = 'scoped memory for encoder_block.1']
    #allocation7 [shape = 'u8[4096]{0}', space=vmem, size = 0x1000, scoped, tag = 'input window, operand 6, single buffered']
    #allocation8 [shape = 'u8[8192]{0}', space=vmem, size = 0x2000, scoped, tag = 'output window, operand 0, single buffered']
    %12 = vsyncpa [#allocation3], 0
    %13 = vsyncpa [#allocation6], 0
    %14 = vsyncpa [#allocation4], 0
    // Predicated region
    $region2: #{encoder_block.1} parent=1 // pred_check
      _
    $region3: #{encoder_block.1} parent=1 // pred_check_branch
      %16 = sbr.rel (0) target = $region5
    $region4: #{encoder_block.1} parent=1 // pred_region
      %18 = vsyncadd [#allocation3], 0
      %s19 = sshll.u32 %s0, 4
      %s20 = int_to_ptr.hbm [resolvable:$true] %s19
      %s21 = sshll.u32 [#allocation2], 4
      %s22 = int_to_ptr.vmem [resolvable:$true] %s21
      %27 = dma.hbm_to_vmem [thread:$0]  %s20, 256, %s22, [#allocation3], 128, 128, 8
    $region5: #{encoder_block.1} parent=1 // pred_fallthru
      _
    // Predicated region
    $region6: #{encoder_block.1} parent=1 // pred_check
      _
    $region7: #{encoder_block.1} parent=1 // pred_check_branch
      %29 = sbr.rel (0) target = $region9
    $region8: #{encoder_block.1} parent=1 // pred_region
      %31 = vsyncadd [#allocation6], 0
      %s32 = sshll.u32 %s1, 4
      %s33 = int_to_ptr.hbm [resolvable:$true] %s32
      %s34 = sshll.u32 [#allocation5], 4
      %s35 = int_to_ptr.vmem [resolvable:$true] %s34
      %40 = dma.hbm_to_vmem [thread:$0]  %s33, 256, %s35, [#allocation6], 128, 128, 8
    $region9: #{encoder_block.1} parent=1 // pred_fallthru
      _
    // Predicated region
    $region10: #{encoder_block.1} parent=1 // pred_check
      _
    $region11: #{encoder_block.1} parent=1 // pred_check_branch
      %42 = sbr.rel (0) target = $region13
    $region12: #{encoder_block.1} parent=1 // pred_region
      _
    $region13: #{encoder_block.1} parent=1 // pred_fallthru
      _
    // Predicated region
    $region14: #{encoder_block.1} parent=1 // pred_check
      _
    $region15: #{encoder_block.1} parent=1 // pred_check_branch
      %44 = sbr.rel (0) target = $region17
    $region16: #{encoder_block.1} parent=1 // pred_region
      _
    $region17: #{encoder_block.1} parent=1 // pred_fallthru
      _
    // Predicated region
    $region18: #{encoder_block.1} parent=1 // pred_check
      _
    $region19: #{encoder_block.1} parent=1 // pred_check_branch
      %46 = sbr.rel (0) target = $region21
    $region20: #{encoder_block.1} parent=1 // pred_region
      _
    $region21: #{encoder_block.1} parent=1 // pred_fallthru
      _
    // Predicated region
    $region22: #{encoder_block.1} parent=1 // pred_check
      _
    $region23: #{encoder_block.1} parent=1 // pred_check_branch
      %48 = sbr.rel (0) target = $region25
    $region24: #{encoder_block.1} parent=1 // pred_region
      _
    $region25: #{encoder_block.1} parent=1 // pred_fallthru
      _
    // Predicated region
    $region26: #{encoder_block.1} parent=1 // pred_check
      _
    $region27: #{encoder_block.1} parent=1 // pred_check_branch
      %50 = sbr.rel (0) target = $region29
    $region28: #{encoder_block.1} parent=1 // pred_region
      %52 = vsyncadd [#allocation6], 0
      %s54 = sshll.u32 %s6, 4
      %s55 = int_to_ptr.hbm [resolvable:$true] %s54
      %s56 = sshll.u32 [#allocation7], 4
      %s57 = int_to_ptr.vmem [resolvable:$true] %s56
      %59 = dma.hbm_to_vmem [thread:$0]  %s55, 128, %s57, [#allocation6]
    $region29: #{encoder_block.1} parent=1 // pred_fallthru
      _
    // Predicated region
    $region30: #{encoder_block.1} parent=1 // pred_check
      _
    $region31: #{encoder_block.1} parent=1 // pred_check_branch
      %61 = sbr.rel (0) target = $region33
    $region32: #{encoder_block.1} parent=1 // pred_region
      %63 = dma.done [#allocation3], 256
    $region33: #{encoder_block.1} parent=1 // pred_fallthru
      _
    // Predicated region
    $region34: #{encoder_block.1} parent=1 // pred_check
      _
    $region35: #{encoder_block.1} parent=1 // pred_check_branch
      %65 = sbr.rel (0) target = $region37
    $region36: #{encoder_block.1} parent=1 // pred_region
      %67 = dma.done [#allocation6], 256
    $region37: #{encoder_block.1} parent=1 // pred_fallthru
      _
    // Predicated region
    $region38: #{encoder_block.1} parent=1 // pred_check
      _
    $region39: #{encoder_block.1} parent=1 // pred_check_branch
      %69 = sbr.rel (0) target = $region41
    $region40: #{encoder_block.1} parent=1 // pred_region
      %71 = dma.done [#allocation6], 128
    $region41: #{encoder_block.1} parent=1 // pred_fallthru
      _
    %v72 = vld [vmem:[#allocation2] sm:$0xff]
    %v73 = vld [vmem:[#allocation2 + $0x8] sm:$0xff]
    %v74 = vld [vmem:[#allocation7] sm:$0x1]
    %v75 = vld [vmem:[#allocation7 + $0x1] sm:$0x1]
    %v76 = vld [vmem:[#allocation7 + $0x2] sm:$0x1]
    %v77 = vld [vmem:[#allocation7 + $0x3] sm:$0x1]
    %v78 = vld [vmem:[#allocation7 + $0x4] sm:$0x1]
    %v79 = vld [vmem:[#allocation7 + $0x5] sm:$0x1]
    %v80 = vld [vmem:[#allocation7 + $0x6] sm:$0x1]
    %v81 = vld [vmem:[#allocation7 + $0x7] sm:$0x1]
    %vm82 = vcmask 261120
    %v83 = vsel %vm82, %v72, 0.0
    %84 = vadd.xlane.f32.xlu0 %v83
    %v85 = vpop.xlane.xlu0 %84
    %v86 = vsel %vm82, %v73, 0.0
    %87 = vadd.xlane.f32.xlu0 %v86
    %v88 = vpop.xlane.xlu0 %87
    %v89 = vrcp.pop 32.0
    %v90 = vmul.f32 32.0, %v89
    %v91 = vsub.f32 1.0, %v90
    %v92 = vmul.f32 %v89, %v91
    %v93 = vadd.f32 %v89, %v92
    %vm94 = vweird.f32 %v89
    %v95 = vsel %vm94, %v89, %v93
    %v96 = vmul.f32 %v85, %v95
    %v97 = vmul.f32 %v88, %v95
    %v98 = vsub.f32 %v72, %v96
    %v99 = vsub.f32 %v73, %v97
    %v100 = vmul.f32 %v98, %v98
    %v101 = vmul.f32 %v99, %v99
    %v102 = vsel %vm82, %v100, 0.0
    %103 = vadd.xlane.f32.xlu0 %v102
    %v104 = vpop.xlane.xlu0 %103
    %v105 = vsel %vm82, %v101, 0.0
    %106 = vadd.xlane.f32.xlu0 %v105
    %v107 = vpop.xlane.xlu0 %106
    %v108 = vmul.f32 %v104, %v95
    %v109 = vmul.f32 %v107, %v95
    %v110 = vadd.f32 %v108, 1e-06
    %v111 = vadd.f32 %v109, 1e-06
    %v112 = vrsqrt.pop %v110
    %v113 = vmul.f32 %v112, %v110
    %v114 = vmul.f32 %v113, %v112
    %v115 = vmul.f32 0.5, %v114
    %v116 = vsub.f32 1.5, %v115
    %v117 = vmul.f32 %v112, %v116
    %vm118 = vweird.f32 %v110
    %vm119 = vweird.f32 %v112
    %vm120 = vmor %vm118, %vm119
    %v121 = vsel %vm120, %v112, %v117
    %v122 = vrsqrt.pop %v111
    %v123 = vmul.f32 %v122, %v111
    %v124 = vmul.f32 %v123, %v122
    %v125 = vmul.f32 0.5, %v124
    %v126 = vsub.f32 1.5, %v125
    %v127 = vmul.f32 %v122, %v126
    %vm128 = vweird.f32 %v111
    %vm129 = vweird.f32 %v122
    %vm130 = vmor %vm128, %vm129
    %v131 = vsel %vm130, %v122, %v127
    %v132 = vmul.f32 %v98, %v121
    %v133 = vmul.f32 %v99, %v131
    %v134 = vperm.slane %v76, 0
    %v135 = vmul.f32 %v132, %v134
    %v136 = vmul.f32 %v133, %v134
    %v137 = vperm.slane %v77, 0
    %v138 = vadd.f32 %v135, %v137
    %v139 = vadd.f32 %v136, %v137
    %v140 = vld [vmem:[%s2] sm:$0xff]
    %v141 = vld [vmem:[%s2 + $0x8] sm:$0xff]
    %v142 = vld [vmem:[%s2 + $0x10] sm:$0xff]
    %v143 = vld [vmem:[%s2 + $0x18] sm:$0xff]
    %v144 = vperm.slane %v74, 0
    %v146 = vsel %vm82, %v138, 0
    %v149 = vsel %vm82, %v139, 0
    %151 = vmatpush.msra.mxu0 0.0
    %152 = vmatpush.msra.mxu0 0.0
    %153 = vmatpush.msra.mxu0 0.0
    %154 = vmatpush.msra.mxu0 0.0
    %155 = vmatpush.msra.mxu0 0.0
    %156 = vmatpush.msra.mxu0 0.0
    %157 = vmatpush.msra.mxu0 0.0
    %158 = vmatpush.msra.mxu0 0.0
    %159 = vmatpush.msra.mxu0 0.0
    %160 = vmatpush.msra.mxu0 0.0
    %161 = vmatpush.msra.mxu0 0.0
    %162 = vmatpush.msra.mxu0 0.0
    %v163 = vand.u32 %v143, 4294901760
    %164 = vmatpush.msra.mxu0 %v163
    %v165 = vand.u32 %v142, 4294901760
    %166 = vmatpush.msra.mxu0 %v165
    %v167 = vand.u32 %v141, 4294901760
    %168 = vmatpush.msra.mxu0 %v167
    %v169 = vand.u32 %v140, 4294901760
    %170 = vmatpush.msra.mxu0 %v169
    %v171 = vand.u32 %v146, 4294901760
    %v172 = vsub.f32 %v146, %v171
    %v173 = vand.u32 %v172, 4294901760
    %v174 = vsub.f32 %v172, %v173
    %v175 = vand.u32 %v174, 4294901760
    %176 = vmatmul.f32.gmra.mxu0 %v175
    %v177 = vpop.f32.mrf.mxu0
    %v178 = vadd.f32 %v144, %v177
    %v179 = vand.u32 %v149, 4294901760
    %v180 = vsub.f32 %v149, %v179
    %v181 = vand.u32 %v180, 4294901760
    %v182 = vsub.f32 %v180, %v181
    %v183 = vand.u32 %v182, 4294901760
    %184 = vmatmul.f32.gmra.mxu0 %v183
    %v185 = vpop.f32.mrf.mxu0
    %v186 = vadd.f32 %v144, %v185
    %187 = vdwg.mxu0
    %188 = vmatpush.msra.mxu0 0.0
    %189 = vmatpush.msra.mxu0 0.0
    %190 = vmatpush.msra.mxu0 0.0
    %191 = vmatpush.msra.mxu0 0.0
    %192 = vmatpush.msra.mxu0 0.0
    %193 = vmatpush.msra.mxu0 0.0
    %194 = vmatpush.msra.mxu0 0.0
    %195 = vmatpush.msra.mxu0 0.0
    %196 = vmatpush.msra.mxu0 0.0
    %197 = vmatpush.msra.mxu0 0.0
    %198 = vmatpush.msra.mxu0 0.0
    %199 = vmatpush.msra.mxu0 0.0
    %v200 = vand.u32 %v143, 4294901760
    %v201 = vsub.f32 %v143, %v200
    %v202 = vand.u32 %v201, 4294901760
    %v203 = vsub.f32 %v201, %v202
    %v204 = vand.u32 %v203, 4294901760
    %205 = vmatpush.msra.mxu0 %v204
    %v206 = vand.u32 %v142, 4294901760
    %v207 = vsub.f32 %v142, %v206
    %v208 = vand.u32 %v207, 4294901760
    %v209 = vsub.f32 %v207, %v208
    %v210 = vand.u32 %v209, 4294901760
    %211 = vmatpush.msra.mxu0 %v210
    %v212 = vand.u32 %v141, 4294901760
    %v213 = vsub.f32 %v141, %v212
    %v214 = vand.u32 %v213, 4294901760
    %v215 = vsub.f32 %v213, %v214
    %v216 = vand.u32 %v215, 4294901760
    %217 = vmatpush.msra.mxu0 %v216
    %v218 = vand.u32 %v140, 4294901760
    %v219 = vsub.f32 %v140, %v218
    %v220 = vand.u32 %v219, 4294901760
    %v221 = vsub.f32 %v219, %v220
    %v222 = vand.u32 %v221, 4294901760
    %223 = vmatpush.msra.mxu0 %v222
    %v224 = vand.u32 %v146, 4294901760
    %225 = vmatmul.f32.gmra.mxu0 %v224
    %v226 = vpop.f32.mrf.mxu0
    %v227 = vadd.f32 %v178, %v226
    %v228 = vand.u32 %v149, 4294901760
    %229 = vmatmul.f32.gmra.mxu0 %v228
    %v230 = vpop.f32.mrf.mxu0
    %v231 = vadd.f32 %v186, %v230
    %232 = vdwg.mxu0
    %233 = vmatpush.msra.mxu0 0.0
    %234 = vmatpush.msra.mxu0 0.0
    %235 = vmatpush.msra.mxu0 0.0
    %236 = vmatpush.msra.mxu0 0.0
    %237 = vmatpush.msra.mxu0 0.0
    %238 = vmatpush.msra.mxu0 0.0
    %239 = vmatpush.msra.mxu0 0.0
    %240 = vmatpush.msra.mxu0 0.0
    %241 = vmatpush.msra.mxu0 0.0
    %242 = vmatpush.msra.mxu0 0.0
    %243 = vmatpush.msra.mxu0 0.0
    %244 = vmatpush.msra.mxu0 0.0
    %v245 = vand.u32 %v143, 4294901760
    %v246 = vsub.f32 %v143, %v245
    %247 = vmatpush.msra.mxu0 %v246
    %v248 = vand.u32 %v142, 4294901760
    %v249 = vsub.f32 %v142, %v248
    %250 = vmatpush.msra.mxu0 %v249
    %v251 = vand.u32 %v141, 4294901760
    %v252 = vsub.f32 %v141, %v251
    %253 = vmatpush.msra.mxu0 %v252
    %v254 = vand.u32 %v140, 4294901760
    %v255 = vsub.f32 %v140, %v254
    %256 = vmatpush.msra.mxu0 %v255
    %v257 = vand.u32 %v146, 4294901760
    %v258 = vsub.f32 %v146, %v257
    %259 = vmatmul.f32.gmra.mxu0 %v258
    %v260 = vpop.f32.mrf.mxu0
    %v261 = vadd.f32 %v227, %v260
    %v262 = vand.u32 %v149, 4294901760
    %v263 = vsub.f32 %v149, %v262
    %264 = vmatmul.f32.gmra.mxu0 %v263
    %v265 = vpop.f32.mrf.mxu0
    %v266 = vadd.f32 %v231, %v265
    %267 = vdwg.mxu0
    %268 = vmatpush.msra.mxu0 0.0
    %269 = vmatpush.msra.mxu0 0.0
    %270 = vmatpush.msra.mxu0 0.0
    %271 = vmatpush.msra.mxu0 0.0
    %272 = vmatpush.msra.mxu0 0.0
    %273 = vmatpush.msra.mxu0 0.0
    %274 = vmatpush.msra.mxu0 0.0
    %275 = vmatpush.msra.mxu0 0.0
    %276 = vmatpush.msra.mxu0 0.0
    %277 = vmatpush.msra.mxu0 0.0
    %278 = vmatpush.msra.mxu0 0.0
    %279 = vmatpush.msra.mxu0 0.0
    %v280 = vand.u32 %v143, 4294901760
    %281 = vmatpush.msra.mxu0 %v280
    %v282 = vand.u32 %v142, 4294901760
    %283 = vmatpush.msra.mxu0 %v282
    %v284 = vand.u32 %v141, 4294901760
    %285 = vmatpush.msra.mxu0 %v284
    %v286 = vand.u32 %v140, 4294901760
    %287 = vmatpush.msra.mxu0 %v286
    %v288 = vand.u32 %v146, 4294901760
    %v289 = vsub.f32 %v146, %v288
    %v290 = vand.u32 %v289, 4294901760
    %291 = vmatmul.f32.gmra.mxu0 %v290
    %v292 = vpop.f32.mrf.mxu0
    %v293 = vadd.f32 %v261, %v292
    %v294 = vand.u32 %v149, 4294901760
    %v295 = vsub.f32 %v149, %v294
    %v296 = vand.u32 %v295, 4294901760
    %297 = vmatmul.f32.gmra.mxu0 %v296
    %v298 = vpop.f32.mrf.mxu0
    %v299 = vadd.f32 %v266, %v298
    %300 = vdwg.mxu0
    %301 = vmatpush.msra.mxu0 0.0
    %302 = vmatpush.msra.mxu0 0.0
    %303 = vmatpush.msra.mxu0 0.0
    %304 = vmatpush.msra.mxu0 0.0
    %305 = vmatpush.msra.mxu0 0.0
    %306 = vmatpush.msra.mxu0 0.0
    %307 = vmatpush.msra.mxu0 0.0
    %308 = vmatpush.msra.mxu0 0.0
    %309 = vmatpush.msra.mxu0 0.0
    %310 = vmatpush.msra.mxu0 0.0
    %311 = vmatpush.msra.mxu0 0.0
    %312 = vmatpush.msra.mxu0 0.0
    %v313 = vand.u32 %v143, 4294901760
    %v314 = vsub.f32 %v143, %v313
    %v315 = vand.u32 %v314, 4294901760
    %316 = vmatpush.msra.mxu0 %v315
    %v317 = vand.u32 %v142, 4294901760
    %v318 = vsub.f32 %v142, %v317
    %v319 = vand.u32 %v318, 4294901760
    %320 = vmatpush.msra.mxu0 %v319
    %v321 = vand.u32 %v141, 4294901760
    %v322 = vsub.f32 %v141, %v321
    %v323 = vand.u32 %v322, 4294901760
    %324 = vmatpush.msra.mxu0 %v323
    %v325 = vand.u32 %v140, 4294901760
    %v326 = vsub.f32 %v140, %v325
    %v327 = vand.u32 %v326, 4294901760
    %328 = vmatpush.msra.mxu0 %v327
    %v329 = vand.u32 %v146, 4294901760
    %330 = vmatmul.f32.gmra.mxu0 %v329
    %v331 = vpop.f32.mrf.mxu0
    %v332 = vadd.f32 %v293, %v331
    %v333 = vand.u32 %v149, 4294901760
    %334 = vmatmul.f32.gmra.mxu0 %v333
    %v335 = vpop.f32.mrf.mxu0
    %v336 = vadd.f32 %v299, %v335
    %337 = vdwg.mxu0
    %338 = vmatpush.msra.mxu0 0.0
    %339 = vmatpush.msra.mxu0 0.0
    %340 = vmatpush.msra.mxu0 0.0
    %341 = vmatpush.msra.mxu0 0.0
    %342 = vmatpush.msra.mxu0 0.0
    %343 = vmatpush.msra.mxu0 0.0
    %344 = vmatpush.msra.mxu0 0.0
    %345 = vmatpush.msra.mxu0 0.0
    %346 = vmatpush.msra.mxu0 0.0
    %347 = vmatpush.msra.mxu0 0.0
    %348 = vmatpush.msra.mxu0 0.0
    %349 = vmatpush.msra.mxu0 0.0
    %v350 = vand.u32 %v143, 4294901760
    %351 = vmatpush.msra.mxu0 %v350
    %v352 = vand.u32 %v142, 4294901760
    %353 = vmatpush.msra.mxu0 %v352
    %v354 = vand.u32 %v141, 4294901760
    %355 = vmatpush.msra.mxu0 %v354
    %v356 = vand.u32 %v140, 4294901760
    %357 = vmatpush.msra.mxu0 %v356
    %v358 = vand.u32 %v146, 4294901760
    %359 = vmatmul.f32.gmra.mxu0 %v358
    %v360 = vpop.f32.mrf.mxu0
    %v361 = vadd.f32 %v332, %v360
    %v362 = vand.u32 %v149, 4294901760
    %363 = vmatmul.f32.gmra.mxu0 %v362
    %v364 = vpop.f32.mrf.mxu0
    %v365 = vadd.f32 %v336, %v364
    %366 = vdwg.mxu0
    %368 = vrot.lane.b32.xlu0 %v361, 120
    %v369 = vpop.permute.xlu0 %368
    %vm370 = vcmask 64512
    %v371 = vsel %vm370, %v361, 0
    %v373 = vsel %vm370, %v369, 0
    %375 = vmatpush.xpose.msra.mxu0 0.0
    %376 = vmatpush.xpose.msra.mxu0 0.0
    %377 = vmatpush.xpose.msra.mxu0 0.0
    %378 = vmatpush.xpose.msra.mxu0 0.0
    %379 = vmatpush.xpose.msra.mxu0 0.0
    %380 = vmatpush.xpose.msra.mxu0 0.0
    %381 = vmatpush.xpose.msra.mxu0 0.0
    %382 = vmatpush.xpose.msra.mxu0 0.0
    %383 = vmatpush.xpose.msra.mxu0 0.0
    %384 = vmatpush.xpose.msra.mxu0 0.0
    %385 = vmatpush.xpose.msra.mxu0 0.0
    %386 = vmatpush.xpose.msra.mxu0 0.0
    %387 = vmatpush.xpose.msra.mxu0 0.0
    %388 = vmatpush.xpose.msra.mxu0 0.0
    %389 = vmatpush.xpose.msra.mxu0 0.0
    %v390 = vand.u32 %v373, 4294901760
    %391 = vmatpush.xpose.msra.mxu0 %v390
    %v392 = vand.u32 %v371, 4294901760
    %v393 = vsub.f32 %v371, %v392
    %v394 = vand.u32 %v393, 4294901760
    %v395 = vsub.f32 %v393, %v394
    %v396 = vand.u32 %v395, 4294901760
    %397 = vmatmul.f32.gmra.mxu0 %v396
    %v398 = vpop.f32.mrf.mxu0
    %v399 = vadd.f32 0.0, %v398
    %400 = vdwg.mxu0
    %401 = vmatpush.xpose.msra.mxu0 0.0
    %402 = vmatpush.xpose.msra.mxu0 0.0
    %403 = vmatpush.xpose.msra.mxu0 0.0
    %404 = vmatpush.xpose.msra.mxu0 0.0
    %405 = vmatpush.xpose.msra.mxu0 0.0
    %406 = vmatpush.xpose.msra.mxu0 0.0
    %407 = vmatpush.xpose.msra.mxu0 0.0
    %408 = vmatpush.xpose.msra.mxu0 0.0
    %409 = vmatpush.xpose.msra.mxu0 0.0
    %410 = vmatpush.xpose.msra.mxu0 0.0
    %411 = vmatpush.xpose.msra.mxu0 0.0
    %412 = vmatpush.xpose.msra.mxu0 0.0
    %413 = vmatpush.xpose.msra.mxu0 0.0
    %414 = vmatpush.xpose.msra.mxu0 0.0
    %415 = vmatpush.xpose.msra.mxu0 0.0
    %v416 = vand.u32 %v373, 4294901760
    %v417 = vsub.f32 %v373, %v416
    %v418 = vand.u32 %v417, 4294901760
    %v419 = vsub.f32 %v417, %v418
    %v420 = vand.u32 %v419, 4294901760
    %421 = vmatpush.xpose.msra.mxu0 %v420
    %v422 = vand.u32 %v371, 4294901760
    %423 = vmatmul.f32.gmra.mxu0 %v422
    %v424 = vpop.f32.mrf.mxu0
    %v425 = vadd.f32 %v399, %v424
    %426 = vdwg.mxu0
    %427 = vmatpush.xpose.msra.mxu0 0.0
    %428 = vmatpush.xpose.msra.mxu0 0.0
    %429 = vmatpush.xpose.msra.mxu0 0.0
    %430 = vmatpush.xpose.msra.mxu0 0.0
    %431 = vmatpush.xpose.msra.mxu0 0.0
    %432 = vmatpush.xpose.msra.mxu0 0.0
    %433 = vmatpush.xpose.msra.mxu0 0.0
    %434 = vmatpush.xpose.msra.mxu0 0.0
    %435 = vmatpush.xpose.msra.mxu0 0.0
    %436 = vmatpush.xpose.msra.mxu0 0.0
    %437 = vmatpush.xpose.msra.mxu0 0.0
    %438 = vmatpush.xpose.msra.mxu0 0.0
    %439 = vmatpush.xpose.msra.mxu0 0.0
    %440 = vmatpush.xpose.msra.mxu0 0.0
    %441 = vmatpush.xpose.msra.mxu0 0.0
    %v442 = vand.u32 %v373, 4294901760
    %v443 = vsub.f32 %v373, %v442
    %444 = vmatpush.xpose.msra.mxu0 %v443
    %v445 = vand.u32 %v371, 4294901760
    %v446 = vsub.f32 %v371, %v445
    %447 = vmatmul.f32.gmra.mxu0 %v446
    %v448 = vpop.f32.mrf.mxu0
    %v449 = vadd.f32 %v425, %v448
    %450 = vdwg.mxu0
    %451 = vmatpush.xpose.msra.mxu0 0.0
    %452 = vmatpush.xpose.msra.mxu0 0.0
    %453 = vmatpush.xpose.msra.mxu0 0.0
    %454 = vmatpush.xpose.msra.mxu0 0.0
    %455 = vmatpush.xpose.msra.mxu0 0.0
    %456 = vmatpush.xpose.msra.mxu0 0.0
    %457 = vmatpush.xpose.msra.mxu0 0.0
    %458 = vmatpush.xpose.msra.mxu0 0.0
    %459 = vmatpush.xpose.msra.mxu0 0.0
    %460 = vmatpush.xpose.msra.mxu0 0.0
    %461 = vmatpush.xpose.msra.mxu0 0.0
    %462 = vmatpush.xpose.msra.mxu0 0.0
    %463 = vmatpush.xpose.msra.mxu0 0.0
    %464 = vmatpush.xpose.msra.mxu0 0.0
    %465 = vmatpush.xpose.msra.mxu0 0.0
    %v466 = vand.u32 %v373, 4294901760
    %467 = vmatpush.xpose.msra.mxu0 %v466
    %v468 = vand.u32 %v371, 4294901760
    %v469 = vsub.f32 %v371, %v468
    %v470 = vand.u32 %v469, 4294901760
    %471 = vmatmul.f32.gmra.mxu0 %v470
    %v472 = vpop.f32.mrf.mxu0
    %v473 = vadd.f32 %v449, %v472
    %474 = vdwg.mxu0
    %475 = vmatpush.xpose.msra.mxu0 0.0
    %476 = vmatpush.xpose.msra.mxu0 0.0
    %477 = vmatpush.xpose.msra.mxu0 0.0
    %478 = vmatpush.xpose.msra.mxu0 0.0
    %479 = vmatpush.xpose.msra.mxu0 0.0
    %480 = vmatpush.xpose.msra.mxu0 0.0
    %481 = vmatpush.xpose.msra.mxu0 0.0
    %482 = vmatpush.xpose.msra.mxu0 0.0
    %483 = vmatpush.xpose.msra.mxu0 0.0
    %484 = vmatpush.xpose.msra.mxu0 0.0
    %485 = vmatpush.xpose.msra.mxu0 0.0
    %486 = vmatpush.xpose.msra.mxu0 0.0
    %487 = vmatpush.xpose.msra.mxu0 0.0
    %488 = vmatpush.xpose.msra.mxu0 0.0
    %489 = vmatpush.xpose.msra.mxu0 0.0
    %v490 = vand.u32 %v373, 4294901760
    %v491 = vsub.f32 %v373, %v490
    %v492 = vand.u32 %v491, 4294901760
    %493 = vmatpush.xpose.msra.mxu0 %v492
    %v494 = vand.u32 %v371, 4294901760
    %495 = vmatmul.f32.gmra.mxu0 %v494
    %v496 = vpop.f32.mrf.mxu0
    %v497 = vadd.f32 %v473, %v496
    %498 = vdwg.mxu0
    %499 = vmatpush.xpose.msra.mxu0 0.0
    %500 = vmatpush.xpose.msra.mxu0 0.0
    %501 = vmatpush.xpose.msra.mxu0 0.0
    %502 = vmatpush.xpose.msra.mxu0 0.0
    %503 = vmatpush.xpose.msra.mxu0 0.0
    %504 = vmatpush.xpose.msra.mxu0 0.0
    %505 = vmatpush.xpose.msra.mxu0 0.0
    %506 = vmatpush.xpose.msra.mxu0 0.0
    %507 = vmatpush.xpose.msra.mxu0 0.0
    %508 = vmatpush.xpose.msra.mxu0 0.0
    %509 = vmatpush.xpose.msra.mxu0 0.0
    %510 = vmatpush.xpose.msra.mxu0 0.0
    %511 = vmatpush.xpose.msra.mxu0 0.0
    %512 = vmatpush.xpose.msra.mxu0 0.0
    %513 = vmatpush.xpose.msra.mxu0 0.0
    %v514 = vand.u32 %v373, 4294901760
    %515 = vmatpush.xpose.msra.mxu0 %v514
    %v516 = vand.u32 %v371, 4294901760
    %517 = vmatmul.f32.gmra.mxu0 %v516
    %v518 = vpop.f32.mrf.mxu0
    %v519 = vadd.f32 %v497, %v518
    %520 = vdwg.mxu0
    %521 = vrot.lane.b32.xlu0 %v361, 104
    %v522 = vpop.permute.xlu0 %521
    %523 = vrot.lane.b32.xlu0 %v361, 96
    %v524 = vpop.permute.xlu0 %523
    %v525 = vsel %vm370, %v522, 0
    %v527 = vsel %vm370, %v524, 0
    %529 = vmatpush.xpose.msra.mxu0 0.0
    %530 = vmatpush.xpose.msra.mxu0 0.0
    %531 = vmatpush.xpose.msra.mxu0 0.0
    %532 = vmatpush.xpose.msra.mxu0 0.0
    %533 = vmatpush.xpose.msra.mxu0 0.0
    %534 = vmatpush.xpose.msra.mxu0 0.0
    %535 = vmatpush.xpose.msra.mxu0 0.0
    %536 = vmatpush.xpose.msra.mxu0 0.0
    %537 = vmatpush.xpose.msra.mxu0 0.0
    %538 = vmatpush.xpose.msra.mxu0 0.0
    %539 = vmatpush.xpose.msra.mxu0 0.0
    %540 = vmatpush.xpose.msra.mxu0 0.0
    %541 = vmatpush.xpose.msra.mxu0 0.0
    %542 = vmatpush.xpose.msra.mxu0 0.0
    %543 = vmatpush.xpose.msra.mxu0 0.0
    %v544 = vand.u32 %v527, 4294901760
    %545 = vmatpush.xpose.msra.mxu0 %v544
    %v546 = vand.u32 %v525, 4294901760
    %v547 = vsub.f32 %v525, %v546
    %v548 = vand.u32 %v547, 4294901760
    %v549 = vsub.f32 %v547, %v548
    %v550 = vand.u32 %v549, 4294901760
    %551 = vmatmul.f32.gmra.mxu0 %v550
    %v552 = vpop.f32.mrf.mxu0
    %v553 = vadd.f32 0.0, %v552
    %554 = vdwg.mxu0
    %555 = vmatpush.xpose.msra.mxu0 0.0
    %556 = vmatpush.xpose.msra.mxu0 0.0
    %557 = vmatpush.xpose.msra.mxu0 0.0
    %558 = vmatpush.xpose.msra.mxu0 0.0
    %559 = vmatpush.xpose.msra.mxu0 0.0
    %560 = vmatpush.xpose.msra.mxu0 0.0
    %561 = vmatpush.xpose.msra.mxu0 0.0
    %562 = vmatpush.xpose.msra.mxu0 0.0
    %563 = vmatpush.xpose.msra.mxu0 0.0
    %564 = vmatpush.xpose.msra.mxu0 0.0
    %565 = vmatpush.xpose.msra.mxu0 0.0
    %566 = vmatpush.xpose.msra.mxu0 0.0
    %567 = vmatpush.xpose.msra.mxu0 0.0
    %568 = vmatpush.xpose.msra.mxu0 0.0
    %569 = vmatpush.xpose.msra.mxu0 0.0
    %v570 = vand.u32 %v527, 4294901760
    %v571 = vsub.f32 %v527, %v570
    %v572 = vand.u32 %v571, 4294901760
    %v573 = vsub.f32 %v571, %v572
    %v574 = vand.u32 %v573, 4294901760
    %575 = vmatpush.xpose.msra.mxu0 %v574
    %v576 = vand.u32 %v525, 4294901760
    %577 = vmatmul.f32.gmra.mxu0 %v576
    %v578 = vpop.f32.mrf.mxu0
    %v579 = vadd.f32 %v553, %v578
    %580 = vdwg.mxu0
    %581 = vmatpush.xpose.msra.mxu0 0.0
    %582 = vmatpush.xpose.msra.mxu0 0.0
    %583 = vmatpush.xpose.msra.mxu0 0.0
    %584 = vmatpush.xpose.msra.mxu0 0.0
    %585 = vmatpush.xpose.msra.mxu0 0.0
    %586 = vmatpush.xpose.msra.mxu0 0.0
    %587 = vmatpush.xpose.msra.mxu0 0.0
    %588 = vmatpush.xpose.msra.mxu0 0.0
    %589 = vmatpush.xpose.msra.mxu0 0.0
    %590 = vmatpush.xpose.msra.mxu0 0.0
    %591 = vmatpush.xpose.msra.mxu0 0.0
    %592 = vmatpush.xpose.msra.mxu0 0.0
    %593 = vmatpush.xpose.msra.mxu0 0.0
    %594 = vmatpush.xpose.msra.mxu0 0.0
    %595 = vmatpush.xpose.msra.mxu0 0.0
    %v596 = vand.u32 %v527, 4294901760
    %v597 = vsub.f32 %v527, %v596
    %598 = vmatpush.xpose.msra.mxu0 %v597
    %v599 = vand.u32 %v525, 4294901760
    %v600 = vsub.f32 %v525, %v599
    %601 = vmatmul.f32.gmra.mxu0 %v600
    %v602 = vpop.f32.mrf.mxu0
    %v603 = vadd.f32 %v579, %v602
    %604 = vdwg.mxu0
    %605 = vmatpush.xpose.msra.mxu0 0.0
    %606 = vmatpush.xpose.msra.mxu0 0.0
    %607 = vmatpush.xpose.msra.mxu0 0.0
    %608 = vmatpush.xpose.msra.mxu0 0.0
    %609 = vmatpush.xpose.msra.mxu0 0.0
    %610 = vmatpush.xpose.msra.mxu0 0.0
    %611 = vmatpush.xpose.msra.mxu0 0.0
    %612 = vmatpush.xpose.msra.mxu0 0.0
    %613 = vmatpush.xpose.msra.mxu0 0.0
    %614 = vmatpush.xpose.msra.mxu0 0.0
    %615 = vmatpush.xpose.msra.mxu0 0.0
    %616 = vmatpush.xpose.msra.mxu0 0.0
    %617 = vmatpush.xpose.msra.mxu0 0.0
    %618 = vmatpush.xpose.msra.mxu0 0.0
    %619 = vmatpush.xpose.msra.mxu0 0.0
    %v620 = vand.u32 %v527, 4294901760
    %621 = vmatpush.xpose.msra.mxu0 %v620
    %v622 = vand.u32 %v525, 4294901760
    %v623 = vsub.f32 %v525, %v622
    %v624 = vand.u32 %v623, 4294901760
    %625 = vmatmul.f32.gmra.mxu0 %v624
    %v626 = vpop.f32.mrf.mxu0
    %v627 = vadd.f32 %v603, %v626
    %628 = vdwg.mxu0
    %629 = vmatpush.xpose.msra.mxu0 0.0
    %630 = vmatpush.xpose.msra.mxu0 0.0
    %631 = vmatpush.xpose.msra.mxu0 0.0
    %632 = vmatpush.xpose.msra.mxu0 0.0
    %633 = vmatpush.xpose.msra.mxu0 0.0
    %634 = vmatpush.xpose.msra.mxu0 0.0
    %635 = vmatpush.xpose.msra.mxu0 0.0
    %636 = vmatpush.xpose.msra.mxu0 0.0
    %637 = vmatpush.xpose.msra.mxu0 0.0
    %638 = vmatpush.xpose.msra.mxu0 0.0
    %639 = vmatpush.xpose.msra.mxu0 0.0
    %640 = vmatpush.xpose.msra.mxu0 0.0
    %641 = vmatpush.xpose.msra.mxu0 0.0
    %642 = vmatpush.xpose.msra.mxu0 0.0
    %643 = vmatpush.xpose.msra.mxu0 0.0
    %v644 = vand.u32 %v527, 4294901760
    %v645 = vsub.f32 %v527, %v644
    %v646 = vand.u32 %v645, 4294901760
    %647 = vmatpush.xpose.msra.mxu0 %v646
    %v648 = vand.u32 %v525, 4294901760
    %649 = vmatmul.f32.gmra.mxu0 %v648
    %v650 = vpop.f32.mrf.mxu0
    %v651 = vadd.f32 %v627, %v650
    %652 = vdwg.mxu0
    %653 = vmatpush.xpose.msra.mxu0 0.0
    %654 = vmatpush.xpose.msra.mxu0 0.0
    %655 = vmatpush.xpose.msra.mxu0 0.0
    %656 = vmatpush.xpose.msra.mxu0 0.0
    %657 = vmatpush.xpose.msra.mxu0 0.0
    %658 = vmatpush.xpose.msra.mxu0 0.0
    %659 = vmatpush.xpose.msra.mxu0 0.0
    %660 = vmatpush.xpose.msra.mxu0 0.0
    %661 = vmatpush.xpose.msra.mxu0 0.0
    %662 = vmatpush.xpose.msra.mxu0 0.0
    %663 = vmatpush.xpose.msra.mxu0 0.0
    %664 = vmatpush.xpose.msra.mxu0 0.0
    %665 = vmatpush.xpose.msra.mxu0 0.0
    %666 = vmatpush.xpose.msra.mxu0 0.0
    %667 = vmatpush.xpose.msra.mxu0 0.0
    %v668 = vand.u32 %v527, 4294901760
    %669 = vmatpush.xpose.msra.mxu0 %v668
    %v670 = vand.u32 %v525, 4294901760
    %671 = vmatmul.f32.gmra.mxu0 %v670
    %v672 = vpop.f32.mrf.mxu0
    %v673 = vadd.f32 %v651, %v672
    %674 = vdwg.mxu0
    %675 = vrot.lane.b32.xlu0 %v361, 80
    %v676 = vpop.permute.xlu0 %675
    %677 = vrot.lane.b32.xlu0 %v361, 72
    %v678 = vpop.permute.xlu0 %677
    %v679 = vsel %vm370, %v676, 0
    %v681 = vsel %vm370, %v678, 0
    %683 = vmatpush.xpose.msra.mxu0 0.0
    %684 = vmatpush.xpose.msra.mxu0 0.0
    %685 = vmatpush.xpose.msra.mxu0 0.0
    %686 = vmatpush.xpose.msra.mxu0 0.0
    %687 = vmatpush.xpose.msra.mxu0 0.0
    %688 = vmatpush.xpose.msra.mxu0 0.0
    %689 = vmatpush.xpose.msra.mxu0 0.0
    %690 = vmatpush.xpose.msra.mxu0 0.0
    %691 = vmatpush.xpose.msra.mxu0 0.0
    %692 = vmatpush.xpose.msra.mxu0 0.0
    %693 = vmatpush.xpose.msra.mxu0 0.0
    %694 = vmatpush.xpose.msra.mxu0 0.0
    %695 = vmatpush.xpose.msra.mxu0 0.0
    %696 = vmatpush.xpose.msra.mxu0 0.0
    %697 = vmatpush.xpose.msra.mxu0 0.0
    %v698 = vand.u32 %v681, 4294901760
    %699 = vmatpush.xpose.msra.mxu0 %v698
    %v700 = vand.u32 %v679, 4294901760
    %v701 = vsub.f32 %v679, %v700
    %v702 = vand.u32 %v701, 4294901760
    %v703 = vsub.f32 %v701, %v702
    %v704 = vand.u32 %v703, 4294901760
    %705 = vmatmul.f32.gmra.mxu0 %v704
    %v706 = vpop.f32.mrf.mxu0
    %v707 = vadd.f32 0.0, %v706
    %708 = vdwg.mxu0
    %709 = vmatpush.xpose.msra.mxu0 0.0
    %710 = vmatpush.xpose.msra.mxu0 0.0
    %711 = vmatpush.xpose.msra.mxu0 0.0
    %712 = vmatpush.xpose.msra.mxu0 0.0
    %713 = vmatpush.xpose.msra.mxu0 0.0
    %714 = vmatpush.xpose.msra.mxu0 0.0
    %715 = vmatpush.xpose.msra.mxu0 0.0
    %716 = vmatpush.xpose.msra.mxu0 0.0
    %717 = vmatpush.xpose.msra.mxu0 0.0
    %718 = vmatpush.xpose.msra.mxu0 0.0
    %719 = vmatpush.xpose.msra.mxu0 0.0
    %720 = vmatpush.xpose.msra.mxu0 0.0
    %721 = vmatpush.xpose.msra.mxu0 0.0
    %722 = vmatpush.xpose.msra.mxu0 0.0
    %723 = vmatpush.xpose.msra.mxu0 0.0
    %v724 = vand.u32 %v681, 4294901760
    %v725 = vsub.f32 %v681, %v724
    %v726 = vand.u32 %v725, 4294901760
    %v727 = vsub.f32 %v725, %v726
    %v728 = vand.u32 %v727, 4294901760
    %729 = vmatpush.xpose.msra.mxu0 %v728
    %v730 = vand.u32 %v679, 4294901760
    %731 = vmatmul.f32.gmra.mxu0 %v730
    %v732 = vpop.f32.mrf.mxu0
    %v733 = vadd.f32 %v707, %v732
    %734 = vdwg.mxu0
    %735 = vmatpush.xpose.msra.mxu0 0.0
    %736 = vmatpush.xpose.msra.mxu0 0.0
    %737 = vmatpush.xpose.msra.mxu0 0.0
    %738 = vmatpush.xpose.msra.mxu0 0.0
    %739 = vmatpush.xpose.msra.mxu0 0.0
    %740 = vmatpush.xpose.msra.mxu0 0.0
    %741 = vmatpush.xpose.msra.mxu0 0.0
    %742 = vmatpush.xpose.msra.mxu0 0.0
    %743 = vmatpush.xpose.msra.mxu0 0.0
    %744 = vmatpush.xpose.msra.mxu0 0.0
    %745 = vmatpush.xpose.msra.mxu0 0.0
    %746 = vmatpush.xpose.msra.mxu0 0.0
    %747 = vmatpush.xpose.msra.mxu0 0.0
    %748 = vmatpush.xpose.msra.mxu0 0.0
    %749 = vmatpush.xpose.msra.mxu0 0.0
    %v750 = vand.u32 %v681, 4294901760
    %v751 = vsub.f32 %v681, %v750
    %752 = vmatpush.xpose.msra.mxu0 %v751
    %v753 = vand.u32 %v679, 4294901760
    %v754 = vsub.f32 %v679, %v753
    %755 = vmatmul.f32.gmra.mxu0 %v754
    %v756 = vpop.f32.mrf.mxu0
    %v757 = vadd.f32 %v733, %v756
    %758 = vdwg.mxu0
    %759 = vmatpush.xpose.msra.mxu0 0.0
    %760 = vmatpush.xpose.msra.mxu0 0.0
    %761 = vmatpush.xpose.msra.mxu0 0.0
    %762 = vmatpush.xpose.msra.mxu0 0.0
    %763 = vmatpush.xpose.msra.mxu0 0.0
    %764 = vmatpush.xpose.msra.mxu0 0.0
    %765 = vmatpush.xpose.msra.mxu0 0.0
    %766 = vmatpush.xpose.msra.mxu0 0.0
    %767 = vmatpush.xpose.msra.mxu0 0.0
    %768 = vmatpush.xpose.msra.mxu0 0.0
    %769 = vmatpush.xpose.msra.mxu0 0.0
    %770 = vmatpush.xpose.msra.mxu0 0.0
    %771 = vmatpush.xpose.msra.mxu0 0.0
    %772 = vmatpush.xpose.msra.mxu0 0.0
    %773 = vmatpush.xpose.msra.mxu0 0.0
    %v774 = vand.u32 %v681, 4294901760
    %775 = vmatpush.xpose.msra.mxu0 %v774
    %v776 = vand.u32 %v679, 4294901760
    %v777 = vsub.f32 %v679, %v776
    %v778 = vand.u32 %v777, 4294901760
    %779 = vmatmul.f32.gmra.mxu0 %v778
    %v780 = vpop.f32.mrf.mxu0
    %v781 = vadd.f32 %v757, %v780
    %782 = vdwg.mxu0
    %783 = vmatpush.xpose.msra.mxu0 0.0
    %784 = vmatpush.xpose.msra.mxu0 0.0
    %785 = vmatpush.xpose.msra.mxu0 0.0
    %786 = vmatpush.xpose.msra.mxu0 0.0
    %787 = vmatpush.xpose.msra.mxu0 0.0
    %788 = vmatpush.xpose.msra.mxu0 0.0
    %789 = vmatpush.xpose.msra.mxu0 0.0
    %790 = vmatpush.xpose.msra.mxu0 0.0
    %791 = vmatpush.xpose.msra.mxu0 0.0
    %792 = vmatpush.xpose.msra.mxu0 0.0
    %793 = vmatpush.xpose.msra.mxu0 0.0
    %794 = vmatpush.xpose.msra.mxu0 0.0
    %795 = vmatpush.xpose.msra.mxu0 0.0
    %796 = vmatpush.xpose.msra.mxu0 0.0
    %797 = vmatpush.xpose.msra.mxu0 0.0
    %v798 = vand.u32 %v681, 4294901760
    %v799 = vsub.f32 %v681, %v798
    %v800 = vand.u32 %v799, 4294901760
    %801 = vmatpush.xpose.msra.mxu0 %v800
    %v802 = vand.u32 %v679, 4294901760
    %803 = vmatmul.f32.gmra.mxu0 %v802
    %v804 = vpop.f32.mrf.mxu0
    %v805 = vadd.f32 %v781, %v804
    %806 = vdwg.mxu0
    %807 = vmatpush.xpose.msra.mxu0 0.0
    %808 = vmatpush.xpose.msra.mxu0 0.0
    %809 = vmatpush.xpose.msra.mxu0 0.0
    %810 = vmatpush.xpose.msra.mxu0 0.0
    %811 = vmatpush.xpose.msra.mxu0 0.0
    %812 = vmatpush.xpose.msra.mxu0 0.0
    %813 = vmatpush.xpose.msra.mxu0 0.0
    %814 = vmatpush.xpose.msra.mxu0 0.0
    %815 = vmatpush.xpose.msra.mxu0 0.0
    %816 = vmatpush.xpose.msra.mxu0 0.0
    %817 = vmatpush.xpose.msra.mxu0 0.0
    %818 = vmatpush.xpose.msra.mxu0 0.0
    %819 = vmatpush.xpose.msra.mxu0 0.0
    %820 = vmatpush.xpose.msra.mxu0 0.0
    %821 = vmatpush.xpose.msra.mxu0 0.0
    %v822 = vand.u32 %v681, 4294901760
    %823 = vmatpush.xpose.msra.mxu0 %v822
    %v824 = vand.u32 %v679, 4294901760
    %825 = vmatmul.f32.gmra.mxu0 %v824
    %v826 = vpop.f32.mrf.mxu0
    %v827 = vadd.f32 %v805, %v826
    %828 = vdwg.mxu0
    %829 = vrot.lane.b32.xlu0 %v361, 56
    %v830 = vpop.permute.xlu0 %829
    %831 = vrot.lane.b32.xlu0 %v361, 48
    %v832 = vpop.permute.xlu0 %831
    %v833 = vsel %vm370, %v830, 0
    %v835 = vsel %vm370, %v832, 0
    %837 = vmatpush.xpose.msra.mxu0 0.0
    %838 = vmatpush.xpose.msra.mxu0 0.0
    %839 = vmatpush.xpose.msra.mxu0 0.0
    %840 = vmatpush.xpose.msra.mxu0 0.0
    %841 = vmatpush.xpose.msra.mxu0 0.0
    %842 = vmatpush.xpose.msra.mxu0 0.0
    %843 = vmatpush.xpose.msra.mxu0 0.0
    %844 = vmatpush.xpose.msra.mxu0 0.0
    %845 = vmatpush.xpose.msra.mxu0 0.0
    %846 = vmatpush.xpose.msra.mxu0 0.0
    %847 = vmatpush.xpose.msra.mxu0 0.0
    %848 = vmatpush.xpose.msra.mxu0 0.0
    %849 = vmatpush.xpose.msra.mxu0 0.0
    %850 = vmatpush.xpose.msra.mxu0 0.0
    %851 = vmatpush.xpose.msra.mxu0 0.0
    %v852 = vand.u32 %v835, 4294901760
    %853 = vmatpush.xpose.msra.mxu0 %v852
    %v854 = vand.u32 %v833, 4294901760
    %v855 = vsub.f32 %v833, %v854
    %v856 = vand.u32 %v855, 4294901760
    %v857 = vsub.f32 %v855, %v856
    %v858 = vand.u32 %v857, 4294901760
    %859 = vmatmul.f32.gmra.mxu0 %v858
    %v860 = vpop.f32.mrf.mxu0
    %v861 = vadd.f32 0.0, %v860
    %862 = vdwg.mxu0
    %863 = vmatpush.xpose.msra.mxu0 0.0
    %864 = vmatpush.xpose.msra.mxu0 0.0
    %865 = vmatpush.xpose.msra.mxu0 0.0
    %866 = vmatpush.xpose.msra.mxu0 0.0
    %867 = vmatpush.xpose.msra.mxu0 0.0
    %868 = vmatpush.xpose.msra.mxu0 0.0
    %869 = vmatpush.xpose.msra.mxu0 0.0
    %870 = vmatpush.xpose.msra.mxu0 0.0
    %871 = vmatpush.xpose.msra.mxu0 0.0
    %872 = vmatpush.xpose.msra.mxu0 0.0
    %873 = vmatpush.xpose.msra.mxu0 0.0
    %874 = vmatpush.xpose.msra.mxu0 0.0
    %875 = vmatpush.xpose.msra.mxu0 0.0
    %876 = vmatpush.xpose.msra.mxu0 0.0
    %877 = vmatpush.xpose.msra.mxu0 0.0
    %v878 = vand.u32 %v835, 4294901760
    %v879 = vsub.f32 %v835, %v878
    %v880 = vand.u32 %v879, 4294901760
    %v881 = vsub.f32 %v879, %v880
    %v882 = vand.u32 %v881, 4294901760
    %883 = vmatpush.xpose.msra.mxu0 %v882
    %v884 = vand.u32 %v833, 4294901760
    %885 = vmatmul.f32.gmra.mxu0 %v884
    %v886 = vpop.f32.mrf.mxu0
    %v887 = vadd.f32 %v861, %v886
    %888 = vdwg.mxu0
    %889 = vmatpush.xpose.msra.mxu0 0.0
    %890 = vmatpush.xpose.msra.mxu0 0.0
    %891 = vmatpush.xpose.msra.mxu0 0.0
    %892 = vmatpush.xpose.msra.mxu0 0.0
    %893 = vmatpush.xpose.msra.mxu0 0.0
    %894 = vmatpush.xpose.msra.mxu0 0.0
    %895 = vmatpush.xpose.msra.mxu0 0.0
    %896 = vmatpush.xpose.msra.mxu0 0.0
    %897 = vmatpush.xpose.msra.mxu0 0.0
    %898 = vmatpush.xpose.msra.mxu0 0.0
    %899 = vmatpush.xpose.msra.mxu0 0.0
    %900 = vmatpush.xpose.msra.mxu0 0.0
    %901 = vmatpush.xpose.msra.mxu0 0.0
    %902 = vmatpush.xpose.msra.mxu0 0.0
    %903 = vmatpush.xpose.msra.mxu0 0.0
    %v904 = vand.u32 %v835, 4294901760
    %v905 = vsub.f32 %v835, %v904
    %906 = vmatpush.xpose.msra.mxu0 %v905
    %v907 = vand.u32 %v833, 4294901760
    %v908 = vsub.f32 %v833, %v907
    %909 = vmatmul.f32.gmra.mxu0 %v908
    %v910 = vpop.f32.mrf.mxu0
    %v911 = vadd.f32 %v887, %v910
    %912 = vdwg.mxu0
    %913 = vmatpush.xpose.msra.mxu0 0.0
    %914 = vmatpush.xpose.msra.mxu0 0.0
    %915 = vmatpush.xpose.msra.mxu0 0.0
    %916 = vmatpush.xpose.msra.mxu0 0.0
    %917 = vmatpush.xpose.msra.mxu0 0.0
    %918 = vmatpush.xpose.msra.mxu0 0.0
    %919 = vmatpush.xpose.msra.mxu0 0.0
    %920 = vmatpush.xpose.msra.mxu0 0.0
    %921 = vmatpush.xpose.msra.mxu0 0.0
    %922 = vmatpush.xpose.msra.mxu0 0.0
    %923 = vmatpush.xpose.msra.mxu0 0.0
    %924 = vmatpush.xpose.msra.mxu0 0.0
    %925 = vmatpush.xpose.msra.mxu0 0.0
    %926 = vmatpush.xpose.msra.mxu0 0.0
    %927 = vmatpush.xpose.msra.mxu0 0.0
    %v928 = vand.u32 %v835, 4294901760
    %929 = vmatpush.xpose.msra.mxu0 %v928
    %v930 = vand.u32 %v833, 4294901760
    %v931 = vsub.f32 %v833, %v930
    %v932 = vand.u32 %v931, 4294901760
    %933 = vmatmul.f32.gmra.mxu0 %v932
    %v934 = vpop.f32.mrf.mxu0
    %v935 = vadd.f32 %v911, %v934
    %936 = vdwg.mxu0
    %937 = vmatpush.xpose.msra.mxu0 0.0
    %938 = vmatpush.xpose.msra.mxu0 0.0
    %939 = vmatpush.xpose.msra.mxu0 0.0
    %940 = vmatpush.xpose.msra.mxu0 0.0
    %941 = vmatpush.xpose.msra.mxu0 0.0
    %942 = vmatpush.xpose.msra.mxu0 0.0
    %943 = vmatpush.xpose.msra.mxu0 0.0
    %944 = vmatpush.xpose.msra.mxu0 0.0
    %945 = vmatpush.xpose.msra.mxu0 0.0
    %946 = vmatpush.xpose.msra.mxu0 0.0
    %947 = vmatpush.xpose.msra.mxu0 0.0
    %948 = vmatpush.xpose.msra.mxu0 0.0
    %949 = vmatpush.xpose.msra.mxu0 0.0
    %950 = vmatpush.xpose.msra.mxu0 0.0
    %951 = vmatpush.xpose.msra.mxu0 0.0
    %v952 = vand.u32 %v835, 4294901760
    %v953 = vsub.f32 %v835, %v952
    %v954 = vand.u32 %v953, 4294901760
    %955 = vmatpush.xpose.msra.mxu0 %v954
    %v956 = vand.u32 %v833, 4294901760
    %957 = vmatmul.f32.gmra.mxu0 %v956
    %v958 = vpop.f32.mrf.mxu0
    %v959 = vadd.f32 %v935, %v958
    %960 = vdwg.mxu0
    %961 = vmatpush.xpose.msra.mxu0 0.0
    %962 = vmatpush.xpose.msra.mxu0 0.0
    %963 = vmatpush.xpose.msra.mxu0 0.0
    %964 = vmatpush.xpose.msra.mxu0 0.0
    %965 = vmatpush.xpose.msra.mxu0 0.0
    %966 = vmatpush.xpose.msra.mxu0 0.0
    %967 = vmatpush.xpose.msra.mxu0 0.0
    %968 = vmatpush.xpose.msra.mxu0 0.0
    %969 = vmatpush.xpose.msra.mxu0 0.0
    %970 = vmatpush.xpose.msra.mxu0 0.0
    %971 = vmatpush.xpose.msra.mxu0 0.0
    %972 = vmatpush.xpose.msra.mxu0 0.0
    %973 = vmatpush.xpose.msra.mxu0 0.0
    %974 = vmatpush.xpose.msra.mxu0 0.0
    %975 = vmatpush.xpose.msra.mxu0 0.0
    %v976 = vand.u32 %v835, 4294901760
    %977 = vmatpush.xpose.msra.mxu0 %v976
    %v978 = vand.u32 %v833, 4294901760
    %979 = vmatmul.f32.gmra.mxu0 %v978
    %v980 = vpop.f32.mrf.mxu0
    %v981 = vadd.f32 %v959, %v980
    %982 = vdwg.mxu0
    %984 = vrot.lane.b32.xlu0 %v365, 120
    %v985 = vpop.permute.xlu0 %984
    %v986 = vsel %vm370, %v365, 0
    %v988 = vsel %vm370, %v985, 0
    %990 = vmatpush.xpose.msra.mxu0 0.0
    %991 = vmatpush.xpose.msra.mxu0 0.0
    %992 = vmatpush.xpose.msra.mxu0 0.0
    %993 = vmatpush.xpose.msra.mxu0 0.0
    %994 = vmatpush.xpose.msra.mxu0 0.0
    %995 = vmatpush.xpose.msra.mxu0 0.0
    %996 = vmatpush.xpose.msra.mxu0 0.0
    %997 = vmatpush.xpose.msra.mxu0 0.0
    %998 = vmatpush.xpose.msra.mxu0 0.0
    %999 = vmatpush.xpose.msra.mxu0 0.0
    %1000 = vmatpush.xpose.msra.mxu0 0.0
    %1001 = vmatpush.xpose.msra.mxu0 0.0
    %1002 = vmatpush.xpose.msra.mxu0 0.0
    %1003 = vmatpush.xpose.msra.mxu0 0.0
    %1004 = vmatpush.xpose.msra.mxu0 0.0
    %v1005 = vand.u32 %v988, 4294901760
    %1006 = vmatpush.xpose.msra.mxu0 %v1005
    %v1007 = vand.u32 %v986, 4294901760
    %v1008 = vsub.f32 %v986, %v1007
    %v1009 = vand.u32 %v1008, 4294901760
    %v1010 = vsub.f32 %v1008, %v1009
    %v1011 = vand.u32 %v1010, 4294901760
    %1012 = vmatmul.f32.gmra.mxu0 %v1011
    %v1013 = vpop.f32.mrf.mxu0
    %v1014 = vadd.f32 0.0, %v1013
    %1015 = vdwg.mxu0
    %1016 = vmatpush.xpose.msra.mxu0 0.0
    %1017 = vmatpush.xpose.msra.mxu0 0.0
    %1018 = vmatpush.xpose.msra.mxu0 0.0
    %1019 = vmatpush.xpose.msra.mxu0 0.0
    %1020 = vmatpush.xpose.msra.mxu0 0.0
    %1021 = vmatpush.xpose.msra.mxu0 0.0
    %1022 = vmatpush.xpose.msra.mxu0 0.0
    %1023 = vmatpush.xpose.msra.mxu0 0.0
    %1024 = vmatpush.xpose.msra.mxu0 0.0
    %1025 = vmatpush.xpose.msra.mxu0 0.0
    %1026 = vmatpush.xpose.msra.mxu0 0.0
    %1027 = vmatpush.xpose.msra.mxu0 0.0
    %1028 = vmatpush.xpose.msra.mxu0 0.0
    %1029 = vmatpush.xpose.msra.mxu0 0.0
    %1030 = vmatpush.xpose.msra.mxu0 0.0
    %v1031 = vand.u32 %v988, 4294901760
    %v1032 = vsub.f32 %v988, %v1031
    %v1033 = vand.u32 %v1032, 4294901760
    %v1034 = vsub.f32 %v1032, %v1033
    %v1035 = vand.u32 %v1034, 4294901760
    %1036 = vmatpush.xpose.msra.mxu0 %v1035
    %v1037 = vand.u32 %v986, 4294901760
    %1038 = vmatmul.f32.gmra.mxu0 %v1037
    %v1039 = vpop.f32.mrf.mxu0
    %v1040 = vadd.f32 %v1014, %v1039
    %1041 = vdwg.mxu0
    %1042 = vmatpush.xpose.msra.mxu0 0.0
    %1043 = vmatpush.xpose.msra.mxu0 0.0
    %1044 = vmatpush.xpose.msra.mxu0 0.0
    %1045 = vmatpush.xpose.msra.mxu0 0.0
    %1046 = vmatpush.xpose.msra.mxu0 0.0
    %1047 = vmatpush.xpose.msra.mxu0 0.0
    %1048 = vmatpush.xpose.msra.mxu0 0.0
    %1049 = vmatpush.xpose.msra.mxu0 0.0
    %1050 = vmatpush.xpose.msra.mxu0 0.0
    %1051 = vmatpush.xpose.msra.mxu0 0.0
    %1052 = vmatpush.xpose.msra.mxu0 0.0
    %1053 = vmatpush.xpose.msra.mxu0 0.0
    %1054 = vmatpush.xpose.msra.mxu0 0.0
    %1055 = vmatpush.xpose.msra.mxu0 0.0
    %1056 = vmatpush.xpose.msra.mxu0 0.0
    %v1057 = vand.u32 %v988, 4294901760
    %v1058 = vsub.f32 %v988, %v1057
    %1059 = vmatpush.xpose.msra.mxu0 %v1058
    %v1060 = vand.u32 %v986, 4294901760
    %v1061 = vsub.f32 %v986, %v1060
    %1062 = vmatmul.f32.gmra.mxu0 %v1061
    %v1063 = vpop.f32.mrf.mxu0
    %v1064 = vadd.f32 %v1040, %v1063
    %1065 = vdwg.mxu0
    %1066 = vmatpush.xpose.msra.mxu0 0.0
    %1067 = vmatpush.xpose.msra.mxu0 0.0
    %1068 = vmatpush.xpose.msra.mxu0 0.0
    %1069 = vmatpush.xpose.msra.mxu0 0.0
    %1070 = vmatpush.xpose.msra.mxu0 0.0
    %1071 = vmatpush.xpose.msra.mxu0 0.0
    %1072 = vmatpush.xpose.msra.mxu0 0.0
    %1073 = vmatpush.xpose.msra.mxu0 0.0
    %1074 = vmatpush.xpose.msra.mxu0 0.0
    %1075 = vmatpush.xpose.msra.mxu0 0.0
    %1076 = vmatpush.xpose.msra.mxu0 0.0
    %1077 = vmatpush.xpose.msra.mxu0 0.0
    %1078 = vmatpush.xpose.msra.mxu0 0.0
    %1079 = vmatpush.xpose.msra.mxu0 0.0
    %1080 = vmatpush.xpose.msra.mxu0 0.0
    %v1081 = vand.u32 %v988, 4294901760
    %1082 = vmatpush.xpose.msra.mxu0 %v1081
    %v1083 = vand.u32 %v986, 4294901760
    %v1084 = vsub.f32 %v986, %v1083
    %v1085 = vand.u32 %v1084, 4294901760
    %1086 = vmatmul.f32.gmra.mxu0 %v1085
    %v1087 = vpop.f32.mrf.mxu0
    %v1088 = vadd.f32 %v1064, %v1087
    %1089 = vdwg.mxu0
    %1090 = vmatpush.xpose.msra.mxu0 0.0
    %1091 = vmatpush.xpose.msra.mxu0 0.0
    %1092 = vmatpush.xpose.msra.mxu0 0.0
    %1093 = vmatpush.xpose.msra.mxu0 0.0
    %1094 = vmatpush.xpose.msra.mxu0 0.0
    %1095 = vmatpush.xpose.msra.mxu0 0.0
    %1096 = vmatpush.xpose.msra.mxu0 0.0
    %1097 = vmatpush.xpose.msra.mxu0 0.0
    %1098 = vmatpush.xpose.msra.mxu0 0.0
    %1099 = vmatpush.xpose.msra.mxu0 0.0
    %1100 = vmatpush.xpose.msra.mxu0 0.0
    %1101 = vmatpush.xpose.msra.mxu0 0.0
    %1102 = vmatpush.xpose.msra.mxu0 0.0
    %1103 = vmatpush.xpose.msra.mxu0 0.0
    %1104 = vmatpush.xpose.msra.mxu0 0.0
    %v1105 = vand.u32 %v988, 4294901760
    %v1106 = vsub.f32 %v988, %v1105
    %v1107 = vand.u32 %v1106, 4294901760
    %1108 = vmatpush.xpose.msra.mxu0 %v1107
    %v1109 = vand.u32 %v986, 4294901760
    %1110 = vmatmul.f32.gmra.mxu0 %v1109
    %v1111 = vpop.f32.mrf.mxu0
    %v1112 = vadd.f32 %v1088, %v1111
    %1113 = vdwg.mxu0
    %1114 = vmatpush.xpose.msra.mxu0 0.0
    %1115 = vmatpush.xpose.msra.mxu0 0.0
    %1116 = vmatpush.xpose.msra.mxu0 0.0
    %1117 = vmatpush.xpose.msra.mxu0 0.0
    %1118 = vmatpush.xpose.msra.mxu0 0.0
    %1119 = vmatpush.xpose.msra.mxu0 0.0
    %1120 = vmatpush.xpose.msra.mxu0 0.0
    %1121 = vmatpush.xpose.msra.mxu0 0.0
    %1122 = vmatpush.xpose.msra.mxu0 0.0
    %1123 = vmatpush.xpose.msra.mxu0 0.0
    %1124 = vmatpush.xpose.msra.mxu0 0.0
    %1125 = vmatpush.xpose.msra.mxu0 0.0
    %1126 = vmatpush.xpose.msra.mxu0 0.0
    %1127 = vmatpush.xpose.msra.mxu0 0.0
    %1128 = vmatpush.xpose.msra.mxu0 0.0
    %v1129 = vand.u32 %v988, 4294901760
    %1130 = vmatpush.xpose.msra.mxu0 %v1129
    %v1131 = vand.u32 %v986, 4294901760
    %1132 = vmatmul.f32.gmra.mxu0 %v1131
    %v1133 = vpop.f32.mrf.mxu0
    %v1134 = vadd.f32 %v1112, %v1133
    %1135 = vdwg.mxu0
    %1136 = vrot.lane.b32.xlu0 %v365, 104
    %v1137 = vpop.permute.xlu0 %1136
    %1138 = vrot.lane.b32.xlu0 %v365, 96
    %v1139 = vpop.permute.xlu0 %1138
    %v1140 = vsel %vm370, %v1137, 0
    %v1142 = vsel %vm370, %v1139, 0
    %1144 = vmatpush.xpose.msra.mxu0 0.0
    %1145 = vmatpush.xpose.msra.mxu0 0.0
    %1146 = vmatpush.xpose.msra.mxu0 0.0
    %1147 = vmatpush.xpose.msra.mxu0 0.0
    %1148 = vmatpush.xpose.msra.mxu0 0.0
    %1149 = vmatpush.xpose.msra.mxu0 0.0
    %1150 = vmatpush.xpose.msra.mxu0 0.0
    %1151 = vmatpush.xpose.msra.mxu0 0.0
    %1152 = vmatpush.xpose.msra.mxu0 0.0
    %1153 = vmatpush.xpose.msra.mxu0 0.0
    %1154 = vmatpush.xpose.msra.mxu0 0.0
    %1155 = vmatpush.xpose.msra.mxu0 0.0
    %1156 = vmatpush.xpose.msra.mxu0 0.0
    %1157 = vmatpush.xpose.msra.mxu0 0.0
    %1158 = vmatpush.xpose.msra.mxu0 0.0
    %v1159 = vand.u32 %v1142, 4294901760
    %1160 = vmatpush.xpose.msra.mxu0 %v1159
    %v1161 = vand.u32 %v1140, 4294901760
    %v1162 = vsub.f32 %v1140, %v1161
    %v1163 = vand.u32 %v1162, 4294901760
    %v1164 = vsub.f32 %v1162, %v1163
    %v1165 = vand.u32 %v1164, 4294901760
    %1166 = vmatmul.f32.gmra.mxu0 %v1165
    %v1167 = vpop.f32.mrf.mxu0
    %v1168 = vadd.f32 0.0, %v1167
    %1169 = vdwg.mxu0
    %1170 = vmatpush.xpose.msra.mxu0 0.0
    %1171 = vmatpush.xpose.msra.mxu0 0.0
    %1172 = vmatpush.xpose.msra.mxu0 0.0
    %1173 = vmatpush.xpose.msra.mxu0 0.0
    %1174 = vmatpush.xpose.msra.mxu0 0.0
    %1175 = vmatpush.xpose.msra.mxu0 0.0
    %1176 = vmatpush.xpose.msra.mxu0 0.0
    %1177 = vmatpush.xpose.msra.mxu0 0.0
    %1178 = vmatpush.xpose.msra.mxu0 0.0
    %1179 = vmatpush.xpose.msra.mxu0 0.0
    %1180 = vmatpush.xpose.msra.mxu0 0.0
    %1181 = vmatpush.xpose.msra.mxu0 0.0
    %1182 = vmatpush.xpose.msra.mxu0 0.0
    %1183 = vmatpush.xpose.msra.mxu0 0.0
    %1184 = vmatpush.xpose.msra.mxu0 0.0
    %v1185 = vand.u32 %v1142, 4294901760
    %v1186 = vsub.f32 %v1142, %v1185
    %v1187 = vand.u32 %v1186, 4294901760
    %v1188 = vsub.f32 %v1186, %v1187
    %v1189 = vand.u32 %v1188, 4294901760
    %1190 = vmatpush.xpose.msra.mxu0 %v1189
    %v1191 = vand.u32 %v1140, 4294901760
    %1192 = vmatmul.f32.gmra.mxu0 %v1191
    %v1193 = vpop.f32.mrf.mxu0
    %v1194 = vadd.f32 %v1168, %v1193
    %1195 = vdwg.mxu0
    %1196 = vmatpush.xpose.msra.mxu0 0.0
    %1197 = vmatpush.xpose.msra.mxu0 0.0
    %1198 = vmatpush.xpose.msra.mxu0 0.0
    %1199 = vmatpush.xpose.msra.mxu0 0.0
    %1200 = vmatpush.xpose.msra.mxu0 0.0
    %1201 = vmatpush.xpose.msra.mxu0 0.0
    %1202 = vmatpush.xpose.msra.mxu0 0.0
    %1203 = vmatpush.xpose.msra.mxu0 0.0
    %1204 = vmatpush.xpose.msra.mxu0 0.0
    %1205 = vmatpush.xpose.msra.mxu0 0.0
    %1206 = vmatpush.xpose.msra.mxu0 0.0
    %1207 = vmatpush.xpose.msra.mxu0 0.0
    %1208 = vmatpush.xpose.msra.mxu0 0.0
    %1209 = vmatpush.xpose.msra.mxu0 0.0
    %1210 = vmatpush.xpose.msra.mxu0 0.0
    %v1211 = vand.u32 %v1142, 4294901760
    %v1212 = vsub.f32 %v1142, %v1211
    %1213 = vmatpush.xpose.msra.mxu0 %v1212
    %v1214 = vand.u32 %v1140, 4294901760
    %v1215 = vsub.f32 %v1140, %v1214
    %1216 = vmatmul.f32.gmra.mxu0 %v1215
    %v1217 = vpop.f32.mrf.mxu0
    %v1218 = vadd.f32 %v1194, %v1217
    %1219 = vdwg.mxu0
    %1220 = vmatpush.xpose.msra.mxu0 0.0
    %1221 = vmatpush.xpose.msra.mxu0 0.0
    %1222 = vmatpush.xpose.msra.mxu0 0.0
    %1223 = vmatpush.xpose.msra.mxu0 0.0
    %1224 = vmatpush.xpose.msra.mxu0 0.0
    %1225 = vmatpush.xpose.msra.mxu0 0.0
    %1226 = vmatpush.xpose.msra.mxu0 0.0
    %1227 = vmatpush.xpose.msra.mxu0 0.0
    %1228 = vmatpush.xpose.msra.mxu0 0.0
    %1229 = vmatpush.xpose.msra.mxu0 0.0
    %1230 = vmatpush.xpose.msra.mxu0 0.0
    %1231 = vmatpush.xpose.msra.mxu0 0.0
    %1232 = vmatpush.xpose.msra.mxu0 0.0
    %1233 = vmatpush.xpose.msra.mxu0 0.0
    %1234 = vmatpush.xpose.msra.mxu0 0.0
    %v1235 = vand.u32 %v1142, 4294901760
    %1236 = vmatpush.xpose.msra.mxu0 %v1235
    %v1237 = vand.u32 %v1140, 4294901760
    %v1238 = vsub.f32 %v1140, %v1237
    %v1239 = vand.u32 %v1238, 4294901760
    %1240 = vmatmul.f32.gmra.mxu0 %v1239
    %v1241 = vpop.f32.mrf.mxu0
    %v1242 = vadd.f32 %v1218, %v1241
    %1243 = vdwg.mxu0
    %1244 = vmatpush.xpose.msra.mxu0 0.0
    %1245 = vmatpush.xpose.msra.mxu0 0.0
    %1246 = vmatpush.xpose.msra.mxu0 0.0
    %1247 = vmatpush.xpose.msra.mxu0 0.0
    %1248 = vmatpush.xpose.msra.mxu0 0.0
    %1249 = vmatpush.xpose.msra.mxu0 0.0
    %1250 = vmatpush.xpose.msra.mxu0 0.0
    %1251 = vmatpush.xpose.msra.mxu0 0.0
    %1252 = vmatpush.xpose.msra.mxu0 0.0
    %1253 = vmatpush.xpose.msra.mxu0 0.0
    %1254 = vmatpush.xpose.msra.mxu0 0.0
    %1255 = vmatpush.xpose.msra.mxu0 0.0
    %1256 = vmatpush.xpose.msra.mxu0 0.0
    %1257 = vmatpush.xpose.msra.mxu0 0.0
    %1258 = vmatpush.xpose.msra.mxu0 0.0
    %v1259 = vand.u32 %v1142, 4294901760
    %v1260 = vsub.f32 %v1142, %v1259
    %v1261 = vand.u32 %v1260, 4294901760
    %1262 = vmatpush.xpose.msra.mxu0 %v1261
    %v1263 = vand.u32 %v1140, 4294901760
    %1264 = vmatmul.f32.gmra.mxu0 %v1263
    %v1265 = vpop.f32.mrf.mxu0
    %v1266 = vadd.f32 %v1242, %v1265
    %1267 = vdwg.mxu0
    %1268 = vmatpush.xpose.msra.mxu0 0.0
    %1269 = vmatpush.xpose.msra.mxu0 0.0
    %1270 = vmatpush.xpose.msra.mxu0 0.0
    %1271 = vmatpush.xpose.msra.mxu0 0.0
    %1272 = vmatpush.xpose.msra.mxu0 0.0
    %1273 = vmatpush.xpose.msra.mxu0 0.0
    %1274 = vmatpush.xpose.msra.mxu0 0.0
    %1275 = vmatpush.xpose.msra.mxu0 0.0
    %1276 = vmatpush.xpose.msra.mxu0 0.0
    %1277 = vmatpush.xpose.msra.mxu0 0.0
    %1278 = vmatpush.xpose.msra.mxu0 0.0
    %1279 = vmatpush.xpose.msra.mxu0 0.0
    %1280 = vmatpush.xpose.msra.mxu0 0.0
    %1281 = vmatpush.xpose.msra.mxu0 0.0
    %1282 = vmatpush.xpose.msra.mxu0 0.0
    %v1283 = vand.u32 %v1142, 4294901760
    %1284 = vmatpush.xpose.msra.mxu0 %v1283
    %v1285 = vand.u32 %v1140, 4294901760
    %1286 = vmatmul.f32.gmra.mxu0 %v1285
    %v1287 = vpop.f32.mrf.mxu0
    %v1288 = vadd.f32 %v1266, %v1287
    %1289 = vdwg.mxu0
    %1290 = vrot.lane.b32.xlu0 %v365, 80
    %v1291 = vpop.permute.xlu0 %1290
    %1292 = vrot.lane.b32.xlu0 %v365, 72
    %v1293 = vpop.permute.xlu0 %1292
    %v1294 = vsel %vm370, %v1291, 0
    %v1296 = vsel %vm370, %v1293, 0
    %1298 = vmatpush.xpose.msra.mxu0 0.0
    %1299 = vmatpush.xpose.msra.mxu0 0.0
    %1300 = vmatpush.xpose.msra.mxu0 0.0
    %1301 = vmatpush.xpose.msra.mxu0 0.0
    %1302 = vmatpush.xpose.msra.mxu0 0.0
    %1303 = vmatpush.xpose.msra.mxu0 0.0
    %1304 = vmatpush.xpose.msra.mxu0 0.0
    %1305 = vmatpush.xpose.msra.mxu0 0.0
    %1306 = vmatpush.xpose.msra.mxu0 0.0
    %1307 = vmatpush.xpose.msra.mxu0 0.0
    %1308 = vmatpush.xpose.msra.mxu0 0.0
    %1309 = vmatpush.xpose.msra.mxu0 0.0
    %1310 = vmatpush.xpose.msra.mxu0 0.0
    %1311 = vmatpush.xpose.msra.mxu0 0.0
    %1312 = vmatpush.xpose.msra.mxu0 0.0
    %v1313 = vand.u32 %v1296, 4294901760
    %1314 = vmatpush.xpose.msra.mxu0 %v1313
    %v1315 = vand.u32 %v1294, 4294901760
    %v1316 = vsub.f32 %v1294, %v1315
    %v1317 = vand.u32 %v1316, 4294901760
    %v1318 = vsub.f32 %v1316, %v1317
    %v1319 = vand.u32 %v1318, 4294901760
    %1320 = vmatmul.f32.gmra.mxu0 %v1319
    %v1321 = vpop.f32.mrf.mxu0
    %v1322 = vadd.f32 0.0, %v1321
    %1323 = vdwg.mxu0
    %1324 = vmatpush.xpose.msra.mxu0 0.0
    %1325 = vmatpush.xpose.msra.mxu0 0.0
    %1326 = vmatpush.xpose.msra.mxu0 0.0
    %1327 = vmatpush.xpose.msra.mxu0 0.0
    %1328 = vmatpush.xpose.msra.mxu0 0.0
    %1329 = vmatpush.xpose.msra.mxu0 0.0
    %1330 = vmatpush.xpose.msra.mxu0 0.0
    %1331 = vmatpush.xpose.msra.mxu0 0.0
    %1332 = vmatpush.xpose.msra.mxu0 0.0
    %1333 = vmatpush.xpose.msra.mxu0 0.0
    %1334 = vmatpush.xpose.msra.mxu0 0.0
    %1335 = vmatpush.xpose.msra.mxu0 0.0
    %1336 = vmatpush.xpose.msra.mxu0 0.0
    %1337 = vmatpush.xpose.msra.mxu0 0.0
    %1338 = vmatpush.xpose.msra.mxu0 0.0
    %v1339 = vand.u32 %v1296, 4294901760
    %v1340 = vsub.f32 %v1296, %v1339
    %v1341 = vand.u32 %v1340, 4294901760
    %v1342 = vsub.f32 %v1340, %v1341
    %v1343 = vand.u32 %v1342, 4294901760
    %1344 = vmatpush.xpose.msra.mxu0 %v1343
    %v1345 = vand.u32 %v1294, 4294901760
    %1346 = vmatmul.f32.gmra.mxu0 %v1345
    %v1347 = vpop.f32.mrf.mxu0
    %v1348 = vadd.f32 %v1322, %v1347
    %1349 = vdwg.mxu0
    %1350 = vmatpush.xpose.msra.mxu0 0.0
    %1351 = vmatpush.xpose.msra.mxu0 0.0
    %1352 = vmatpush.xpose.msra.mxu0 0.0
    %1353 = vmatpush.xpose.msra.mxu0 0.0
    %1354 = vmatpush.xpose.msra.mxu0 0.0
    %1355 = vmatpush.xpose.msra.mxu0 0.0
    %1356 = vmatpush.xpose.msra.mxu0 0.0
    %1357 = vmatpush.xpose.msra.mxu0 0.0
    %1358 = vmatpush.xpose.msra.mxu0 0.0
    %1359 = vmatpush.xpose.msra.mxu0 0.0
    %1360 = vmatpush.xpose.msra.mxu0 0.0
    %1361 = vmatpush.xpose.msra.mxu0 0.0
    %1362 = vmatpush.xpose.msra.mxu0 0.0
    %1363 = vmatpush.xpose.msra.mxu0 0.0
    %1364 = vmatpush.xpose.msra.mxu0 0.0
    %v1365 = vand.u32 %v1296, 4294901760
    %v1366 = vsub.f32 %v1296, %v1365
    %1367 = vmatpush.xpose.msra.mxu0 %v1366
    %v1368 = vand.u32 %v1294, 4294901760
    %v1369 = vsub.f32 %v1294, %v1368
    %1370 = vmatmul.f32.gmra.mxu0 %v1369
    %v1371 = vpop.f32.mrf.mxu0
    %v1372 = vadd.f32 %v1348, %v1371
    %1373 = vdwg.mxu0
    %1374 = vmatpush.xpose.msra.mxu0 0.0
    %1375 = vmatpush.xpose.msra.mxu0 0.0
    %1376 = vmatpush.xpose.msra.mxu0 0.0
    %1377 = vmatpush.xpose.msra.mxu0 0.0
    %1378 = vmatpush.xpose.msra.mxu0 0.0
    %1379 = vmatpush.xpose.msra.mxu0 0.0
    %1380 = vmatpush.xpose.msra.mxu0 0.0
    %1381 = vmatpush.xpose.msra.mxu0 0.0
    %1382 = vmatpush.xpose.msra.mxu0 0.0
    %1383 = vmatpush.xpose.msra.mxu0 0.0
    %1384 = vmatpush.xpose.msra.mxu0 0.0
    %1385 = vmatpush.xpose.msra.mxu0 0.0
    %1386 = vmatpush.xpose.msra.mxu0 0.0
    %1387 = vmatpush.xpose.msra.mxu0 0.0
    %1388 = vmatpush.xpose.msra.mxu0 0.0
    %v1389 = vand.u32 %v1296, 4294901760
    %1390 = vmatpush.xpose.msra.mxu0 %v1389
    %v1391 = vand.u32 %v1294, 4294901760
    %v1392 = vsub.f32 %v1294, %v1391
    %v1393 = vand.u32 %v1392, 4294901760
    %1394 = vmatmul.f32.gmra.mxu0 %v1393
    %v1395 = vpop.f32.mrf.mxu0
    %v1396 = vadd.f32 %v1372, %v1395
    %1397 = vdwg.mxu0
    %1398 = vmatpush.xpose.msra.mxu0 0.0
    %1399 = vmatpush.xpose.msra.mxu0 0.0
    %1400 = vmatpush.xpose.msra.mxu0 0.0
    %1401 = vmatpush.xpose.msra.mxu0 0.0
    %1402 = vmatpush.xpose.msra.mxu0 0.0
    %1403 = vmatpush.xpose.msra.mxu0 0.0
    %1404 = vmatpush.xpose.msra.mxu0 0.0
    %1405 = vmatpush.xpose.msra.mxu0 0.0
    %1406 = vmatpush.xpose.msra.mxu0 0.0
    %1407 = vmatpush.xpose.msra.mxu0 0.0
    %1408 = vmatpush.xpose.msra.mxu0 0.0
    %1409 = vmatpush.xpose.msra.mxu0 0.0
    %1410 = vmatpush.xpose.msra.mxu0 0.0
    %1411 = vmatpush.xpose.msra.mxu0 0.0
    %1412 = vmatpush.xpose.msra.mxu0 0.0
    %v1413 = vand.u32 %v1296, 4294901760
    %v1414 = vsub.f32 %v1296, %v1413
    %v1415 = vand.u32 %v1414, 4294901760
    %1416 = vmatpush.xpose.msra.mxu0 %v1415
    %v1417 = vand.u32 %v1294, 4294901760
    %1418 = vmatmul.f32.gmra.mxu0 %v1417
    %v1419 = vpop.f32.mrf.mxu0
    %v1420 = vadd.f32 %v1396, %v1419
    %1421 = vdwg.mxu0
    %1422 = vmatpush.xpose.msra.mxu0 0.0
    %1423 = vmatpush.xpose.msra.mxu0 0.0
    %1424 = vmatpush.xpose.msra.mxu0 0.0
    %1425 = vmatpush.xpose.msra.mxu0 0.0
    %1426 = vmatpush.xpose.msra.mxu0 0.0
    %1427 = vmatpush.xpose.msra.mxu0 0.0
    %1428 = vmatpush.xpose.msra.mxu0 0.0
    %1429 = vmatpush.xpose.msra.mxu0 0.0
    %1430 = vmatpush.xpose.msra.mxu0 0.0
    %1431 = vmatpush.xpose.msra.mxu0 0.0
    %1432 = vmatpush.xpose.msra.mxu0 0.0
    %1433 = vmatpush.xpose.msra.mxu0 0.0
    %1434 = vmatpush.xpose.msra.mxu0 0.0
    %1435 = vmatpush.xpose.msra.mxu0 0.0
    %1436 = vmatpush.xpose.msra.mxu0 0.0
    %v1437 = vand.u32 %v1296, 4294901760
    %1438 = vmatpush.xpose.msra.mxu0 %v1437
    %v1439 = vand.u32 %v1294, 4294901760
    %1440 = vmatmul.f32.gmra.mxu0 %v1439
    %v1441 = vpop.f32.mrf.mxu0
    %v1442 = vadd.f32 %v1420, %v1441
    %1443 = vdwg.mxu0
    %1444 = vrot.lane.b32.xlu0 %v365, 56
    %v1445 = vpop.permute.xlu0 %1444
    %1446 = vrot.lane.b32.xlu0 %v365, 48
    %v1447 = vpop.permute.xlu0 %1446
    %v1448 = vsel %vm370, %v1445, 0
    %v1450 = vsel %vm370, %v1447, 0
    %1452 = vmatpush.xpose.msra.mxu0 0.0
    %1453 = vmatpush.xpose.msra.mxu0 0.0
    %1454 = vmatpush.xpose.msra.mxu0 0.0
    %1455 = vmatpush.xpose.msra.mxu0 0.0
    %1456 = vmatpush.xpose.msra.mxu0 0.0
    %1457 = vmatpush.xpose.msra.mxu0 0.0
    %1458 = vmatpush.xpose.msra.mxu0 0.0
    %1459 = vmatpush.xpose.msra.mxu0 0.0
    %1460 = vmatpush.xpose.msra.mxu0 0.0
    %1461 = vmatpush.xpose.msra.mxu0 0.0
    %1462 = vmatpush.xpose.msra.mxu0 0.0
    %1463 = vmatpush.xpose.msra.mxu0 0.0
    %1464 = vmatpush.xpose.msra.mxu0 0.0
    %1465 = vmatpush.xpose.msra.mxu0 0.0
    %1466 = vmatpush.xpose.msra.mxu0 0.0
    %v1467 = vand.u32 %v1450, 4294901760
    %1468 = vmatpush.xpose.msra.mxu0 %v1467
    %v1469 = vand.u32 %v1448, 4294901760
    %v1470 = vsub.f32 %v1448, %v1469
    %v1471 = vand.u32 %v1470, 4294901760
    %v1472 = vsub.f32 %v1470, %v1471
    %v1473 = vand.u32 %v1472, 4294901760
    %1474 = vmatmul.f32.gmra.mxu0 %v1473
    %v1475 = vpop.f32.mrf.mxu0
    %v1476 = vadd.f32 0.0, %v1475
    %1477 = vdwg.mxu0
    %1478 = vmatpush.xpose.msra.mxu0 0.0
    %1479 = vmatpush.xpose.msra.mxu0 0.0
    %1480 = vmatpush.xpose.msra.mxu0 0.0
    %1481 = vmatpush.xpose.msra.mxu0 0.0
    %1482 = vmatpush.xpose.msra.mxu0 0.0
    %1483 = vmatpush.xpose.msra.mxu0 0.0
    %1484 = vmatpush.xpose.msra.mxu0 0.0
    %1485 = vmatpush.xpose.msra.mxu0 0.0
    %1486 = vmatpush.xpose.msra.mxu0 0.0
    %1487 = vmatpush.xpose.msra.mxu0 0.0
    %1488 = vmatpush.xpose.msra.mxu0 0.0
    %1489 = vmatpush.xpose.msra.mxu0 0.0
    %1490 = vmatpush.xpose.msra.mxu0 0.0
    %1491 = vmatpush.xpose.msra.mxu0 0.0
    %1492 = vmatpush.xpose.msra.mxu0 0.0
    %v1493 = vand.u32 %v1450, 4294901760
    %v1494 = vsub.f32 %v1450, %v1493
    %v1495 = vand.u32 %v1494, 4294901760
    %v1496 = vsub.f32 %v1494, %v1495
    %v1497 = vand.u32 %v1496, 4294901760
    %1498 = vmatpush.xpose.msra.mxu0 %v1497
    %v1499 = vand.u32 %v1448, 4294901760
    %1500 = vmatmul.f32.gmra.mxu0 %v1499
    %v1501 = vpop.f32.mrf.mxu0
    %v1502 = vadd.f32 %v1476, %v1501
    %1503 = vdwg.mxu0
    %1504 = vmatpush.xpose.msra.mxu0 0.0
    %1505 = vmatpush.xpose.msra.mxu0 0.0
    %1506 = vmatpush.xpose.msra.mxu0 0.0
    %1507 = vmatpush.xpose.msra.mxu0 0.0
    %1508 = vmatpush.xpose.msra.mxu0 0.0
    %1509 = vmatpush.xpose.msra.mxu0 0.0
    %1510 = vmatpush.xpose.msra.mxu0 0.0
    %1511 = vmatpush.xpose.msra.mxu0 0.0
    %1512 = vmatpush.xpose.msra.mxu0 0.0
    %1513 = vmatpush.xpose.msra.mxu0 0.0
    %1514 = vmatpush.xpose.msra.mxu0 0.0
    %1515 = vmatpush.xpose.msra.mxu0 0.0
    %1516 = vmatpush.xpose.msra.mxu0 0.0
    %1517 = vmatpush.xpose.msra.mxu0 0.0
    %1518 = vmatpush.xpose.msra.mxu0 0.0
    %v1519 = vand.u32 %v1450, 4294901760
    %v1520 = vsub.f32 %v1450, %v1519
    %1521 = vmatpush.xpose.msra.mxu0 %v1520
    %v1522 = vand.u32 %v1448, 4294901760
    %v1523 = vsub.f32 %v1448, %v1522
    %1524 = vmatmul.f32.gmra.mxu0 %v1523
    %v1525 = vpop.f32.mrf.mxu0
    %v1526 = vadd.f32 %v1502, %v1525
    %1527 = vdwg.mxu0
    %1528 = vmatpush.xpose.msra.mxu0 0.0
    %1529 = vmatpush.xpose.msra.mxu0 0.0
    %1530 = vmatpush.xpose.msra.mxu0 0.0
    %1531 = vmatpush.xpose.msra.mxu0 0.0
    %1532 = vmatpush.xpose.msra.mxu0 0.0
    %1533 = vmatpush.xpose.msra.mxu0 0.0
    %1534 = vmatpush.xpose.msra.mxu0 0.0
    %1535 = vmatpush.xpose.msra.mxu0 0.0
    %1536 = vmatpush.xpose.msra.mxu0 0.0
    %1537 = vmatpush.xpose.msra.mxu0 0.0
    %1538 = vmatpush.xpose.msra.mxu0 0.0
    %1539 = vmatpush.xpose.msra.mxu0 0.0
    %1540 = vmatpush.xpose.msra.mxu0 0.0
    %1541 = vmatpush.xpose.msra.mxu0 0.0
    %1542 = vmatpush.xpose.msra.mxu0 0.0
    %v1543 = vand.u32 %v1450, 4294901760
    %1544 = vmatpush.xpose.msra.mxu0 %v1543
    %v1545 = vand.u32 %v1448, 4294901760
    %v1546 = vsub.f32 %v1448, %v1545
    %v1547 = vand.u32 %v1546, 4294901760
    %1548 = vmatmul.f32.gmra.mxu0 %v1547
    %v1549 = vpop.f32.mrf.mxu0
    %v1550 = vadd.f32 %v1526, %v1549
    %1551 = vdwg.mxu0
    %1552 = vmatpush.xpose.msra.mxu0 0.0
    %1553 = vmatpush.xpose.msra.mxu0 0.0
    %1554 = vmatpush.xpose.msra.mxu0 0.0
    %1555 = vmatpush.xpose.msra.mxu0 0.0
    %1556 = vmatpush.xpose.msra.mxu0 0.0
    %1557 = vmatpush.xpose.msra.mxu0 0.0
    %1558 = vmatpush.xpose.msra.mxu0 0.0
    %1559 = vmatpush.xpose.msra.mxu0 0.0
    %1560 = vmatpush.xpose.msra.mxu0 0.0
    %1561 = vmatpush.xpose.msra.mxu0 0.0
    %1562 = vmatpush.xpose.msra.mxu0 0.0
    %1563 = vmatpush.xpose.msra.mxu0 0.0
    %1564 = vmatpush.xpose.msra.mxu0 0.0
    %1565 = vmatpush.xpose.msra.mxu0 0.0
    %1566 = vmatpush.xpose.msra.mxu0 0.0
    %v1567 = vand.u32 %v1450, 4294901760
    %v1568 = vsub.f32 %v1450, %v1567
    %v1569 = vand.u32 %v1568, 4294901760
    %1570 = vmatpush.xpose.msra.mxu0 %v1569
    %v1571 = vand.u32 %v1448, 4294901760
    %1572 = vmatmul.f32.gmra.mxu0 %v1571
    %v1573 = vpop.f32.mrf.mxu0
    %v1574 = vadd.f32 %v1550, %v1573
    %1575 = vdwg.mxu0
    %1576 = vmatpush.xpose.msra.mxu0 0.0
    %1577 = vmatpush.xpose.msra.mxu0 0.0
    %1578 = vmatpush.xpose.msra.mxu0 0.0
    %1579 = vmatpush.xpose.msra.mxu0 0.0
    %1580 = vmatpush.xpose.msra.mxu0 0.0
    %1581 = vmatpush.xpose.msra.mxu0 0.0
    %1582 = vmatpush.xpose.msra.mxu0 0.0
    %1583 = vmatpush.xpose.msra.mxu0 0.0
    %1584 = vmatpush.xpose.msra.mxu0 0.0
    %1585 = vmatpush.xpose.msra.mxu0 0.0
    %1586 = vmatpush.xpose.msra.mxu0 0.0
    %1587 = vmatpush.xpose.msra.mxu0 0.0
    %1588 = vmatpush.xpose.msra.mxu0 0.0
    %1589 = vmatpush.xpose.msra.mxu0 0.0
    %1590 = vmatpush.xpose.msra.mxu0 0.0
    %v1591 = vand.u32 %v1450, 4294901760
    %1592 = vmatpush.xpose.msra.mxu0 %v1591
    %v1593 = vand.u32 %v1448, 4294901760
    %1594 = vmatmul.f32.gmra.mxu0 %v1593
    %v1595 = vpop.f32.mrf.mxu0
    %v1596 = vadd.f32 %v1574, %v1595
    %1597 = vdwg.mxu0
    %v1598 = vld [vmem:[#allocation5] sm:$0xff]
    %s1599 = scalar_lea.vmem [#allocation5], 8
    %v1600 = vld [vmem:[%s1599] sm:$0xff]
    %vm1601 = vcmp.eq.f32.partialorder %v1598, 0.0
    %vm1602 = vcmp.eq.f32.partialorder %v1600, 0.0
    %v1603 = vmul.f32 %v519, 0.35355338
    %v1604 = vmul.f32 %v673, 0.35355338
    %v1605 = vmul.f32 %v827, 0.35355338
    %v1606 = vmul.f32 %v981, 0.35355338
    %v1607 = vmul.f32 %v1134, 0.35355338
    %v1608 = vmul.f32 %v1288, 0.35355338
    %v1609 = vmul.f32 %v1442, 0.35355338
    %v1610 = vmul.f32 %v1596, 0.35355338
    %v1611 = vsel %vm1601, -1e+09, %v1603
    %v1612 = vsel %vm1601, -1e+09, %v1604
    %v1613 = vsel %vm1601, -1e+09, %v1605
    %v1614 = vsel %vm1601, -1e+09, %v1606
    %v1615 = vsel %vm1602, -1e+09, %v1607
    %v1616 = vsel %vm1602, -1e+09, %v1608
    %v1617 = vsel %vm1602, -1e+09, %v1609
    %v1618 = vsel %vm1602, -1e+09, %v1610
    %v1619 = vsel %vm370, %v1611, -inf
    %1620 = vmax.xlane.f32.xlu0 %v1619
    %v1621 = vpop.xlane.xlu0 %1620
    %v1622 = vsel %vm370, %v1612, -inf
    %1623 = vmax.xlane.f32.xlu0 %v1622
    %v1624 = vpop.xlane.xlu0 %1623
    %v1625 = vsel %vm370, %v1613, -inf
    %1626 = vmax.xlane.f32.xlu0 %v1625
    %v1627 = vpop.xlane.xlu0 %1626
    %v1628 = vsel %vm370, %v1614, -inf
    %1629 = vmax.xlane.f32.xlu0 %v1628
    %v1630 = vpop.xlane.xlu0 %1629
    %v1631 = vsel %vm370, %v1615, -inf
    %1632 = vmax.xlane.f32.xlu0 %v1631
    %v1633 = vpop.xlane.xlu0 %1632
    %v1634 = vsel %vm370, %v1616, -inf
    %1635 = vmax.xlane.f32.xlu0 %v1634
    %v1636 = vpop.xlane.xlu0 %1635
    %v1637 = vsel %vm370, %v1617, -inf
    %1638 = vmax.xlane.f32.xlu0 %v1637
    %v1639 = vpop.xlane.xlu0 %1638
    %v1640 = vsel %vm370, %v1618, -inf
    %1641 = vmax.xlane.f32.xlu0 %v1640
    %v1642 = vpop.xlane.xlu0 %1641
    %v1643 = vsub.f32 %v1611, %v1621
    %v1644 = vsub.f32 %v1612, %v1624
    %v1645 = vsub.f32 %v1613, %v1627
    %v1646 = vsub.f32 %v1614, %v1630
    %v1647 = vsub.f32 %v1615, %v1633
    %v1648 = vsub.f32 %v1616, %v1636
    %v1649 = vsub.f32 %v1617, %v1639
    %v1650 = vsub.f32 %v1618, %v1642
    %v1651 = vmul.f32 %v1643, 1.442695
    %v1652 = vpow.pop %v1651
    %v1653 = vmul.f32 %v1644, 1.442695
    %v1654 = vpow.pop %v1653
    %v1655 = vmul.f32 %v1645, 1.442695
    %v1656 = vpow.pop %v1655
    %v1657 = vmul.f32 %v1646, 1.442695
    %v1658 = vpow.pop %v1657
    %v1659 = vmul.f32 %v1647, 1.442695
    %v1660 = vpow.pop %v1659
    %v1661 = vmul.f32 %v1648, 1.442695
    %v1662 = vpow.pop %v1661
    %v1663 = vmul.f32 %v1649, 1.442695
    %v1664 = vpow.pop %v1663
    %v1665 = vmul.f32 %v1650, 1.442695
    %v1666 = vpow.pop %v1665
    %v1667 = vsel %vm370, %v1652, 0.0
    %1668 = vadd.xlane.f32.xlu0 %v1667
    %v1669 = vpop.xlane.xlu0 %1668
    %v1670 = vsel %vm370, %v1654, 0.0
    %1671 = vadd.xlane.f32.xlu0 %v1670
    %v1672 = vpop.xlane.xlu0 %1671
    %v1673 = vsel %vm370, %v1656, 0.0
    %1674 = vadd.xlane.f32.xlu0 %v1673
    %v1675 = vpop.xlane.xlu0 %1674
    %v1676 = vsel %vm370, %v1658, 0.0
    %1677 = vadd.xlane.f32.xlu0 %v1676
    %v1678 = vpop.xlane.xlu0 %1677
    %v1679 = vsel %vm370, %v1660, 0.0
    %1680 = vadd.xlane.f32.xlu0 %v1679
    %v1681 = vpop.xlane.xlu0 %1680
    %v1682 = vsel %vm370, %v1662, 0.0
    %1683 = vadd.xlane.f32.xlu0 %v1682
    %v1684 = vpop.xlane.xlu0 %1683
    %v1685 = vsel %vm370, %v1664, 0.0
    %1686 = vadd.xlane.f32.xlu0 %v1685
    %v1687 = vpop.xlane.xlu0 %1686
    %v1688 = vsel %vm370, %v1666, 0.0
    %1689 = vadd.xlane.f32.xlu0 %v1688
    %v1690 = vpop.xlane.xlu0 %1689
    %v1691 = vrcp.pop %v1669
    %v1692 = vmul.f32 %v1669, %v1691
    %v1693 = vsub.f32 1.0, %v1692
    %v1694 = vmul.f32 %v1691, %v1693
    %v1695 = vadd.f32 %v1691, %v1694
    %vm1696 = vweird.f32 %v1669
    %vm1697 = vweird.f32 %v1691
    %vm1698 = vmor %vm1696, %vm1697
    %v1699 = vsel %vm1698, %v1691, %v1695
    %v1700 = vand.u32 2147483647, %v1669
    %vm1701 = vcmp.eq.f32.partialorder %v1700, 8.507059e+37
    %v1702 = vand.u32 %v1669, 2147483648
    %v1703 = vor.u32 1.1754944e-38, %v1702
    %v1704 = vsel %vm1701, %v1703, %v1699
    %v1705 = vrcp.pop %v1672
    %v1706 = vmul.f32 %v1672, %v1705
    %v1707 = vsub.f32 1.0, %v1706
    %v1708 = vmul.f32 %v1705, %v1707
    %v1709 = vadd.f32 %v1705, %v1708
    %vm1710 = vweird.f32 %v1672
    %vm1711 = vweird.f32 %v1705
    %vm1712 = vmor %vm1710, %vm1711
    %v1713 = vsel %vm1712, %v1705, %v1709
    %v1714 = vand.u32 2147483647, %v1672
    %vm1715 = vcmp.eq.f32.partialorder %v1714, 8.507059e+37
    %v1716 = vand.u32 %v1672, 2147483648
    %v1717 = vor.u32 1.1754944e-38, %v1716
    %v1718 = vsel %vm1715, %v1717, %v1713
    %v1719 = vrcp.pop %v1675
    %v1720 = vmul.f32 %v1675, %v1719
    %v1721 = vsub.f32 1.0, %v1720
    %v1722 = vmul.f32 %v1719, %v1721
    %v1723 = vadd.f32 %v1719, %v1722
    %vm1724 = vweird.f32 %v1675
    %vm1725 = vweird.f32 %v1719
    %vm1726 = vmor %vm1724, %vm1725
    %v1727 = vsel %vm1726, %v1719, %v1723
    %v1728 = vand.u32 2147483647, %v1675
    %vm1729 = vcmp.eq.f32.partialorder %v1728, 8.507059e+37
    %v1730 = vand.u32 %v1675, 2147483648
    %v1731 = vor.u32 1.1754944e-38, %v1730
    %v1732 = vsel %vm1729, %v1731, %v1727
    %v1733 = vrcp.pop %v1678
    %v1734 = vmul.f32 %v1678, %v1733
    %v1735 = vsub.f32 1.0, %v1734
    %v1736 = vmul.f32 %v1733, %v1735
    %v1737 = vadd.f32 %v1733, %v1736
    %vm1738 = vweird.f32 %v1678
    %vm1739 = vweird.f32 %v1733
    %vm1740 = vmor %vm1738, %vm1739
    %v1741 = vsel %vm1740, %v1733, %v1737
    %v1742 = vand.u32 2147483647, %v1678
    %vm1743 = vcmp.eq.f32.partialorder %v1742, 8.507059e+37
    %v1744 = vand.u32 %v1678, 2147483648
    %v1745 = vor.u32 1.1754944e-38, %v1744
    %v1746 = vsel %vm1743, %v1745, %v1741
    %v1747 = vrcp.pop %v1681
    %v1748 = vmul.f32 %v1681, %v1747
    %v1749 = vsub.f32 1.0, %v1748
    %v1750 = vmul.f32 %v1747, %v1749
    %v1751 = vadd.f32 %v1747, %v1750
    %vm1752 = vweird.f32 %v1681
    %vm1753 = vweird.f32 %v1747
    %vm1754 = vmor %vm1752, %vm1753
    %v1755 = vsel %vm1754, %v1747, %v1751
    %v1756 = vand.u32 2147483647, %v1681
    %vm1757 = vcmp.eq.f32.partialorder %v1756, 8.507059e+37
    %v1758 = vand.u32 %v1681, 2147483648
    %v1759 = vor.u32 1.1754944e-38, %v1758
    %v1760 = vsel %vm1757, %v1759, %v1755
    %v1761 = vrcp.pop %v1684
    %v1762 = vmul.f32 %v1684, %v1761
    %v1763 = vsub.f32 1.0, %v1762
    %v1764 = vmul.f32 %v1761, %v1763
    %v1765 = vadd.f32 %v1761, %v1764
    %vm1766 = vweird.f32 %v1684
    %vm1767 = vweird.f32 %v1761
    %vm1768 = vmor %vm1766, %vm1767
    %v1769 = vsel %vm1768, %v1761, %v1765
    %v1770 = vand.u32 2147483647, %v1684
    %vm1771 = vcmp.eq.f32.partialorder %v1770, 8.507059e+37
    %v1772 = vand.u32 %v1684, 2147483648
    %v1773 = vor.u32 1.1754944e-38, %v1772
    %v1774 = vsel %vm1771, %v1773, %v1769
    %v1775 = vrcp.pop %v1687
    %v1776 = vmul.f32 %v1687, %v1775
    %v1777 = vsub.f32 1.0, %v1776
    %v1778 = vmul.f32 %v1775, %v1777
    %v1779 = vadd.f32 %v1775, %v1778
    %vm1780 = vweird.f32 %v1687
    %vm1781 = vweird.f32 %v1775
    %vm1782 = vmor %vm1780, %vm1781
    %v1783 = vsel %vm1782, %v1775, %v1779
    %v1784 = vand.u32 2147483647, %v1687
    %vm1785 = vcmp.eq.f32.partialorder %v1784, 8.507059e+37
    %v1786 = vand.u32 %v1687, 2147483648
    %v1787 = vor.u32 1.1754944e-38, %v1786
    %v1788 = vsel %vm1785, %v1787, %v1783
    %v1789 = vrcp.pop %v1690
    %v1790 = vmul.f32 %v1690, %v1789
    %v1791 = vsub.f32 1.0, %v1790
    %v1792 = vmul.f32 %v1789, %v1791
    %v1793 = vadd.f32 %v1789, %v1792
    %vm1794 = vweird.f32 %v1690
    %vm1795 = vweird.f32 %v1789
    %vm1796 = vmor %vm1794, %vm1795
    %v1797 = vsel %vm1796, %v1789, %v1793
    %v1798 = vand.u32 2147483647, %v1690
    %vm1799 = vcmp.eq.f32.partialorder %v1798, 8.507059e+37
    %v1800 = vand.u32 %v1690, 2147483648
    %v1801 = vor.u32 1.1754944e-38, %v1800
    %v1802 = vsel %vm1799, %v1801, %v1797
    %v1803 = vmul.f32 %v1652, %v1704
    %v1804 = vmul.f32 %v1654, %v1718
    %v1805 = vmul.f32 %v1656, %v1732
    %v1806 = vmul.f32 %v1658, %v1746
    %v1807 = vmul.f32 %v1660, %v1760
    %v1808 = vmul.f32 %v1662, %v1774
    %v1809 = vmul.f32 %v1664, %v1788
    %v1810 = vmul.f32 %v1666, %v1802
    %1811 = vrot.lane.b32.xlu0 %v361, 112
    %v1812 = vpop.permute.xlu0 %1811
    %v1815 = vsel %vm370, %v1803, 0
    %1817 = vmatpush.msra.mxu0 0.0
    %1818 = vmatpush.msra.mxu0 0.0
    %1819 = vmatpush.msra.mxu0 0.0
    %1820 = vmatpush.msra.mxu0 0.0
    %1821 = vmatpush.msra.mxu0 0.0
    %1822 = vmatpush.msra.mxu0 0.0
    %1823 = vmatpush.msra.mxu0 0.0
    %1824 = vmatpush.msra.mxu0 0.0
    %1825 = vmatpush.msra.mxu0 0.0
    %1826 = vmatpush.msra.mxu0 0.0
    %1827 = vmatpush.msra.mxu0 0.0
    %1828 = vmatpush.msra.mxu0 0.0
    %1829 = vmatpush.msra.mxu0 0.0
    %1830 = vmatpush.msra.mxu0 0.0
    %1831 = vmatpush.msra.mxu0 0.0
    %v1832 = vand.u32 %v1812, 4294901760
    %1833 = vmatpush.msra.mxu0 %v1832
    %v1834 = vand.u32 %v1815, 4294901760
    %v1835 = vsub.f32 %v1815, %v1834
    %v1836 = vand.u32 %v1835, 4294901760
    %v1837 = vsub.f32 %v1835, %v1836
    %v1838 = vand.u32 %v1837, 4294901760
    %1839 = vmatmul.f32.gmra.mxu0 %v1838
    %v1840 = vpop.f32.mrf.mxu0
    %v1841 = vadd.f32 0.0, %v1840
    %1842 = vdwg.mxu0
    %1843 = vmatpush.msra.mxu0 0.0
    %1844 = vmatpush.msra.mxu0 0.0
    %1845 = vmatpush.msra.mxu0 0.0
    %1846 = vmatpush.msra.mxu0 0.0
    %1847 = vmatpush.msra.mxu0 0.0
    %1848 = vmatpush.msra.mxu0 0.0
    %1849 = vmatpush.msra.mxu0 0.0
    %1850 = vmatpush.msra.mxu0 0.0
    %1851 = vmatpush.msra.mxu0 0.0
    %1852 = vmatpush.msra.mxu0 0.0
    %1853 = vmatpush.msra.mxu0 0.0
    %1854 = vmatpush.msra.mxu0 0.0
    %1855 = vmatpush.msra.mxu0 0.0
    %1856 = vmatpush.msra.mxu0 0.0
    %1857 = vmatpush.msra.mxu0 0.0
    %v1858 = vand.u32 %v1812, 4294901760
    %v1859 = vsub.f32 %v1812, %v1858
    %v1860 = vand.u32 %v1859, 4294901760
    %v1861 = vsub.f32 %v1859, %v1860
    %v1862 = vand.u32 %v1861, 4294901760
    %1863 = vmatpush.msra.mxu0 %v1862
    %v1864 = vand.u32 %v1815, 4294901760
    %1865 = vmatmul.f32.gmra.mxu0 %v1864
    %v1866 = vpop.f32.mrf.mxu0
    %v1867 = vadd.f32 %v1841, %v1866
    %1868 = vdwg.mxu0
    %1869 = vmatpush.msra.mxu0 0.0
    %1870 = vmatpush.msra.mxu0 0.0
    %1871 = vmatpush.msra.mxu0 0.0
    %1872 = vmatpush.msra.mxu0 0.0
    %1873 = vmatpush.msra.mxu0 0.0
    %1874 = vmatpush.msra.mxu0 0.0
    %1875 = vmatpush.msra.mxu0 0.0
    %1876 = vmatpush.msra.mxu0 0.0
    %1877 = vmatpush.msra.mxu0 0.0
    %1878 = vmatpush.msra.mxu0 0.0
    %1879 = vmatpush.msra.mxu0 0.0
    %1880 = vmatpush.msra.mxu0 0.0
    %1881 = vmatpush.msra.mxu0 0.0
    %1882 = vmatpush.msra.mxu0 0.0
    %1883 = vmatpush.msra.mxu0 0.0
    %v1884 = vand.u32 %v1812, 4294901760
    %v1885 = vsub.f32 %v1812, %v1884
    %1886 = vmatpush.msra.mxu0 %v1885
    %v1887 = vand.u32 %v1815, 4294901760
    %v1888 = vsub.f32 %v1815, %v1887
    %1889 = vmatmul.f32.gmra.mxu0 %v1888
    %v1890 = vpop.f32.mrf.mxu0
    %v1891 = vadd.f32 %v1867, %v1890
    %1892 = vdwg.mxu0
    %1893 = vmatpush.msra.mxu0 0.0
    %1894 = vmatpush.msra.mxu0 0.0
    %1895 = vmatpush.msra.mxu0 0.0
    %1896 = vmatpush.msra.mxu0 0.0
    %1897 = vmatpush.msra.mxu0 0.0
    %1898 = vmatpush.msra.mxu0 0.0
    %1899 = vmatpush.msra.mxu0 0.0
    %1900 = vmatpush.msra.mxu0 0.0
    %1901 = vmatpush.msra.mxu0 0.0
    %1902 = vmatpush.msra.mxu0 0.0
    %1903 = vmatpush.msra.mxu0 0.0
    %1904 = vmatpush.msra.mxu0 0.0
    %1905 = vmatpush.msra.mxu0 0.0
    %1906 = vmatpush.msra.mxu0 0.0
    %1907 = vmatpush.msra.mxu0 0.0
    %v1908 = vand.u32 %v1812, 4294901760
    %1909 = vmatpush.msra.mxu0 %v1908
    %v1910 = vand.u32 %v1815, 4294901760
    %v1911 = vsub.f32 %v1815, %v1910
    %v1912 = vand.u32 %v1911, 4294901760
    %1913 = vmatmul.f32.gmra.mxu0 %v1912
    %v1914 = vpop.f32.mrf.mxu0
    %v1915 = vadd.f32 %v1891, %v1914
    %1916 = vdwg.mxu0
    %1917 = vmatpush.msra.mxu0 0.0
    %1918 = vmatpush.msra.mxu0 0.0
    %1919 = vmatpush.msra.mxu0 0.0
    %1920 = vmatpush.msra.mxu0 0.0
    %1921 = vmatpush.msra.mxu0 0.0
    %1922 = vmatpush.msra.mxu0 0.0
    %1923 = vmatpush.msra.mxu0 0.0
    %1924 = vmatpush.msra.mxu0 0.0
    %1925 = vmatpush.msra.mxu0 0.0
    %1926 = vmatpush.msra.mxu0 0.0
    %1927 = vmatpush.msra.mxu0 0.0
    %1928 = vmatpush.msra.mxu0 0.0
    %1929 = vmatpush.msra.mxu0 0.0
    %1930 = vmatpush.msra.mxu0 0.0
    %1931 = vmatpush.msra.mxu0 0.0
    %v1932 = vand.u32 %v1812, 4294901760
    %v1933 = vsub.f32 %v1812, %v1932
    %v1934 = vand.u32 %v1933, 4294901760
    %1935 = vmatpush.msra.mxu0 %v1934
    %v1936 = vand.u32 %v1815, 4294901760
    %1937 = vmatmul.f32.gmra.mxu0 %v1936
    %v1938 = vpop.f32.mrf.mxu0
    %v1939 = vadd.f32 %v1915, %v1938
    %1940 = vdwg.mxu0
    %1941 = vmatpush.msra.mxu0 0.0
    %1942 = vmatpush.msra.mxu0 0.0
    %1943 = vmatpush.msra.mxu0 0.0
    %1944 = vmatpush.msra.mxu0 0.0
    %1945 = vmatpush.msra.mxu0 0.0
    %1946 = vmatpush.msra.mxu0 0.0
    %1947 = vmatpush.msra.mxu0 0.0
    %1948 = vmatpush.msra.mxu0 0.0
    %1949 = vmatpush.msra.mxu0 0.0
    %1950 = vmatpush.msra.mxu0 0.0
    %1951 = vmatpush.msra.mxu0 0.0
    %1952 = vmatpush.msra.mxu0 0.0
    %1953 = vmatpush.msra.mxu0 0.0
    %1954 = vmatpush.msra.mxu0 0.0
    %1955 = vmatpush.msra.mxu0 0.0
    %v1956 = vand.u32 %v1812, 4294901760
    %1957 = vmatpush.msra.mxu0 %v1956
    %v1958 = vand.u32 %v1815, 4294901760
    %1959 = vmatmul.f32.gmra.mxu0 %v1958
    %v1960 = vpop.f32.mrf.mxu0
    %v1961 = vadd.f32 %v1939, %v1960
    %1962 = vdwg.mxu0
    %1963 = vrot.lane.b32.xlu0 %v361, 88
    %v1964 = vpop.permute.xlu0 %1963
    %v1967 = vsel %vm370, %v1804, 0
    %1969 = vmatpush.msra.mxu0 0.0
    %1970 = vmatpush.msra.mxu0 0.0
    %1971 = vmatpush.msra.mxu0 0.0
    %1972 = vmatpush.msra.mxu0 0.0
    %1973 = vmatpush.msra.mxu0 0.0
    %1974 = vmatpush.msra.mxu0 0.0
    %1975 = vmatpush.msra.mxu0 0.0
    %1976 = vmatpush.msra.mxu0 0.0
    %1977 = vmatpush.msra.mxu0 0.0
    %1978 = vmatpush.msra.mxu0 0.0
    %1979 = vmatpush.msra.mxu0 0.0
    %1980 = vmatpush.msra.mxu0 0.0
    %1981 = vmatpush.msra.mxu0 0.0
    %1982 = vmatpush.msra.mxu0 0.0
    %1983 = vmatpush.msra.mxu0 0.0
    %v1984 = vand.u32 %v1964, 4294901760
    %1985 = vmatpush.msra.mxu0 %v1984
    %v1986 = vand.u32 %v1967, 4294901760
    %v1987 = vsub.f32 %v1967, %v1986
    %v1988 = vand.u32 %v1987, 4294901760
    %v1989 = vsub.f32 %v1987, %v1988
    %v1990 = vand.u32 %v1989, 4294901760
    %1991 = vmatmul.f32.gmra.mxu0 %v1990
    %v1992 = vpop.f32.mrf.mxu0
    %v1993 = vadd.f32 0.0, %v1992
    %1994 = vdwg.mxu0
    %1995 = vmatpush.msra.mxu0 0.0
    %1996 = vmatpush.msra.mxu0 0.0
    %1997 = vmatpush.msra.mxu0 0.0
    %1998 = vmatpush.msra.mxu0 0.0
    %1999 = vmatpush.msra.mxu0 0.0
    %2000 = vmatpush.msra.mxu0 0.0
    %2001 = vmatpush.msra.mxu0 0.0
    %2002 = vmatpush.msra.mxu0 0.0
    %2003 = vmatpush.msra.mxu0 0.0
    %2004 = vmatpush.msra.mxu0 0.0
    %2005 = vmatpush.msra.mxu0 0.0
    %2006 = vmatpush.msra.mxu0 0.0
    %2007 = vmatpush.msra.mxu0 0.0
    %2008 = vmatpush.msra.mxu0 0.0
    %2009 = vmatpush.msra.mxu0 0.0
    %v2010 = vand.u32 %v1964, 4294901760
    %v2011 = vsub.f32 %v1964, %v2010
    %v2012 = vand.u32 %v2011, 4294901760
    %v2013 = vsub.f32 %v2011, %v2012
    %v2014 = vand.u32 %v2013, 4294901760
    %2015 = vmatpush.msra.mxu0 %v2014
    %v2016 = vand.u32 %v1967, 4294901760
    %2017 = vmatmul.f32.gmra.mxu0 %v2016
    %v2018 = vpop.f32.mrf.mxu0
    %v2019 = vadd.f32 %v1993, %v2018
    %2020 = vdwg.mxu0
    %2021 = vmatpush.msra.mxu0 0.0
    %2022 = vmatpush.msra.mxu0 0.0
    %2023 = vmatpush.msra.mxu0 0.0
    %2024 = vmatpush.msra.mxu0 0.0
    %2025 = vmatpush.msra.mxu0 0.0
    %2026 = vmatpush.msra.mxu0 0.0
    %2027 = vmatpush.msra.mxu0 0.0
    %2028 = vmatpush.msra.mxu0 0.0
    %2029 = vmatpush.msra.mxu0 0.0
    %2030 = vmatpush.msra.mxu0 0.0
    %2031 = vmatpush.msra.mxu0 0.0
    %2032 = vmatpush.msra.mxu0 0.0
    %2033 = vmatpush.msra.mxu0 0.0
    %2034 = vmatpush.msra.mxu0 0.0
    %2035 = vmatpush.msra.mxu0 0.0
    %v2036 = vand.u32 %v1964, 4294901760
    %v2037 = vsub.f32 %v1964, %v2036
    %2038 = vmatpush.msra.mxu0 %v2037
    %v2039 = vand.u32 %v1967, 4294901760
    %v2040 = vsub.f32 %v1967, %v2039
    %2041 = vmatmul.f32.gmra.mxu0 %v2040
    %v2042 = vpop.f32.mrf.mxu0
    %v2043 = vadd.f32 %v2019, %v2042
    %2044 = vdwg.mxu0
    %2045 = vmatpush.msra.mxu0 0.0
    %2046 = vmatpush.msra.mxu0 0.0
    %2047 = vmatpush.msra.mxu0 0.0
    %2048 = vmatpush.msra.mxu0 0.0
    %2049 = vmatpush.msra.mxu0 0.0
    %2050 = vmatpush.msra.mxu0 0.0
    %2051 = vmatpush.msra.mxu0 0.0
    %2052 = vmatpush.msra.mxu0 0.0
    %2053 = vmatpush.msra.mxu0 0.0
    %2054 = vmatpush.msra.mxu0 0.0
    %2055 = vmatpush.msra.mxu0 0.0
    %2056 = vmatpush.msra.mxu0 0.0
    %2057 = vmatpush.msra.mxu0 0.0
    %2058 = vmatpush.msra.mxu0 0.0
    %2059 = vmatpush.msra.mxu0 0.0
    %v2060 = vand.u32 %v1964, 4294901760
    %2061 = vmatpush.msra.mxu0 %v2060
    %v2062 = vand.u32 %v1967, 4294901760
    %v2063 = vsub.f32 %v1967, %v2062
    %v2064 = vand.u32 %v2063, 4294901760
    %2065 = vmatmul.f32.gmra.mxu0 %v2064
    %v2066 = vpop.f32.mrf.mxu0
    %v2067 = vadd.f32 %v2043, %v2066
    %2068 = vdwg.mxu0
    %2069 = vmatpush.msra.mxu0 0.0
    %2070 = vmatpush.msra.mxu0 0.0
    %2071 = vmatpush.msra.mxu0 0.0
    %2072 = vmatpush.msra.mxu0 0.0
    %2073 = vmatpush.msra.mxu0 0.0
    %2074 = vmatpush.msra.mxu0 0.0
    %2075 = vmatpush.msra.mxu0 0.0
    %2076 = vmatpush.msra.mxu0 0.0
    %2077 = vmatpush.msra.mxu0 0.0
    %2078 = vmatpush.msra.mxu0 0.0
    %2079 = vmatpush.msra.mxu0 0.0
    %2080 = vmatpush.msra.mxu0 0.0
    %2081 = vmatpush.msra.mxu0 0.0
    %2082 = vmatpush.msra.mxu0 0.0
    %2083 = vmatpush.msra.mxu0 0.0
    %v2084 = vand.u32 %v1964, 4294901760
    %v2085 = vsub.f32 %v1964, %v2084
    %v2086 = vand.u32 %v2085, 4294901760
    %2087 = vmatpush.msra.mxu0 %v2086
    %v2088 = vand.u32 %v1967, 4294901760
    %2089 = vmatmul.f32.gmra.mxu0 %v2088
    %v2090 = vpop.f32.mrf.mxu0
    %v2091 = vadd.f32 %v2067, %v2090
    %2092 = vdwg.mxu0
    %2093 = vmatpush.msra.mxu0 0.0
    %2094 = vmatpush.msra.mxu0 0.0
    %2095 = vmatpush.msra.mxu0 0.0
    %2096 = vmatpush.msra.mxu0 0.0
    %2097 = vmatpush.msra.mxu0 0.0
    %2098 = vmatpush.msra.mxu0 0.0
    %2099 = vmatpush.msra.mxu0 0.0
    %2100 = vmatpush.msra.mxu0 0.0
    %2101 = vmatpush.msra.mxu0 0.0
    %2102 = vmatpush.msra.mxu0 0.0
    %2103 = vmatpush.msra.mxu0 0.0
    %2104 = vmatpush.msra.mxu0 0.0
    %2105 = vmatpush.msra.mxu0 0.0
    %2106 = vmatpush.msra.mxu0 0.0
    %2107 = vmatpush.msra.mxu0 0.0
    %v2108 = vand.u32 %v1964, 4294901760
    %2109 = vmatpush.msra.mxu0 %v2108
    %v2110 = vand.u32 %v1967, 4294901760
    %2111 = vmatmul.f32.gmra.mxu0 %v2110
    %v2112 = vpop.f32.mrf.mxu0
    %v2113 = vadd.f32 %v2091, %v2112
    %2114 = vdwg.mxu0
    %2115 = vrot.lane.b32.xlu0 %v361, 64
    %v2116 = vpop.permute.xlu0 %2115
    %v2119 = vsel %vm370, %v1805, 0
    %2121 = vmatpush.msra.mxu0 0.0
    %2122 = vmatpush.msra.mxu0 0.0
    %2123 = vmatpush.msra.mxu0 0.0
    %2124 = vmatpush.msra.mxu0 0.0
    %2125 = vmatpush.msra.mxu0 0.0
    %2126 = vmatpush.msra.mxu0 0.0
    %2127 = vmatpush.msra.mxu0 0.0
    %2128 = vmatpush.msra.mxu0 0.0
    %2129 = vmatpush.msra.mxu0 0.0
    %2130 = vmatpush.msra.mxu0 0.0
    %2131 = vmatpush.msra.mxu0 0.0
    %2132 = vmatpush.msra.mxu0 0.0
    %2133 = vmatpush.msra.mxu0 0.0
    %2134 = vmatpush.msra.mxu0 0.0
    %2135 = vmatpush.msra.mxu0 0.0
    %v2136 = vand.u32 %v2116, 4294901760
    %2137 = vmatpush.msra.mxu0 %v2136
    %v2138 = vand.u32 %v2119, 4294901760
    %v2139 = vsub.f32 %v2119, %v2138
    %v2140 = vand.u32 %v2139, 4294901760
    %v2141 = vsub.f32 %v2139, %v2140
    %v2142 = vand.u32 %v2141, 4294901760
    %2143 = vmatmul.f32.gmra.mxu0 %v2142
    %v2144 = vpop.f32.mrf.mxu0
    %v2145 = vadd.f32 0.0, %v2144
    %2146 = vdwg.mxu0
    %2147 = vmatpush.msra.mxu0 0.0
    %2148 = vmatpush.msra.mxu0 0.0
    %2149 = vmatpush.msra.mxu0 0.0
    %2150 = vmatpush.msra.mxu0 0.0
    %2151 = vmatpush.msra.mxu0 0.0
    %2152 = vmatpush.msra.mxu0 0.0
    %2153 = vmatpush.msra.mxu0 0.0
    %2154 = vmatpush.msra.mxu0 0.0
    %2155 = vmatpush.msra.mxu0 0.0
    %2156 = vmatpush.msra.mxu0 0.0
    %2157 = vmatpush.msra.mxu0 0.0
    %2158 = vmatpush.msra.mxu0 0.0
    %2159 = vmatpush.msra.mxu0 0.0
    %2160 = vmatpush.msra.mxu0 0.0
    %2161 = vmatpush.msra.mxu0 0.0
    %v2162 = vand.u32 %v2116, 4294901760
    %v2163 = vsub.f32 %v2116, %v2162
    %v2164 = vand.u32 %v2163, 4294901760
    %v2165 = vsub.f32 %v2163, %v2164
    %v2166 = vand.u32 %v2165, 4294901760
    %2167 = vmatpush.msra.mxu0 %v2166
    %v2168 = vand.u32 %v2119, 4294901760
    %2169 = vmatmul.f32.gmra.mxu0 %v2168
    %v2170 = vpop.f32.mrf.mxu0
    %v2171 = vadd.f32 %v2145, %v2170
    %2172 = vdwg.mxu0
    %2173 = vmatpush.msra.mxu0 0.0
    %2174 = vmatpush.msra.mxu0 0.0
    %2175 = vmatpush.msra.mxu0 0.0
    %2176 = vmatpush.msra.mxu0 0.0
    %2177 = vmatpush.msra.mxu0 0.0
    %2178 = vmatpush.msra.mxu0 0.0
    %2179 = vmatpush.msra.mxu0 0.0
    %2180 = vmatpush.msra.mxu0 0.0
    %2181 = vmatpush.msra.mxu0 0.0
    %2182 = vmatpush.msra.mxu0 0.0
    %2183 = vmatpush.msra.mxu0 0.0
    %2184 = vmatpush.msra.mxu0 0.0
    %2185 = vmatpush.msra.mxu0 0.0
    %2186 = vmatpush.msra.mxu0 0.0
    %2187 = vmatpush.msra.mxu0 0.0
    %v2188 = vand.u32 %v2116, 4294901760
    %v2189 = vsub.f32 %v2116, %v2188
    %2190 = vmatpush.msra.mxu0 %v2189
    %v2191 = vand.u32 %v2119, 4294901760
    %v2192 = vsub.f32 %v2119, %v2191
    %2193 = vmatmul.f32.gmra.mxu0 %v2192
    %v2194 = vpop.f32.mrf.mxu0
    %v2195 = vadd.f32 %v2171, %v2194
    %2196 = vdwg.mxu0
    %2197 = vmatpush.msra.mxu0 0.0
    %2198 = vmatpush.msra.mxu0 0.0
    %2199 = vmatpush.msra.mxu0 0.0
    %2200 = vmatpush.msra.mxu0 0.0
    %2201 = vmatpush.msra.mxu0 0.0
    %2202 = vmatpush.msra.mxu0 0.0
    %2203 = vmatpush.msra.mxu0 0.0
    %2204 = vmatpush.msra.mxu0 0.0
    %2205 = vmatpush.msra.mxu0 0.0
    %2206 = vmatpush.msra.mxu0 0.0
    %2207 = vmatpush.msra.mxu0 0.0
    %2208 = vmatpush.msra.mxu0 0.0
    %2209 = vmatpush.msra.mxu0 0.0
    %2210 = vmatpush.msra.mxu0 0.0
    %2211 = vmatpush.msra.mxu0 0.0
    %v2212 = vand.u32 %v2116, 4294901760
    %2213 = vmatpush.msra.mxu0 %v2212
    %v2214 = vand.u32 %v2119, 4294901760
    %v2215 = vsub.f32 %v2119, %v2214
    %v2216 = vand.u32 %v2215, 4294901760
    %2217 = vmatmul.f32.gmra.mxu0 %v2216
    %v2218 = vpop.f32.mrf.mxu0
    %v2219 = vadd.f32 %v2195, %v2218
    %2220 = vdwg.mxu0
    %2221 = vmatpush.msra.mxu0 0.0
    %2222 = vmatpush.msra.mxu0 0.0
    %2223 = vmatpush.msra.mxu0 0.0
    %2224 = vmatpush.msra.mxu0 0.0
    %2225 = vmatpush.msra.mxu0 0.0
    %2226 = vmatpush.msra.mxu0 0.0
    %2227 = vmatpush.msra.mxu0 0.0
    %2228 = vmatpush.msra.mxu0 0.0
    %2229 = vmatpush.msra.mxu0 0.0
    %2230 = vmatpush.msra.mxu0 0.0
    %2231 = vmatpush.msra.mxu0 0.0
    %2232 = vmatpush.msra.mxu0 0.0
    %2233 = vmatpush.msra.mxu0 0.0
    %2234 = vmatpush.msra.mxu0 0.0
    %2235 = vmatpush.msra.mxu0 0.0
    %v2236 = vand.u32 %v2116, 4294901760
    %v2237 = vsub.f32 %v2116, %v2236
    %v2238 = vand.u32 %v2237, 4294901760
    %2239 = vmatpush.msra.mxu0 %v2238
    %v2240 = vand.u32 %v2119, 4294901760
    %2241 = vmatmul.f32.gmra.mxu0 %v2240
    %v2242 = vpop.f32.mrf.mxu0
    %v2243 = vadd.f32 %v2219, %v2242
    %2244 = vdwg.mxu0
    %2245 = vmatpush.msra.mxu0 0.0
    %2246 = vmatpush.msra.mxu0 0.0
    %2247 = vmatpush.msra.mxu0 0.0
    %2248 = vmatpush.msra.mxu0 0.0
    %2249 = vmatpush.msra.mxu0 0.0
    %2250 = vmatpush.msra.mxu0 0.0
    %2251 = vmatpush.msra.mxu0 0.0
    %2252 = vmatpush.msra.mxu0 0.0
    %2253 = vmatpush.msra.mxu0 0.0
    %2254 = vmatpush.msra.mxu0 0.0
    %2255 = vmatpush.msra.mxu0 0.0
    %2256 = vmatpush.msra.mxu0 0.0
    %2257 = vmatpush.msra.mxu0 0.0
    %2258 = vmatpush.msra.mxu0 0.0
    %2259 = vmatpush.msra.mxu0 0.0
    %v2260 = vand.u32 %v2116, 4294901760
    %2261 = vmatpush.msra.mxu0 %v2260
    %v2262 = vand.u32 %v2119, 4294901760
    %2263 = vmatmul.f32.gmra.mxu0 %v2262
    %v2264 = vpop.f32.mrf.mxu0
    %v2265 = vadd.f32 %v2243, %v2264
    %2266 = vdwg.mxu0
    %2267 = vrot.lane.b32.xlu0 %v361, 40
    %v2268 = vpop.permute.xlu0 %2267
    %v2271 = vsel %vm370, %v1806, 0
    %2273 = vmatpush.msra.mxu0 0.0
    %2274 = vmatpush.msra.mxu0 0.0
    %2275 = vmatpush.msra.mxu0 0.0
    %2276 = vmatpush.msra.mxu0 0.0
    %2277 = vmatpush.msra.mxu0 0.0
    %2278 = vmatpush.msra.mxu0 0.0
    %2279 = vmatpush.msra.mxu0 0.0
    %2280 = vmatpush.msra.mxu0 0.0
    %2281 = vmatpush.msra.mxu0 0.0
    %2282 = vmatpush.msra.mxu0 0.0
    %2283 = vmatpush.msra.mxu0 0.0
    %2284 = vmatpush.msra.mxu0 0.0
    %2285 = vmatpush.msra.mxu0 0.0
    %2286 = vmatpush.msra.mxu0 0.0
    %2287 = vmatpush.msra.mxu0 0.0
    %v2288 = vand.u32 %v2268, 4294901760
    %2289 = vmatpush.msra.mxu0 %v2288
    %v2290 = vand.u32 %v2271, 4294901760
    %v2291 = vsub.f32 %v2271, %v2290
    %v2292 = vand.u32 %v2291, 4294901760
    %v2293 = vsub.f32 %v2291, %v2292
    %v2294 = vand.u32 %v2293, 4294901760
    %2295 = vmatmul.f32.gmra.mxu0 %v2294
    %v2296 = vpop.f32.mrf.mxu0
    %v2297 = vadd.f32 0.0, %v2296
    %2298 = vdwg.mxu0
    %2299 = vmatpush.msra.mxu0 0.0
    %2300 = vmatpush.msra.mxu0 0.0
    %2301 = vmatpush.msra.mxu0 0.0
    %2302 = vmatpush.msra.mxu0 0.0
    %2303 = vmatpush.msra.mxu0 0.0
    %2304 = vmatpush.msra.mxu0 0.0
    %2305 = vmatpush.msra.mxu0 0.0
    %2306 = vmatpush.msra.mxu0 0.0
    %2307 = vmatpush.msra.mxu0 0.0
    %2308 = vmatpush.msra.mxu0 0.0
    %2309 = vmatpush.msra.mxu0 0.0
    %2310 = vmatpush.msra.mxu0 0.0
    %2311 = vmatpush.msra.mxu0 0.0
    %2312 = vmatpush.msra.mxu0 0.0
    %2313 = vmatpush.msra.mxu0 0.0
    %v2314 = vand.u32 %v2268, 4294901760
    %v2315 = vsub.f32 %v2268, %v2314
    %v2316 = vand.u32 %v2315, 4294901760
    %v2317 = vsub.f32 %v2315, %v2316
    %v2318 = vand.u32 %v2317, 4294901760
    %2319 = vmatpush.msra.mxu0 %v2318
    %v2320 = vand.u32 %v2271, 4294901760
    %2321 = vmatmul.f32.gmra.mxu0 %v2320
    %v2322 = vpop.f32.mrf.mxu0
    %v2323 = vadd.f32 %v2297, %v2322
    %2324 = vdwg.mxu0
    %2325 = vmatpush.msra.mxu0 0.0
    %2326 = vmatpush.msra.mxu0 0.0
    %2327 = vmatpush.msra.mxu0 0.0
    %2328 = vmatpush.msra.mxu0 0.0
    %2329 = vmatpush.msra.mxu0 0.0
    %2330 = vmatpush.msra.mxu0 0.0
    %2331 = vmatpush.msra.mxu0 0.0
    %2332 = vmatpush.msra.mxu0 0.0
    %2333 = vmatpush.msra.mxu0 0.0
    %2334 = vmatpush.msra.mxu0 0.0
    %2335 = vmatpush.msra.mxu0 0.0
    %2336 = vmatpush.msra.mxu0 0.0
    %2337 = vmatpush.msra.mxu0 0.0
    %2338 = vmatpush.msra.mxu0 0.0
    %2339 = vmatpush.msra.mxu0 0.0
    %v2340 = vand.u32 %v2268, 4294901760
    %v2341 = vsub.f32 %v2268, %v2340
    %2342 = vmatpush.msra.mxu0 %v2341
    %v2343 = vand.u32 %v2271, 4294901760
    %v2344 = vsub.f32 %v2271, %v2343
    %2345 = vmatmul.f32.gmra.mxu0 %v2344
    %v2346 = vpop.f32.mrf.mxu0
    %v2347 = vadd.f32 %v2323, %v2346
    %2348 = vdwg.mxu0
    %2349 = vmatpush.msra.mxu0 0.0
    %2350 = vmatpush.msra.mxu0 0.0
    %2351 = vmatpush.msra.mxu0 0.0
    %2352 = vmatpush.msra.mxu0 0.0
    %2353 = vmatpush.msra.mxu0 0.0
    %2354 = vmatpush.msra.mxu0 0.0
    %2355 = vmatpush.msra.mxu0 0.0
    %2356 = vmatpush.msra.mxu0 0.0
    %2357 = vmatpush.msra.mxu0 0.0
    %2358 = vmatpush.msra.mxu0 0.0
    %2359 = vmatpush.msra.mxu0 0.0
    %2360 = vmatpush.msra.mxu0 0.0
    %2361 = vmatpush.msra.mxu0 0.0
    %2362 = vmatpush.msra.mxu0 0.0
    %2363 = vmatpush.msra.mxu0 0.0
    %v2364 = vand.u32 %v2268, 4294901760
    %2365 = vmatpush.msra.mxu0 %v2364
    %v2366 = vand.u32 %v2271, 4294901760
    %v2367 = vsub.f32 %v2271, %v2366
    %v2368 = vand.u32 %v2367, 4294901760
    %2369 = vmatmul.f32.gmra.mxu0 %v2368
    %v2370 = vpop.f32.mrf.mxu0
    %v2371 = vadd.f32 %v2347, %v2370
    %2372 = vdwg.mxu0
    %2373 = vmatpush.msra.mxu0 0.0
    %2374 = vmatpush.msra.mxu0 0.0
    %2375 = vmatpush.msra.mxu0 0.0
    %2376 = vmatpush.msra.mxu0 0.0
    %2377 = vmatpush.msra.mxu0 0.0
    %2378 = vmatpush.msra.mxu0 0.0
    %2379 = vmatpush.msra.mxu0 0.0
    %2380 = vmatpush.msra.mxu0 0.0
    %2381 = vmatpush.msra.mxu0 0.0
    %2382 = vmatpush.msra.mxu0 0.0
    %2383 = vmatpush.msra.mxu0 0.0
    %2384 = vmatpush.msra.mxu0 0.0
    %2385 = vmatpush.msra.mxu0 0.0
    %2386 = vmatpush.msra.mxu0 0.0
    %2387 = vmatpush.msra.mxu0 0.0
    %v2388 = vand.u32 %v2268, 4294901760
    %v2389 = vsub.f32 %v2268, %v2388
    %v2390 = vand.u32 %v2389, 4294901760
    %2391 = vmatpush.msra.mxu0 %v2390
    %v2392 = vand.u32 %v2271, 4294901760
    %2393 = vmatmul.f32.gmra.mxu0 %v2392
    %v2394 = vpop.f32.mrf.mxu0
    %v2395 = vadd.f32 %v2371, %v2394
    %2396 = vdwg.mxu0
    %2397 = vmatpush.msra.mxu0 0.0
    %2398 = vmatpush.msra.mxu0 0.0
    %2399 = vmatpush.msra.mxu0 0.0
    %2400 = vmatpush.msra.mxu0 0.0
    %2401 = vmatpush.msra.mxu0 0.0
    %2402 = vmatpush.msra.mxu0 0.0
    %2403 = vmatpush.msra.mxu0 0.0
    %2404 = vmatpush.msra.mxu0 0.0
    %2405 = vmatpush.msra.mxu0 0.0
    %2406 = vmatpush.msra.mxu0 0.0
    %2407 = vmatpush.msra.mxu0 0.0
    %2408 = vmatpush.msra.mxu0 0.0
    %2409 = vmatpush.msra.mxu0 0.0
    %2410 = vmatpush.msra.mxu0 0.0
    %2411 = vmatpush.msra.mxu0 0.0
    %v2412 = vand.u32 %v2268, 4294901760
    %2413 = vmatpush.msra.mxu0 %v2412
    %v2414 = vand.u32 %v2271, 4294901760
    %2415 = vmatmul.f32.gmra.mxu0 %v2414
    %v2416 = vpop.f32.mrf.mxu0
    %v2417 = vadd.f32 %v2395, %v2416
    %2418 = vdwg.mxu0
    %2420 = vrot.lane.b32.xlu0 %v2113, 8
    %v2421 = vpop.permute.xlu0 %2420
    %2424 = vrot.lane.b32.xlu0 %v2265, 16
    %v2425 = vpop.permute.xlu0 %2424
    %2428 = vrot.lane.b32.xlu0 %v2417, 24
    %v2429 = vpop.permute.xlu0 %2428
    %v2431 = vsel %vm370, %v1961, %v2421
    %vm2432 = vcmask 130048
    %v2433 = vsel %vm2432, %v2431, %v2425
    %vm2434 = vcmask 195584
    %v2435 = vsel %vm2434, %v2433, %v2429
    %2436 = vrot.lane.b32.xlu0 %v365, 112
    %v2437 = vpop.permute.xlu0 %2436
    %v2440 = vsel %vm370, %v1807, 0
    %2442 = vmatpush.msra.mxu0 0.0
    %2443 = vmatpush.msra.mxu0 0.0
    %2444 = vmatpush.msra.mxu0 0.0
    %2445 = vmatpush.msra.mxu0 0.0
    %2446 = vmatpush.msra.mxu0 0.0
    %2447 = vmatpush.msra.mxu0 0.0
    %2448 = vmatpush.msra.mxu0 0.0
    %2449 = vmatpush.msra.mxu0 0.0
    %2450 = vmatpush.msra.mxu0 0.0
    %2451 = vmatpush.msra.mxu0 0.0
    %2452 = vmatpush.msra.mxu0 0.0
    %2453 = vmatpush.msra.mxu0 0.0
    %2454 = vmatpush.msra.mxu0 0.0
    %2455 = vmatpush.msra.mxu0 0.0
    %2456 = vmatpush.msra.mxu0 0.0
    %v2457 = vand.u32 %v2437, 4294901760
    %2458 = vmatpush.msra.mxu0 %v2457
    %v2459 = vand.u32 %v2440, 4294901760
    %v2460 = vsub.f32 %v2440, %v2459
    %v2461 = vand.u32 %v2460, 4294901760
    %v2462 = vsub.f32 %v2460, %v2461
    %v2463 = vand.u32 %v2462, 4294901760
    %2464 = vmatmul.f32.gmra.mxu0 %v2463
    %v2465 = vpop.f32.mrf.mxu0
    %v2466 = vadd.f32 0.0, %v2465
    %2467 = vdwg.mxu0
    %2468 = vmatpush.msra.mxu0 0.0
    %2469 = vmatpush.msra.mxu0 0.0
    %2470 = vmatpush.msra.mxu0 0.0
    %2471 = vmatpush.msra.mxu0 0.0
    %2472 = vmatpush.msra.mxu0 0.0
    %2473 = vmatpush.msra.mxu0 0.0
    %2474 = vmatpush.msra.mxu0 0.0
    %2475 = vmatpush.msra.mxu0 0.0
    %2476 = vmatpush.msra.mxu0 0.0
    %2477 = vmatpush.msra.mxu0 0.0
    %2478 = vmatpush.msra.mxu0 0.0
    %2479 = vmatpush.msra.mxu0 0.0
    %2480 = vmatpush.msra.mxu0 0.0
    %2481 = vmatpush.msra.mxu0 0.0
    %2482 = vmatpush.msra.mxu0 0.0
    %v2483 = vand.u32 %v2437, 4294901760
    %v2484 = vsub.f32 %v2437, %v2483
    %v2485 = vand.u32 %v2484, 4294901760
    %v2486 = vsub.f32 %v2484, %v2485
    %v2487 = vand.u32 %v2486, 4294901760
    %2488 = vmatpush.msra.mxu0 %v2487
    %v2489 = vand.u32 %v2440, 4294901760
    %2490 = vmatmul.f32.gmra.mxu0 %v2489
    %v2491 = vpop.f32.mrf.mxu0
    %v2492 = vadd.f32 %v2466, %v2491
    %2493 = vdwg.mxu0
    %2494 = vmatpush.msra.mxu0 0.0
    %2495 = vmatpush.msra.mxu0 0.0
    %2496 = vmatpush.msra.mxu0 0.0
    %2497 = vmatpush.msra.mxu0 0.0
    %2498 = vmatpush.msra.mxu0 0.0
    %2499 = vmatpush.msra.mxu0 0.0
    %2500 = vmatpush.msra.mxu0 0.0
    %2501 = vmatpush.msra.mxu0 0.0
    %2502 = vmatpush.msra.mxu0 0.0
    %2503 = vmatpush.msra.mxu0 0.0
    %2504 = vmatpush.msra.mxu0 0.0
    %2505 = vmatpush.msra.mxu0 0.0
    %2506 = vmatpush.msra.mxu0 0.0
    %2507 = vmatpush.msra.mxu0 0.0
    %2508 = vmatpush.msra.mxu0 0.0
    %v2509 = vand.u32 %v2437, 4294901760
    %v2510 = vsub.f32 %v2437, %v2509
    %2511 = vmatpush.msra.mxu0 %v2510
    %v2512 = vand.u32 %v2440, 4294901760
    %v2513 = vsub.f32 %v2440, %v2512
    %2514 = vmatmul.f32.gmra.mxu0 %v2513
    %v2515 = vpop.f32.mrf.mxu0
    %v2516 = vadd.f32 %v2492, %v2515
    %2517 = vdwg.mxu0
    %2518 = vmatpush.msra.mxu0 0.0
    %2519 = vmatpush.msra.mxu0 0.0
    %2520 = vmatpush.msra.mxu0 0.0
    %2521 = vmatpush.msra.mxu0 0.0
    %2522 = vmatpush.msra.mxu0 0.0
    %2523 = vmatpush.msra.mxu0 0.0
    %2524 = vmatpush.msra.mxu0 0.0
    %2525 = vmatpush.msra.mxu0 0.0
    %2526 = vmatpush.msra.mxu0 0.0
    %2527 = vmatpush.msra.mxu0 0.0
    %2528 = vmatpush.msra.mxu0 0.0
    %2529 = vmatpush.msra.mxu0 0.0
    %2530 = vmatpush.msra.mxu0 0.0
    %2531 = vmatpush.msra.mxu0 0.0
    %2532 = vmatpush.msra.mxu0 0.0
    %v2533 = vand.u32 %v2437, 4294901760
    %2534 = vmatpush.msra.mxu0 %v2533
    %v2535 = vand.u32 %v2440, 4294901760
    %v2536 = vsub.f32 %v2440, %v2535
    %v2537 = vand.u32 %v2536, 4294901760
    %2538 = vmatmul.f32.gmra.mxu0 %v2537
    %v2539 = vpop.f32.mrf.mxu0
    %v2540 = vadd.f32 %v2516, %v2539
    %2541 = vdwg.mxu0
    %2542 = vmatpush.msra.mxu0 0.0
    %2543 = vmatpush.msra.mxu0 0.0
    %2544 = vmatpush.msra.mxu0 0.0
    %2545 = vmatpush.msra.mxu0 0.0
    %2546 = vmatpush.msra.mxu0 0.0
    %2547 = vmatpush.msra.mxu0 0.0
    %2548 = vmatpush.msra.mxu0 0.0
    %2549 = vmatpush.msra.mxu0 0.0
    %2550 = vmatpush.msra.mxu0 0.0
    %2551 = vmatpush.msra.mxu0 0.0
    %2552 = vmatpush.msra.mxu0 0.0
    %2553 = vmatpush.msra.mxu0 0.0
    %2554 = vmatpush.msra.mxu0 0.0
    %2555 = vmatpush.msra.mxu0 0.0
    %2556 = vmatpush.msra.mxu0 0.0
    %v2557 = vand.u32 %v2437, 4294901760
    %v2558 = vsub.f32 %v2437, %v2557
    %v2559 = vand.u32 %v2558, 4294901760
    %2560 = vmatpush.msra.mxu0 %v2559
    %v2561 = vand.u32 %v2440, 4294901760
    %2562 = vmatmul.f32.gmra.mxu0 %v2561
    %v2563 = vpop.f32.mrf.mxu0
    %v2564 = vadd.f32 %v2540, %v2563
    %2565 = vdwg.mxu0
    %2566 = vmatpush.msra.mxu0 0.0
    %2567 = vmatpush.msra.mxu0 0.0
    %2568 = vmatpush.msra.mxu0 0.0
    %2569 = vmatpush.msra.mxu0 0.0
    %2570 = vmatpush.msra.mxu0 0.0
    %2571 = vmatpush.msra.mxu0 0.0
    %2572 = vmatpush.msra.mxu0 0.0
    %2573 = vmatpush.msra.mxu0 0.0
    %2574 = vmatpush.msra.mxu0 0.0
    %2575 = vmatpush.msra.mxu0 0.0
    %2576 = vmatpush.msra.mxu0 0.0
    %2577 = vmatpush.msra.mxu0 0.0
    %2578 = vmatpush.msra.mxu0 0.0
    %2579 = vmatpush.msra.mxu0 0.0
    %2580 = vmatpush.msra.mxu0 0.0
    %v2581 = vand.u32 %v2437, 4294901760
    %2582 = vmatpush.msra.mxu0 %v2581
    %v2583 = vand.u32 %v2440, 4294901760
    %2584 = vmatmul.f32.gmra.mxu0 %v2583
    %v2585 = vpop.f32.mrf.mxu0
    %v2586 = vadd.f32 %v2564, %v2585
    %2587 = vdwg.mxu0
    %2588 = vrot.lane.b32.xlu0 %v365, 88
    %v2589 = vpop.permute.xlu0 %2588
    %v2592 = vsel %vm370, %v1808, 0
    %2594 = vmatpush.msra.mxu0 0.0
    %2595 = vmatpush.msra.mxu0 0.0
    %2596 = vmatpush.msra.mxu0 0.0
    %2597 = vmatpush.msra.mxu0 0.0
    %2598 = vmatpush.msra.mxu0 0.0
    %2599 = vmatpush.msra.mxu0 0.0
    %2600 = vmatpush.msra.mxu0 0.0
    %2601 = vmatpush.msra.mxu0 0.0
    %2602 = vmatpush.msra.mxu0 0.0
    %2603 = vmatpush.msra.mxu0 0.0
    %2604 = vmatpush.msra.mxu0 0.0
    %2605 = vmatpush.msra.mxu0 0.0
    %2606 = vmatpush.msra.mxu0 0.0
    %2607 = vmatpush.msra.mxu0 0.0
    %2608 = vmatpush.msra.mxu0 0.0
    %v2609 = vand.u32 %v2589, 4294901760
    %2610 = vmatpush.msra.mxu0 %v2609
    %v2611 = vand.u32 %v2592, 4294901760
    %v2612 = vsub.f32 %v2592, %v2611
    %v2613 = vand.u32 %v2612, 4294901760
    %v2614 = vsub.f32 %v2612, %v2613
    %v2615 = vand.u32 %v2614, 4294901760
    %2616 = vmatmul.f32.gmra.mxu0 %v2615
    %v2617 = vpop.f32.mrf.mxu0
    %v2618 = vadd.f32 0.0, %v2617
    %2619 = vdwg.mxu0
    %2620 = vmatpush.msra.mxu0 0.0
    %2621 = vmatpush.msra.mxu0 0.0
    %2622 = vmatpush.msra.mxu0 0.0
    %2623 = vmatpush.msra.mxu0 0.0
    %2624 = vmatpush.msra.mxu0 0.0
    %2625 = vmatpush.msra.mxu0 0.0
    %2626 = vmatpush.msra.mxu0 0.0
    %2627 = vmatpush.msra.mxu0 0.0
    %2628 = vmatpush.msra.mxu0 0.0
    %2629 = vmatpush.msra.mxu0 0.0
    %2630 = vmatpush.msra.mxu0 0.0
    %2631 = vmatpush.msra.mxu0 0.0
    %2632 = vmatpush.msra.mxu0 0.0
    %2633 = vmatpush.msra.mxu0 0.0
    %2634 = vmatpush.msra.mxu0 0.0
    %v2635 = vand.u32 %v2589, 4294901760
    %v2636 = vsub.f32 %v2589, %v2635
    %v2637 = vand.u32 %v2636, 4294901760
    %v2638 = vsub.f32 %v2636, %v2637
    %v2639 = vand.u32 %v2638, 4294901760
    %2640 = vmatpush.msra.mxu0 %v2639
    %v2641 = vand.u32 %v2592, 4294901760
    %2642 = vmatmul.f32.gmra.mxu0 %v2641
    %v2643 = vpop.f32.mrf.mxu0
    %v2644 = vadd.f32 %v2618, %v2643
    %2645 = vdwg.mxu0
    %2646 = vmatpush.msra.mxu0 0.0
    %2647 = vmatpush.msra.mxu0 0.0
    %2648 = vmatpush.msra.mxu0 0.0
    %2649 = vmatpush.msra.mxu0 0.0
    %2650 = vmatpush.msra.mxu0 0.0
    %2651 = vmatpush.msra.mxu0 0.0
    %2652 = vmatpush.msra.mxu0 0.0
    %2653 = vmatpush.msra.mxu0 0.0
    %2654 = vmatpush.msra.mxu0 0.0
    %2655 = vmatpush.msra.mxu0 0.0
    %2656 = vmatpush.msra.mxu0 0.0
    %2657 = vmatpush.msra.mxu0 0.0
    %2658 = vmatpush.msra.mxu0 0.0
    %2659 = vmatpush.msra.mxu0 0.0
    %2660 = vmatpush.msra.mxu0 0.0
    %v2661 = vand.u32 %v2589, 4294901760
    %v2662 = vsub.f32 %v2589, %v2661
    %2663 = vmatpush.msra.mxu0 %v2662
    %v2664 = vand.u32 %v2592, 4294901760
    %v2665 = vsub.f32 %v2592, %v2664
    %2666 = vmatmul.f32.gmra.mxu0 %v2665
    %v2667 = vpop.f32.mrf.mxu0
    %v2668 = vadd.f32 %v2644, %v2667
    %2669 = vdwg.mxu0
    %2670 = vmatpush.msra.mxu0 0.0
    %2671 = vmatpush.msra.mxu0 0.0
    %2672 = vmatpush.msra.mxu0 0.0
    %2673 = vmatpush.msra.mxu0 0.0
    %2674 = vmatpush.msra.mxu0 0.0
    %2675 = vmatpush.msra.mxu0 0.0
    %2676 = vmatpush.msra.mxu0 0.0
    %2677 = vmatpush.msra.mxu0 0.0
    %2678 = vmatpush.msra.mxu0 0.0
    %2679 = vmatpush.msra.mxu0 0.0
    %2680 = vmatpush.msra.mxu0 0.0
    %2681 = vmatpush.msra.mxu0 0.0
    %2682 = vmatpush.msra.mxu0 0.0
    %2683 = vmatpush.msra.mxu0 0.0
    %2684 = vmatpush.msra.mxu0 0.0
    %v2685 = vand.u32 %v2589, 4294901760
    %2686 = vmatpush.msra.mxu0 %v2685
    %v2687 = vand.u32 %v2592, 4294901760
    %v2688 = vsub.f32 %v2592, %v2687
    %v2689 = vand.u32 %v2688, 4294901760
    %2690 = vmatmul.f32.gmra.mxu0 %v2689
    %v2691 = vpop.f32.mrf.mxu0
    %v2692 = vadd.f32 %v2668, %v2691
    %2693 = vdwg.mxu0
    %2694 = vmatpush.msra.mxu0 0.0
    %2695 = vmatpush.msra.mxu0 0.0
    %2696 = vmatpush.msra.mxu0 0.0
    %2697 = vmatpush.msra.mxu0 0.0
    %2698 = vmatpush.msra.mxu0 0.0
    %2699 = vmatpush.msra.mxu0 0.0
    %2700 = vmatpush.msra.mxu0 0.0
    %2701 = vmatpush.msra.mxu0 0.0
    %2702 = vmatpush.msra.mxu0 0.0
    %2703 = vmatpush.msra.mxu0 0.0
    %2704 = vmatpush.msra.mxu0 0.0
    %2705 = vmatpush.msra.mxu0 0.0
    %2706 = vmatpush.msra.mxu0 0.0
    %2707 = vmatpush.msra.mxu0 0.0
    %2708 = vmatpush.msra.mxu0 0.0
    %v2709 = vand.u32 %v2589, 4294901760
    %v2710 = vsub.f32 %v2589, %v2709
    %v2711 = vand.u32 %v2710, 4294901760
    %2712 = vmatpush.msra.mxu0 %v2711
    %v2713 = vand.u32 %v2592, 4294901760
    %2714 = vmatmul.f32.gmra.mxu0 %v2713
    %v2715 = vpop.f32.mrf.mxu0
    %v2716 = vadd.f32 %v2692, %v2715
    %2717 = vdwg.mxu0
    %2718 = vmatpush.msra.mxu0 0.0
    %2719 = vmatpush.msra.mxu0 0.0
    %2720 = vmatpush.msra.mxu0 0.0
    %2721 = vmatpush.msra.mxu0 0.0
    %2722 = vmatpush.msra.mxu0 0.0
    %2723 = vmatpush.msra.mxu0 0.0
    %2724 = vmatpush.msra.mxu0 0.0
    %2725 = vmatpush.msra.mxu0 0.0
    %2726 = vmatpush.msra.mxu0 0.0
    %2727 = vmatpush.msra.mxu0 0.0
    %2728 = vmatpush.msra.mxu0 0.0
    %2729 = vmatpush.msra.mxu0 0.0
    %2730 = vmatpush.msra.mxu0 0.0
    %2731 = vmatpush.msra.mxu0 0.0
    %2732 = vmatpush.msra.mxu0 0.0
    %v2733 = vand.u32 %v2589, 4294901760
    %2734 = vmatpush.msra.mxu0 %v2733
    %v2735 = vand.u32 %v2592, 4294901760
    %2736 = vmatmul.f32.gmra.mxu0 %v2735
    %v2737 = vpop.f32.mrf.mxu0
    %v2738 = vadd.f32 %v2716, %v2737
    %2739 = vdwg.mxu0
    %2740 = vrot.lane.b32.xlu0 %v365, 64
    %v2741 = vpop.permute.xlu0 %2740
    %v2744 = vsel %vm370, %v1809, 0
    %2746 = vmatpush.msra.mxu0 0.0
    %2747 = vmatpush.msra.mxu0 0.0
    %2748 = vmatpush.msra.mxu0 0.0
    %2749 = vmatpush.msra.mxu0 0.0
    %2750 = vmatpush.msra.mxu0 0.0
    %2751 = vmatpush.msra.mxu0 0.0
    %2752 = vmatpush.msra.mxu0 0.0
    %2753 = vmatpush.msra.mxu0 0.0
    %2754 = vmatpush.msra.mxu0 0.0
    %2755 = vmatpush.msra.mxu0 0.0
    %2756 = vmatpush.msra.mxu0 0.0
    %2757 = vmatpush.msra.mxu0 0.0
    %2758 = vmatpush.msra.mxu0 0.0
    %2759 = vmatpush.msra.mxu0 0.0
    %2760 = vmatpush.msra.mxu0 0.0
    %v2761 = vand.u32 %v2741, 4294901760
    %2762 = vmatpush.msra.mxu0 %v2761
    %v2763 = vand.u32 %v2744, 4294901760
    %v2764 = vsub.f32 %v2744, %v2763
    %v2765 = vand.u32 %v2764, 4294901760
    %v2766 = vsub.f32 %v2764, %v2765
    %v2767 = vand.u32 %v2766, 4294901760
    %2768 = vmatmul.f32.gmra.mxu0 %v2767
    %v2769 = vpop.f32.mrf.mxu0
    %v2770 = vadd.f32 0.0, %v2769
    %2771 = vdwg.mxu0
    %2772 = vmatpush.msra.mxu0 0.0
    %2773 = vmatpush.msra.mxu0 0.0
    %2774 = vmatpush.msra.mxu0 0.0
    %2775 = vmatpush.msra.mxu0 0.0
    %2776 = vmatpush.msra.mxu0 0.0
    %2777 = vmatpush.msra.mxu0 0.0
    %2778 = vmatpush.msra.mxu0 0.0
    %2779 = vmatpush.msra.mxu0 0.0
    %2780 = vmatpush.msra.mxu0 0.0
    %2781 = vmatpush.msra.mxu0 0.0
    %2782 = vmatpush.msra.mxu0 0.0
    %2783 = vmatpush.msra.mxu0 0.0
    %2784 = vmatpush.msra.mxu0 0.0
    %2785 = vmatpush.msra.mxu0 0.0
    %2786 = vmatpush.msra.mxu0 0.0
    %v2787 = vand.u32 %v2741, 4294901760
    %v2788 = vsub.f32 %v2741, %v2787
    %v2789 = vand.u32 %v2788, 4294901760
    %v2790 = vsub.f32 %v2788, %v2789
    %v2791 = vand.u32 %v2790, 4294901760
    %2792 = vmatpush.msra.mxu0 %v2791
    %v2793 = vand.u32 %v2744, 4294901760
    %2794 = vmatmul.f32.gmra.mxu0 %v2793
    %v2795 = vpop.f32.mrf.mxu0
    %v2796 = vadd.f32 %v2770, %v2795
    %2797 = vdwg.mxu0
    %2798 = vmatpush.msra.mxu0 0.0
    %2799 = vmatpush.msra.mxu0 0.0
    %2800 = vmatpush.msra.mxu0 0.0
    %2801 = vmatpush.msra.mxu0 0.0
    %2802 = vmatpush.msra.mxu0 0.0
    %2803 = vmatpush.msra.mxu0 0.0
    %2804 = vmatpush.msra.mxu0 0.0
    %2805 = vmatpush.msra.mxu0 0.0
    %2806 = vmatpush.msra.mxu0 0.0
    %2807 = vmatpush.msra.mxu0 0.0
    %2808 = vmatpush.msra.mxu0 0.0
    %2809 = vmatpush.msra.mxu0 0.0
    %2810 = vmatpush.msra.mxu0 0.0
    %2811 = vmatpush.msra.mxu0 0.0
    %2812 = vmatpush.msra.mxu0 0.0
    %v2813 = vand.u32 %v2741, 4294901760
    %v2814 = vsub.f32 %v2741, %v2813
    %2815 = vmatpush.msra.mxu0 %v2814
    %v2816 = vand.u32 %v2744, 4294901760
    %v2817 = vsub.f32 %v2744, %v2816
    %2818 = vmatmul.f32.gmra.mxu0 %v2817
    %v2819 = vpop.f32.mrf.mxu0
    %v2820 = vadd.f32 %v2796, %v2819
    %2821 = vdwg.mxu0
    %2822 = vmatpush.msra.mxu0 0.0
    %2823 = vmatpush.msra.mxu0 0.0
    %2824 = vmatpush.msra.mxu0 0.0
    %2825 = vmatpush.msra.mxu0 0.0
    %2826 = vmatpush.msra.mxu0 0.0
    %2827 = vmatpush.msra.mxu0 0.0
    %2828 = vmatpush.msra.mxu0 0.0
    %2829 = vmatpush.msra.mxu0 0.0
    %2830 = vmatpush.msra.mxu0 0.0
    %2831 = vmatpush.msra.mxu0 0.0
    %2832 = vmatpush.msra.mxu0 0.0
    %2833 = vmatpush.msra.mxu0 0.0
    %2834 = vmatpush.msra.mxu0 0.0
    %2835 = vmatpush.msra.mxu0 0.0
    %2836 = vmatpush.msra.mxu0 0.0
    %v2837 = vand.u32 %v2741, 4294901760
    %2838 = vmatpush.msra.mxu0 %v2837
    %v2839 = vand.u32 %v2744, 4294901760
    %v2840 = vsub.f32 %v2744, %v2839
    %v2841 = vand.u32 %v2840, 4294901760
    %2842 = vmatmul.f32.gmra.mxu0 %v2841
    %v2843 = vpop.f32.mrf.mxu0
    %v2844 = vadd.f32 %v2820, %v2843
    %2845 = vdwg.mxu0
    %2846 = vmatpush.msra.mxu0 0.0
    %2847 = vmatpush.msra.mxu0 0.0
    %2848 = vmatpush.msra.mxu0 0.0
    %2849 = vmatpush.msra.mxu0 0.0
    %2850 = vmatpush.msra.mxu0 0.0
    %2851 = vmatpush.msra.mxu0 0.0
    %2852 = vmatpush.msra.mxu0 0.0
    %2853 = vmatpush.msra.mxu0 0.0
    %2854 = vmatpush.msra.mxu0 0.0
    %2855 = vmatpush.msra.mxu0 0.0
    %2856 = vmatpush.msra.mxu0 0.0
    %2857 = vmatpush.msra.mxu0 0.0
    %2858 = vmatpush.msra.mxu0 0.0
    %2859 = vmatpush.msra.mxu0 0.0
    %2860 = vmatpush.msra.mxu0 0.0
    %v2861 = vand.u32 %v2741, 4294901760
    %v2862 = vsub.f32 %v2741, %v2861
    %v2863 = vand.u32 %v2862, 4294901760
    %2864 = vmatpush.msra.mxu0 %v2863
    %v2865 = vand.u32 %v2744, 4294901760
    %2866 = vmatmul.f32.gmra.mxu0 %v2865
    %v2867 = vpop.f32.mrf.mxu0
    %v2868 = vadd.f32 %v2844, %v2867
    %2869 = vdwg.mxu0
    %2870 = vmatpush.msra.mxu0 0.0
    %2871 = vmatpush.msra.mxu0 0.0
    %2872 = vmatpush.msra.mxu0 0.0
    %2873 = vmatpush.msra.mxu0 0.0
    %2874 = vmatpush.msra.mxu0 0.0
    %2875 = vmatpush.msra.mxu0 0.0
    %2876 = vmatpush.msra.mxu0 0.0
    %2877 = vmatpush.msra.mxu0 0.0
    %2878 = vmatpush.msra.mxu0 0.0
    %2879 = vmatpush.msra.mxu0 0.0
    %2880 = vmatpush.msra.mxu0 0.0
    %2881 = vmatpush.msra.mxu0 0.0
    %2882 = vmatpush.msra.mxu0 0.0
    %2883 = vmatpush.msra.mxu0 0.0
    %2884 = vmatpush.msra.mxu0 0.0
    %v2885 = vand.u32 %v2741, 4294901760
    %2886 = vmatpush.msra.mxu0 %v2885
    %v2887 = vand.u32 %v2744, 4294901760
    %2888 = vmatmul.f32.gmra.mxu0 %v2887
    %v2889 = vpop.f32.mrf.mxu0
    %v2890 = vadd.f32 %v2868, %v2889
    %2891 = vdwg.mxu0
    %2892 = vrot.lane.b32.xlu0 %v365, 40
    %v2893 = vpop.permute.xlu0 %2892
    %v2896 = vsel %vm370, %v1810, 0
    %2898 = vmatpush.msra.mxu0 0.0
    %2899 = vmatpush.msra.mxu0 0.0
    %2900 = vmatpush.msra.mxu0 0.0
    %2901 = vmatpush.msra.mxu0 0.0
    %2902 = vmatpush.msra.mxu0 0.0
    %2903 = vmatpush.msra.mxu0 0.0
    %2904 = vmatpush.msra.mxu0 0.0
    %2905 = vmatpush.msra.mxu0 0.0
    %2906 = vmatpush.msra.mxu0 0.0
    %2907 = vmatpush.msra.mxu0 0.0
    %2908 = vmatpush.msra.mxu0 0.0
    %2909 = vmatpush.msra.mxu0 0.0
    %2910 = vmatpush.msra.mxu0 0.0
    %2911 = vmatpush.msra.mxu0 0.0
    %2912 = vmatpush.msra.mxu0 0.0
    %v2913 = vand.u32 %v2893, 4294901760
    %2914 = vmatpush.msra.mxu0 %v2913
    %v2915 = vand.u32 %v2896, 4294901760
    %v2916 = vsub.f32 %v2896, %v2915
    %v2917 = vand.u32 %v2916, 4294901760
    %v2918 = vsub.f32 %v2916, %v2917
    %v2919 = vand.u32 %v2918, 4294901760
    %2920 = vmatmul.f32.gmra.mxu0 %v2919
    %v2921 = vpop.f32.mrf.mxu0
    %v2922 = vadd.f32 0.0, %v2921
    %2923 = vdwg.mxu0
    %2924 = vmatpush.msra.mxu0 0.0
    %2925 = vmatpush.msra.mxu0 0.0
    %2926 = vmatpush.msra.mxu0 0.0
    %2927 = vmatpush.msra.mxu0 0.0
    %2928 = vmatpush.msra.mxu0 0.0
    %2929 = vmatpush.msra.mxu0 0.0
    %2930 = vmatpush.msra.mxu0 0.0
    %2931 = vmatpush.msra.mxu0 0.0
    %2932 = vmatpush.msra.mxu0 0.0
    %2933 = vmatpush.msra.mxu0 0.0
    %2934 = vmatpush.msra.mxu0 0.0
    %2935 = vmatpush.msra.mxu0 0.0
    %2936 = vmatpush.msra.mxu0 0.0
    %2937 = vmatpush.msra.mxu0 0.0
    %2938 = vmatpush.msra.mxu0 0.0
    %v2939 = vand.u32 %v2893, 4294901760
    %v2940 = vsub.f32 %v2893, %v2939
    %v2941 = vand.u32 %v2940, 4294901760
    %v2942 = vsub.f32 %v2940, %v2941
    %v2943 = vand.u32 %v2942, 4294901760
    %2944 = vmatpush.msra.mxu0 %v2943
    %v2945 = vand.u32 %v2896, 4294901760
    %2946 = vmatmul.f32.gmra.mxu0 %v2945
    %v2947 = vpop.f32.mrf.mxu0
    %v2948 = vadd.f32 %v2922, %v2947
    %2949 = vdwg.mxu0
    %2950 = vmatpush.msra.mxu0 0.0
    %2951 = vmatpush.msra.mxu0 0.0
    %2952 = vmatpush.msra.mxu0 0.0
    %2953 = vmatpush.msra.mxu0 0.0
    %2954 = vmatpush.msra.mxu0 0.0
    %2955 = vmatpush.msra.mxu0 0.0
    %2956 = vmatpush.msra.mxu0 0.0
    %2957 = vmatpush.msra.mxu0 0.0
    %2958 = vmatpush.msra.mxu0 0.0
    %2959 = vmatpush.msra.mxu0 0.0
    %2960 = vmatpush.msra.mxu0 0.0
    %2961 = vmatpush.msra.mxu0 0.0
    %2962 = vmatpush.msra.mxu0 0.0
    %2963 = vmatpush.msra.mxu0 0.0
    %2964 = vmatpush.msra.mxu0 0.0
    %v2965 = vand.u32 %v2893, 4294901760
    %v2966 = vsub.f32 %v2893, %v2965
    %2967 = vmatpush.msra.mxu0 %v2966
    %v2968 = vand.u32 %v2896, 4294901760
    %v2969 = vsub.f32 %v2896, %v2968
    %2970 = vmatmul.f32.gmra.mxu0 %v2969
    %v2971 = vpop.f32.mrf.mxu0
    %v2972 = vadd.f32 %v2948, %v2971
    %2973 = vdwg.mxu0
    %2974 = vmatpush.msra.mxu0 0.0
    %2975 = vmatpush.msra.mxu0 0.0
    %2976 = vmatpush.msra.mxu0 0.0
    %2977 = vmatpush.msra.mxu0 0.0
    %2978 = vmatpush.msra.mxu0 0.0
    %2979 = vmatpush.msra.mxu0 0.0
    %2980 = vmatpush.msra.mxu0 0.0
    %2981 = vmatpush.msra.mxu0 0.0
    %2982 = vmatpush.msra.mxu0 0.0
    %2983 = vmatpush.msra.mxu0 0.0
    %2984 = vmatpush.msra.mxu0 0.0
    %2985 = vmatpush.msra.mxu0 0.0
    %2986 = vmatpush.msra.mxu0 0.0
    %2987 = vmatpush.msra.mxu0 0.0
    %2988 = vmatpush.msra.mxu0 0.0
    %v2989 = vand.u32 %v2893, 4294901760
    %2990 = vmatpush.msra.mxu0 %v2989
    %v2991 = vand.u32 %v2896, 4294901760
    %v2992 = vsub.f32 %v2896, %v2991
    %v2993 = vand.u32 %v2992, 4294901760
    %2994 = vmatmul.f32.gmra.mxu0 %v2993
    %v2995 = vpop.f32.mrf.mxu0
    %v2996 = vadd.f32 %v2972, %v2995
    %2997 = vdwg.mxu0
    %2998 = vmatpush.msra.mxu0 0.0
    %2999 = vmatpush.msra.mxu0 0.0
    %3000 = vmatpush.msra.mxu0 0.0
    %3001 = vmatpush.msra.mxu0 0.0
    %3002 = vmatpush.msra.mxu0 0.0
    %3003 = vmatpush.msra.mxu0 0.0
    %3004 = vmatpush.msra.mxu0 0.0
    %3005 = vmatpush.msra.mxu0 0.0
    %3006 = vmatpush.msra.mxu0 0.0
    %3007 = vmatpush.msra.mxu0 0.0
    %3008 = vmatpush.msra.mxu0 0.0
    %3009 = vmatpush.msra.mxu0 0.0
    %3010 = vmatpush.msra.mxu0 0.0
    %3011 = vmatpush.msra.mxu0 0.0
    %3012 = vmatpush.msra.mxu0 0.0
    %v3013 = vand.u32 %v2893, 4294901760
    %v3014 = vsub.f32 %v2893, %v3013
    %v3015 = vand.u32 %v3014, 4294901760
    %3016 = vmatpush.msra.mxu0 %v3015
    %v3017 = vand.u32 %v2896, 4294901760
    %3018 = vmatmul.f32.gmra.mxu0 %v3017
    %v3019 = vpop.f32.mrf.mxu0
    %v3020 = vadd.f32 %v2996, %v3019
    %3021 = vdwg.mxu0
    %3022 = vmatpush.msra.mxu0 0.0
    %3023 = vmatpush.msra.mxu0 0.0
    %3024 = vmatpush.msra.mxu0 0.0
    %3025 = vmatpush.msra.mxu0 0.0
    %3026 = vmatpush.msra.mxu0 0.0
    %3027 = vmatpush.msra.mxu0 0.0
    %3028 = vmatpush.msra.mxu0 0.0
    %3029 = vmatpush.msra.mxu0 0.0
    %3030 = vmatpush.msra.mxu0 0.0
    %3031 = vmatpush.msra.mxu0 0.0
    %3032 = vmatpush.msra.mxu0 0.0
    %3033 = vmatpush.msra.mxu0 0.0
    %3034 = vmatpush.msra.mxu0 0.0
    %3035 = vmatpush.msra.mxu0 0.0
    %3036 = vmatpush.msra.mxu0 0.0
    %v3037 = vand.u32 %v2893, 4294901760
    %3038 = vmatpush.msra.mxu0 %v3037
    %v3039 = vand.u32 %v2896, 4294901760
    %3040 = vmatmul.f32.gmra.mxu0 %v3039
    %v3041 = vpop.f32.mrf.mxu0
    %v3042 = vadd.f32 %v3020, %v3041
    %3043 = vdwg.mxu0
    %3045 = vrot.lane.b32.xlu0 %v2738, 8
    %v3046 = vpop.permute.xlu0 %3045
    %3049 = vrot.lane.b32.xlu0 %v2890, 16
    %v3050 = vpop.permute.xlu0 %3049
    %3053 = vrot.lane.b32.xlu0 %v3042, 24
    %v3054 = vpop.permute.xlu0 %3053
    %v3056 = vsel %vm370, %v2586, %v3046
    %v3057 = vsel %vm2432, %v3056, %v3050
    %v3058 = vsel %vm2434, %v3057, %v3054
    %v3059 = vld [vmem:[%s3] sm:$0xff]
    %v3060 = vld [vmem:[%s3 + $0x8] sm:$0xff]
    %v3061 = vld [vmem:[%s3 + $0x10] sm:$0xff]
    %v3062 = vld [vmem:[%s3 + $0x18] sm:$0xff]
    %v3064 = vsel %vm82, %v2435, 0
    %v3067 = vsel %vm82, %v3058, 0
    %3069 = vmatpush.msra.mxu0 0.0
    %3070 = vmatpush.msra.mxu0 0.0
    %3071 = vmatpush.msra.mxu0 0.0
    %3072 = vmatpush.msra.mxu0 0.0
    %3073 = vmatpush.msra.mxu0 0.0
    %3074 = vmatpush.msra.mxu0 0.0
    %3075 = vmatpush.msra.mxu0 0.0
    %3076 = vmatpush.msra.mxu0 0.0
    %3077 = vmatpush.msra.mxu0 0.0
    %3078 = vmatpush.msra.mxu0 0.0
    %3079 = vmatpush.msra.mxu0 0.0
    %3080 = vmatpush.msra.mxu0 0.0
    %v3081 = vand.u32 %v3062, 4294901760
    %3082 = vmatpush.msra.mxu0 %v3081
    %v3083 = vand.u32 %v3061, 4294901760
    %3084 = vmatpush.msra.mxu0 %v3083
    %v3085 = vand.u32 %v3060, 4294901760
    %3086 = vmatpush.msra.mxu0 %v3085
    %v3087 = vand.u32 %v3059, 4294901760
    %3088 = vmatpush.msra.mxu0 %v3087
    %v3089 = vand.u32 %v3064, 4294901760
    %v3090 = vsub.f32 %v3064, %v3089
    %v3091 = vand.u32 %v3090, 4294901760
    %v3092 = vsub.f32 %v3090, %v3091
    %v3093 = vand.u32 %v3092, 4294901760
    %3094 = vmatmul.f32.gmra.mxu0 %v3093
    %v3095 = vpop.f32.mrf.mxu0
    %v3096 = vadd.f32 0.0, %v3095
    %v3097 = vand.u32 %v3067, 4294901760
    %v3098 = vsub.f32 %v3067, %v3097
    %v3099 = vand.u32 %v3098, 4294901760
    %v3100 = vsub.f32 %v3098, %v3099
    %v3101 = vand.u32 %v3100, 4294901760
    %3102 = vmatmul.f32.gmra.mxu0 %v3101
    %v3103 = vpop.f32.mrf.mxu0
    %v3104 = vadd.f32 0.0, %v3103
    %3105 = vdwg.mxu0
    %3106 = vmatpush.msra.mxu0 0.0
    %3107 = vmatpush.msra.mxu0 0.0
    %3108 = vmatpush.msra.mxu0 0.0
    %3109 = vmatpush.msra.mxu0 0.0
    %3110 = vmatpush.msra.mxu0 0.0
    %3111 = vmatpush.msra.mxu0 0.0
    %3112 = vmatpush.msra.mxu0 0.0
    %3113 = vmatpush.msra.mxu0 0.0
    %3114 = vmatpush.msra.mxu0 0.0
    %3115 = vmatpush.msra.mxu0 0.0
    %3116 = vmatpush.msra.mxu0 0.0
    %3117 = vmatpush.msra.mxu0 0.0
    %v3118 = vand.u32 %v3062, 4294901760
    %v3119 = vsub.f32 %v3062, %v3118
    %v3120 = vand.u32 %v3119, 4294901760
    %v3121 = vsub.f32 %v3119, %v3120
    %v3122 = vand.u32 %v3121, 4294901760
    %3123 = vmatpush.msra.mxu0 %v3122
    %v3124 = vand.u32 %v3061, 4294901760
    %v3125 = vsub.f32 %v3061, %v3124
    %v3126 = vand.u32 %v3125, 4294901760
    %v3127 = vsub.f32 %v3125, %v3126
    %v3128 = vand.u32 %v3127, 4294901760
    %3129 = vmatpush.msra.mxu0 %v3128
    %v3130 = vand.u32 %v3060, 4294901760
    %v3131 = vsub.f32 %v3060, %v3130
    %v3132 = vand.u32 %v3131, 4294901760
    %v3133 = vsub.f32 %v3131, %v3132
    %v3134 = vand.u32 %v3133, 4294901760
    %3135 = vmatpush.msra.mxu0 %v3134
    %v3136 = vand.u32 %v3059, 4294901760
    %v3137 = vsub.f32 %v3059, %v3136
    %v3138 = vand.u32 %v3137, 4294901760
    %v3139 = vsub.f32 %v3137, %v3138
    %v3140 = vand.u32 %v3139, 4294901760
    %3141 = vmatpush.msra.mxu0 %v3140
    %v3142 = vand.u32 %v3064, 4294901760
    %3143 = vmatmul.f32.gmra.mxu0 %v3142
    %v3144 = vpop.f32.mrf.mxu0
    %v3145 = vadd.f32 %v3096, %v3144
    %v3146 = vand.u32 %v3067, 4294901760
    %3147 = vmatmul.f32.gmra.mxu0 %v3146
    %v3148 = vpop.f32.mrf.mxu0
    %v3149 = vadd.f32 %v3104, %v3148
    %3150 = vdwg.mxu0
    %3151 = vmatpush.msra.mxu0 0.0
    %3152 = vmatpush.msra.mxu0 0.0
    %3153 = vmatpush.msra.mxu0 0.0
    %3154 = vmatpush.msra.mxu0 0.0
    %3155 = vmatpush.msra.mxu0 0.0
    %3156 = vmatpush.msra.mxu0 0.0
    %3157 = vmatpush.msra.mxu0 0.0
    %3158 = vmatpush.msra.mxu0 0.0
    %3159 = vmatpush.msra.mxu0 0.0
    %3160 = vmatpush.msra.mxu0 0.0
    %3161 = vmatpush.msra.mxu0 0.0
    %3162 = vmatpush.msra.mxu0 0.0
    %v3163 = vand.u32 %v3062, 4294901760
    %v3164 = vsub.f32 %v3062, %v3163
    %3165 = vmatpush.msra.mxu0 %v3164
    %v3166 = vand.u32 %v3061, 4294901760
    %v3167 = vsub.f32 %v3061, %v3166
    %3168 = vmatpush.msra.mxu0 %v3167
    %v3169 = vand.u32 %v3060, 4294901760
    %v3170 = vsub.f32 %v3060, %v3169
    %3171 = vmatpush.msra.mxu0 %v3170
    %v3172 = vand.u32 %v3059, 4294901760
    %v3173 = vsub.f32 %v3059, %v3172
    %3174 = vmatpush.msra.mxu0 %v3173
    %v3175 = vand.u32 %v3064, 4294901760
    %v3176 = vsub.f32 %v3064, %v3175
    %3177 = vmatmul.f32.gmra.mxu0 %v3176
    %v3178 = vpop.f32.mrf.mxu0
    %v3179 = vadd.f32 %v3145, %v3178
    %v3180 = vand.u32 %v3067, 4294901760
    %v3181 = vsub.f32 %v3067, %v3180
    %3182 = vmatmul.f32.gmra.mxu0 %v3181
    %v3183 = vpop.f32.mrf.mxu0
    %v3184 = vadd.f32 %v3149, %v3183
    %3185 = vdwg.mxu0
    %3186 = vmatpush.msra.mxu0 0.0
    %3187 = vmatpush.msra.mxu0 0.0
    %3188 = vmatpush.msra.mxu0 0.0
    %3189 = vmatpush.msra.mxu0 0.0
    %3190 = vmatpush.msra.mxu0 0.0
    %3191 = vmatpush.msra.mxu0 0.0
    %3192 = vmatpush.msra.mxu0 0.0
    %3193 = vmatpush.msra.mxu0 0.0
    %3194 = vmatpush.msra.mxu0 0.0
    %3195 = vmatpush.msra.mxu0 0.0
    %3196 = vmatpush.msra.mxu0 0.0
    %3197 = vmatpush.msra.mxu0 0.0
    %v3198 = vand.u32 %v3062, 4294901760
    %3199 = vmatpush.msra.mxu0 %v3198
    %v3200 = vand.u32 %v3061, 4294901760
    %3201 = vmatpush.msra.mxu0 %v3200
    %v3202 = vand.u32 %v3060, 4294901760
    %3203 = vmatpush.msra.mxu0 %v3202
    %v3204 = vand.u32 %v3059, 4294901760
    %3205 = vmatpush.msra.mxu0 %v3204
    %v3206 = vand.u32 %v3064, 4294901760
    %v3207 = vsub.f32 %v3064, %v3206
    %v3208 = vand.u32 %v3207, 4294901760
    %3209 = vmatmul.f32.gmra.mxu0 %v3208
    %v3210 = vpop.f32.mrf.mxu0
    %v3211 = vadd.f32 %v3179, %v3210
    %v3212 = vand.u32 %v3067, 4294901760
    %v3213 = vsub.f32 %v3067, %v3212
    %v3214 = vand.u32 %v3213, 4294901760
    %3215 = vmatmul.f32.gmra.mxu0 %v3214
    %v3216 = vpop.f32.mrf.mxu0
    %v3217 = vadd.f32 %v3184, %v3216
    %3218 = vdwg.mxu0
    %3219 = vmatpush.msra.mxu0 0.0
    %3220 = vmatpush.msra.mxu0 0.0
    %3221 = vmatpush.msra.mxu0 0.0
    %3222 = vmatpush.msra.mxu0 0.0
    %3223 = vmatpush.msra.mxu0 0.0
    %3224 = vmatpush.msra.mxu0 0.0
    %3225 = vmatpush.msra.mxu0 0.0
    %3226 = vmatpush.msra.mxu0 0.0
    %3227 = vmatpush.msra.mxu0 0.0
    %3228 = vmatpush.msra.mxu0 0.0
    %3229 = vmatpush.msra.mxu0 0.0
    %3230 = vmatpush.msra.mxu0 0.0
    %v3231 = vand.u32 %v3062, 4294901760
    %v3232 = vsub.f32 %v3062, %v3231
    %v3233 = vand.u32 %v3232, 4294901760
    %3234 = vmatpush.msra.mxu0 %v3233
    %v3235 = vand.u32 %v3061, 4294901760
    %v3236 = vsub.f32 %v3061, %v3235
    %v3237 = vand.u32 %v3236, 4294901760
    %3238 = vmatpush.msra.mxu0 %v3237
    %v3239 = vand.u32 %v3060, 4294901760
    %v3240 = vsub.f32 %v3060, %v3239
    %v3241 = vand.u32 %v3240, 4294901760
    %3242 = vmatpush.msra.mxu0 %v3241
    %v3243 = vand.u32 %v3059, 4294901760
    %v3244 = vsub.f32 %v3059, %v3243
    %v3245 = vand.u32 %v3244, 4294901760
    %3246 = vmatpush.msra.mxu0 %v3245
    %v3247 = vand.u32 %v3064, 4294901760
    %3248 = vmatmul.f32.gmra.mxu0 %v3247
    %v3249 = vpop.f32.mrf.mxu0
    %v3250 = vadd.f32 %v3211, %v3249
    %v3251 = vand.u32 %v3067, 4294901760
    %3252 = vmatmul.f32.gmra.mxu0 %v3251
    %v3253 = vpop.f32.mrf.mxu0
    %v3254 = vadd.f32 %v3217, %v3253
    %3255 = vdwg.mxu0
    %3256 = vmatpush.msra.mxu0 0.0
    %3257 = vmatpush.msra.mxu0 0.0
    %3258 = vmatpush.msra.mxu0 0.0
    %3259 = vmatpush.msra.mxu0 0.0
    %3260 = vmatpush.msra.mxu0 0.0
    %3261 = vmatpush.msra.mxu0 0.0
    %3262 = vmatpush.msra.mxu0 0.0
    %3263 = vmatpush.msra.mxu0 0.0
    %3264 = vmatpush.msra.mxu0 0.0
    %3265 = vmatpush.msra.mxu0 0.0
    %3266 = vmatpush.msra.mxu0 0.0
    %3267 = vmatpush.msra.mxu0 0.0
    %v3268 = vand.u32 %v3062, 4294901760
    %3269 = vmatpush.msra.mxu0 %v3268
    %v3270 = vand.u32 %v3061, 4294901760
    %3271 = vmatpush.msra.mxu0 %v3270
    %v3272 = vand.u32 %v3060, 4294901760
    %3273 = vmatpush.msra.mxu0 %v3272
    %v3274 = vand.u32 %v3059, 4294901760
    %3275 = vmatpush.msra.mxu0 %v3274
    %v3276 = vand.u32 %v3064, 4294901760
    %3277 = vmatmul.f32.gmra.mxu0 %v3276
    %v3278 = vpop.f32.mrf.mxu0
    %v3279 = vadd.f32 %v3250, %v3278
    %v3280 = vand.u32 %v3067, 4294901760
    %3281 = vmatmul.f32.gmra.mxu0 %v3280
    %v3282 = vpop.f32.mrf.mxu0
    %v3283 = vadd.f32 %v3254, %v3282
    %3284 = vdwg.mxu0
    %v3285 = vadd.f32 %v72, %v3279
    %v3286 = vadd.f32 %v73, %v3283
    %v3287 = vperm.slane %v75, 0
    %v3288 = vadd.f32 %v3285, %v3287
    %v3289 = vadd.f32 %v3286, %v3287
    %v3290 = vsel %vm82, %v3288, 0.0
    %3291 = vadd.xlane.f32.xlu0 %v3290
    %v3292 = vpop.xlane.xlu0 %3291
    %v3293 = vsel %vm82, %v3289, 0.0
    %3294 = vadd.xlane.f32.xlu0 %v3293
    %v3295 = vpop.xlane.xlu0 %3294
    %v3296 = vmul.f32 %v3292, %v95
    %v3297 = vmul.f32 %v3295, %v95
    %v3298 = vsub.f32 %v3288, %v3296
    %v3299 = vsub.f32 %v3289, %v3297
    %v3300 = vmul.f32 %v3298, %v3298
    %v3301 = vmul.f32 %v3299, %v3299
    %v3302 = vsel %vm82, %v3300, 0.0
    %3303 = vadd.xlane.f32.xlu0 %v3302
    %v3304 = vpop.xlane.xlu0 %3303
    %v3305 = vsel %vm82, %v3301, 0.0
    %3306 = vadd.xlane.f32.xlu0 %v3305
    %v3307 = vpop.xlane.xlu0 %3306
    %v3308 = vmul.f32 %v3304, %v95
    %v3309 = vmul.f32 %v3307, %v95
    %v3310 = vadd.f32 %v3308, 1e-06
    %v3311 = vadd.f32 %v3309, 1e-06
    %v3312 = vrsqrt.pop %v3310
    %v3313 = vmul.f32 %v3312, %v3310
    %v3314 = vmul.f32 %v3313, %v3312
    %v3315 = vmul.f32 0.5, %v3314
    %v3316 = vsub.f32 1.5, %v3315
    %v3317 = vmul.f32 %v3312, %v3316
    %vm3318 = vweird.f32 %v3310
    %vm3319 = vweird.f32 %v3312
    %vm3320 = vmor %vm3318, %vm3319
    %v3321 = vsel %vm3320, %v3312, %v3317
    %v3322 = vrsqrt.pop %v3311
    %v3323 = vmul.f32 %v3322, %v3311
    %v3324 = vmul.f32 %v3323, %v3322
    %v3325 = vmul.f32 0.5, %v3324
    %v3326 = vsub.f32 1.5, %v3325
    %v3327 = vmul.f32 %v3322, %v3326
    %vm3328 = vweird.f32 %v3311
    %vm3329 = vweird.f32 %v3322
    %vm3330 = vmor %vm3328, %vm3329
    %v3331 = vsel %vm3330, %v3322, %v3327
    %v3332 = vmul.f32 %v3298, %v3321
    %v3333 = vmul.f32 %v3299, %v3331
    %v3334 = vperm.slane %v80, 0
    %v3335 = vmul.f32 %v3332, %v3334
    %v3336 = vmul.f32 %v3333, %v3334
    %v3337 = vperm.slane %v81, 0
    %v3338 = vadd.f32 %v3335, %v3337
    %v3339 = vadd.f32 %v3336, %v3337
    %v3340 = vld [vmem:[%s4] sm:$0xff]
    %v3341 = vld [vmem:[%s4 + $0x8] sm:$0xff]
    %v3342 = vld [vmem:[%s4 + $0x10] sm:$0xff]
    %v3343 = vld [vmem:[%s4 + $0x18] sm:$0xff]
    %v3344 = vperm.slane %v78, 0
    %v3346 = vsel %vm82, %v3338, 0
    %v3349 = vsel %vm82, %v3339, 0
    %3351 = vmatpush.msra.mxu0 0.0
    %3352 = vmatpush.msra.mxu0 0.0
    %3353 = vmatpush.msra.mxu0 0.0
    %3354 = vmatpush.msra.mxu0 0.0
    %3355 = vmatpush.msra.mxu0 0.0
    %3356 = vmatpush.msra.mxu0 0.0
    %3357 = vmatpush.msra.mxu0 0.0
    %3358 = vmatpush.msra.mxu0 0.0
    %3359 = vmatpush.msra.mxu0 0.0
    %3360 = vmatpush.msra.mxu0 0.0
    %3361 = vmatpush.msra.mxu0 0.0
    %3362 = vmatpush.msra.mxu0 0.0
    %v3363 = vand.u32 %v3343, 4294901760
    %3364 = vmatpush.msra.mxu0 %v3363
    %v3365 = vand.u32 %v3342, 4294901760
    %3366 = vmatpush.msra.mxu0 %v3365
    %v3367 = vand.u32 %v3341, 4294901760
    %3368 = vmatpush.msra.mxu0 %v3367
    %v3369 = vand.u32 %v3340, 4294901760
    %3370 = vmatpush.msra.mxu0 %v3369
    %v3371 = vand.u32 %v3346, 4294901760
    %v3372 = vsub.f32 %v3346, %v3371
    %v3373 = vand.u32 %v3372, 4294901760
    %v3374 = vsub.f32 %v3372, %v3373
    %v3375 = vand.u32 %v3374, 4294901760
    %3376 = vmatmul.f32.gmra.mxu0 %v3375
    %v3377 = vpop.f32.mrf.mxu0
    %v3378 = vadd.f32 %v3344, %v3377
    %v3379 = vand.u32 %v3349, 4294901760
    %v3380 = vsub.f32 %v3349, %v3379
    %v3381 = vand.u32 %v3380, 4294901760
    %v3382 = vsub.f32 %v3380, %v3381
    %v3383 = vand.u32 %v3382, 4294901760
    %3384 = vmatmul.f32.gmra.mxu0 %v3383
    %v3385 = vpop.f32.mrf.mxu0
    %v3386 = vadd.f32 %v3344, %v3385
    %3387 = vdwg.mxu0
    %3388 = vmatpush.msra.mxu0 0.0
    %3389 = vmatpush.msra.mxu0 0.0
    %3390 = vmatpush.msra.mxu0 0.0
    %3391 = vmatpush.msra.mxu0 0.0
    %3392 = vmatpush.msra.mxu0 0.0
    %3393 = vmatpush.msra.mxu0 0.0
    %3394 = vmatpush.msra.mxu0 0.0
    %3395 = vmatpush.msra.mxu0 0.0
    %3396 = vmatpush.msra.mxu0 0.0
    %3397 = vmatpush.msra.mxu0 0.0
    %3398 = vmatpush.msra.mxu0 0.0
    %3399 = vmatpush.msra.mxu0 0.0
    %v3400 = vand.u32 %v3343, 4294901760
    %v3401 = vsub.f32 %v3343, %v3400
    %v3402 = vand.u32 %v3401, 4294901760
    %v3403 = vsub.f32 %v3401, %v3402
    %v3404 = vand.u32 %v3403, 4294901760
    %3405 = vmatpush.msra.mxu0 %v3404
    %v3406 = vand.u32 %v3342, 4294901760
    %v3407 = vsub.f32 %v3342, %v3406
    %v3408 = vand.u32 %v3407, 4294901760
    %v3409 = vsub.f32 %v3407, %v3408
    %v3410 = vand.u32 %v3409, 4294901760
    %3411 = vmatpush.msra.mxu0 %v3410
    %v3412 = vand.u32 %v3341, 4294901760
    %v3413 = vsub.f32 %v3341, %v3412
    %v3414 = vand.u32 %v3413, 4294901760
    %v3415 = vsub.f32 %v3413, %v3414
    %v3416 = vand.u32 %v3415, 4294901760
    %3417 = vmatpush.msra.mxu0 %v3416
    %v3418 = vand.u32 %v3340, 4294901760
    %v3419 = vsub.f32 %v3340, %v3418
    %v3420 = vand.u32 %v3419, 4294901760
    %v3421 = vsub.f32 %v3419, %v3420
    %v3422 = vand.u32 %v3421, 4294901760
    %3423 = vmatpush.msra.mxu0 %v3422
    %v3424 = vand.u32 %v3346, 4294901760
    %3425 = vmatmul.f32.gmra.mxu0 %v3424
    %v3426 = vpop.f32.mrf.mxu0
    %v3427 = vadd.f32 %v3378, %v3426
    %v3428 = vand.u32 %v3349, 4294901760
    %3429 = vmatmul.f32.gmra.mxu0 %v3428
    %v3430 = vpop.f32.mrf.mxu0
    %v3431 = vadd.f32 %v3386, %v3430
    %3432 = vdwg.mxu0
    %3433 = vmatpush.msra.mxu0 0.0
    %3434 = vmatpush.msra.mxu0 0.0
    %3435 = vmatpush.msra.mxu0 0.0
    %3436 = vmatpush.msra.mxu0 0.0
    %3437 = vmatpush.msra.mxu0 0.0
    %3438 = vmatpush.msra.mxu0 0.0
    %3439 = vmatpush.msra.mxu0 0.0
    %3440 = vmatpush.msra.mxu0 0.0
    %3441 = vmatpush.msra.mxu0 0.0
    %3442 = vmatpush.msra.mxu0 0.0
    %3443 = vmatpush.msra.mxu0 0.0
    %3444 = vmatpush.msra.mxu0 0.0
    %v3445 = vand.u32 %v3343, 4294901760
    %v3446 = vsub.f32 %v3343, %v3445
    %3447 = vmatpush.msra.mxu0 %v3446
    %v3448 = vand.u32 %v3342, 4294901760
    %v3449 = vsub.f32 %v3342, %v3448
    %3450 = vmatpush.msra.mxu0 %v3449
    %v3451 = vand.u32 %v3341, 4294901760
    %v3452 = vsub.f32 %v3341, %v3451
    %3453 = vmatpush.msra.mxu0 %v3452
    %v3454 = vand.u32 %v3340, 4294901760
    %v3455 = vsub.f32 %v3340, %v3454
    %3456 = vmatpush.msra.mxu0 %v3455
    %v3457 = vand.u32 %v3346, 4294901760
    %v3458 = vsub.f32 %v3346, %v3457
    %3459 = vmatmul.f32.gmra.mxu0 %v3458
    %v3460 = vpop.f32.mrf.mxu0
    %v3461 = vadd.f32 %v3427, %v3460
    %v3462 = vand.u32 %v3349, 4294901760
    %v3463 = vsub.f32 %v3349, %v3462
    %3464 = vmatmul.f32.gmra.mxu0 %v3463
    %v3465 = vpop.f32.mrf.mxu0
    %v3466 = vadd.f32 %v3431, %v3465
    %3467 = vdwg.mxu0
    %3468 = vmatpush.msra.mxu0 0.0
    %3469 = vmatpush.msra.mxu0 0.0
    %3470 = vmatpush.msra.mxu0 0.0
    %3471 = vmatpush.msra.mxu0 0.0
    %3472 = vmatpush.msra.mxu0 0.0
    %3473 = vmatpush.msra.mxu0 0.0
    %3474 = vmatpush.msra.mxu0 0.0
    %3475 = vmatpush.msra.mxu0 0.0
    %3476 = vmatpush.msra.mxu0 0.0
    %3477 = vmatpush.msra.mxu0 0.0
    %3478 = vmatpush.msra.mxu0 0.0
    %3479 = vmatpush.msra.mxu0 0.0
    %v3480 = vand.u32 %v3343, 4294901760
    %3481 = vmatpush.msra.mxu0 %v3480
    %v3482 = vand.u32 %v3342, 4294901760
    %3483 = vmatpush.msra.mxu0 %v3482
    %v3484 = vand.u32 %v3341, 4294901760
    %3485 = vmatpush.msra.mxu0 %v3484
    %v3486 = vand.u32 %v3340, 4294901760
    %3487 = vmatpush.msra.mxu0 %v3486
    %v3488 = vand.u32 %v3346, 4294901760
    %v3489 = vsub.f32 %v3346, %v3488
    %v3490 = vand.u32 %v3489, 4294901760
    %3491 = vmatmul.f32.gmra.mxu0 %v3490
    %v3492 = vpop.f32.mrf.mxu0
    %v3493 = vadd.f32 %v3461, %v3492
    %v3494 = vand.u32 %v3349, 4294901760
    %v3495 = vsub.f32 %v3349, %v3494
    %v3496 = vand.u32 %v3495, 4294901760
    %3497 = vmatmul.f32.gmra.mxu0 %v3496
    %v3498 = vpop.f32.mrf.mxu0
    %v3499 = vadd.f32 %v3466, %v3498
    %3500 = vdwg.mxu0
    %3501 = vmatpush.msra.mxu0 0.0
    %3502 = vmatpush.msra.mxu0 0.0
    %3503 = vmatpush.msra.mxu0 0.0
    %3504 = vmatpush.msra.mxu0 0.0
    %3505 = vmatpush.msra.mxu0 0.0
    %3506 = vmatpush.msra.mxu0 0.0
    %3507 = vmatpush.msra.mxu0 0.0
    %3508 = vmatpush.msra.mxu0 0.0
    %3509 = vmatpush.msra.mxu0 0.0
    %3510 = vmatpush.msra.mxu0 0.0
    %3511 = vmatpush.msra.mxu0 0.0
    %3512 = vmatpush.msra.mxu0 0.0
    %v3513 = vand.u32 %v3343, 4294901760
    %v3514 = vsub.f32 %v3343, %v3513
    %v3515 = vand.u32 %v3514, 4294901760
    %3516 = vmatpush.msra.mxu0 %v3515
    %v3517 = vand.u32 %v3342, 4294901760
    %v3518 = vsub.f32 %v3342, %v3517
    %v3519 = vand.u32 %v3518, 4294901760
    %3520 = vmatpush.msra.mxu0 %v3519
    %v3521 = vand.u32 %v3341, 4294901760
    %v3522 = vsub.f32 %v3341, %v3521
    %v3523 = vand.u32 %v3522, 4294901760
    %3524 = vmatpush.msra.mxu0 %v3523
    %v3525 = vand.u32 %v3340, 4294901760
    %v3526 = vsub.f32 %v3340, %v3525
    %v3527 = vand.u32 %v3526, 4294901760
    %3528 = vmatpush.msra.mxu0 %v3527
    %v3529 = vand.u32 %v3346, 4294901760
    %3530 = vmatmul.f32.gmra.mxu0 %v3529
    %v3531 = vpop.f32.mrf.mxu0
    %v3532 = vadd.f32 %v3493, %v3531
    %v3533 = vand.u32 %v3349, 4294901760
    %3534 = vmatmul.f32.gmra.mxu0 %v3533
    %v3535 = vpop.f32.mrf.mxu0
    %v3536 = vadd.f32 %v3499, %v3535
    %3537 = vdwg.mxu0
    %3538 = vmatpush.msra.mxu0 0.0
    %3539 = vmatpush.msra.mxu0 0.0
    %3540 = vmatpush.msra.mxu0 0.0
    %3541 = vmatpush.msra.mxu0 0.0
    %3542 = vmatpush.msra.mxu0 0.0
    %3543 = vmatpush.msra.mxu0 0.0
    %3544 = vmatpush.msra.mxu0 0.0
    %3545 = vmatpush.msra.mxu0 0.0
    %3546 = vmatpush.msra.mxu0 0.0
    %3547 = vmatpush.msra.mxu0 0.0
    %3548 = vmatpush.msra.mxu0 0.0
    %3549 = vmatpush.msra.mxu0 0.0
    %v3550 = vand.u32 %v3343, 4294901760
    %3551 = vmatpush.msra.mxu0 %v3550
    %v3552 = vand.u32 %v3342, 4294901760
    %3553 = vmatpush.msra.mxu0 %v3552
    %v3554 = vand.u32 %v3341, 4294901760
    %3555 = vmatpush.msra.mxu0 %v3554
    %v3556 = vand.u32 %v3340, 4294901760
    %3557 = vmatpush.msra.mxu0 %v3556
    %v3558 = vand.u32 %v3346, 4294901760
    %3559 = vmatmul.f32.gmra.mxu0 %v3558
    %v3560 = vpop.f32.mrf.mxu0
    %v3561 = vadd.f32 %v3532, %v3560
    %v3562 = vand.u32 %v3349, 4294901760
    %3563 = vmatmul.f32.gmra.mxu0 %v3562
    %v3564 = vpop.f32.mrf.mxu0
    %v3565 = vadd.f32 %v3536, %v3564
    %3566 = vdwg.mxu0
    %v3567 = vmax.f32 %v3561, 0.0
    %v3568 = vmax.f32 %v3565, 0.0
    %v3569 = vld [vmem:[%s5] sm:$0xff]
    %v3570 = vld [vmem:[%s5 + $0x8] sm:$0xff]
    %v3571 = vld [vmem:[%s5 + $0x10] sm:$0xff]
    %v3572 = vld [vmem:[%s5 + $0x18] sm:$0xff]
    %v3573 = vld [vmem:[%s5 + $0x20] sm:$0xff]
    %v3574 = vld [vmem:[%s5 + $0x28] sm:$0xff]
    %v3575 = vld [vmem:[%s5 + $0x30] sm:$0xff]
    %v3576 = vld [vmem:[%s5 + $0x38] sm:$0xff]
    %v3577 = vperm.slane %v79, 0
    %vm3578 = vcmask 523264
    %v3580 = vsel %vm3578, %v3567, 0
    %v3583 = vsel %vm3578, %v3568, 0
    %3585 = vmatpush.msra.mxu0 0.0
    %3586 = vmatpush.msra.mxu0 0.0
    %3587 = vmatpush.msra.mxu0 0.0
    %3588 = vmatpush.msra.mxu0 0.0
    %3589 = vmatpush.msra.mxu0 0.0
    %3590 = vmatpush.msra.mxu0 0.0
    %3591 = vmatpush.msra.mxu0 0.0
    %3592 = vmatpush.msra.mxu0 0.0
    %v3593 = vand.u32 %v3576, 4294901760
    %3594 = vmatpush.msra.mxu0 %v3593
    %v3595 = vand.u32 %v3575, 4294901760
    %3596 = vmatpush.msra.mxu0 %v3595
    %v3597 = vand.u32 %v3574, 4294901760
    %3598 = vmatpush.msra.mxu0 %v3597
    %v3599 = vand.u32 %v3573, 4294901760
    %3600 = vmatpush.msra.mxu0 %v3599
    %v3601 = vand.u32 %v3572, 4294901760
    %3602 = vmatpush.msra.mxu0 %v3601
    %v3603 = vand.u32 %v3571, 4294901760
    %3604 = vmatpush.msra.mxu0 %v3603
    %v3605 = vand.u32 %v3570, 4294901760
    %3606 = vmatpush.msra.mxu0 %v3605
    %v3607 = vand.u32 %v3569, 4294901760
    %3608 = vmatpush.msra.mxu0 %v3607
    %v3609 = vand.u32 %v3580, 4294901760
    %v3610 = vsub.f32 %v3580, %v3609
    %v3611 = vand.u32 %v3610, 4294901760
    %v3612 = vsub.f32 %v3610, %v3611
    %v3613 = vand.u32 %v3612, 4294901760
    %3614 = vmatmul.f32.gmra.mxu0 %v3613
    %v3615 = vpop.f32.mrf.mxu0
    %v3616 = vadd.f32 %v3577, %v3615
    %v3617 = vand.u32 %v3583, 4294901760
    %v3618 = vsub.f32 %v3583, %v3617
    %v3619 = vand.u32 %v3618, 4294901760
    %v3620 = vsub.f32 %v3618, %v3619
    %v3621 = vand.u32 %v3620, 4294901760
    %3622 = vmatmul.f32.gmra.mxu0 %v3621
    %v3623 = vpop.f32.mrf.mxu0
    %v3624 = vadd.f32 %v3577, %v3623
    %3625 = vdwg.mxu0
    %3626 = vmatpush.msra.mxu0 0.0
    %3627 = vmatpush.msra.mxu0 0.0
    %3628 = vmatpush.msra.mxu0 0.0
    %3629 = vmatpush.msra.mxu0 0.0
    %3630 = vmatpush.msra.mxu0 0.0
    %3631 = vmatpush.msra.mxu0 0.0
    %3632 = vmatpush.msra.mxu0 0.0
    %3633 = vmatpush.msra.mxu0 0.0
    %v3634 = vand.u32 %v3576, 4294901760
    %v3635 = vsub.f32 %v3576, %v3634
    %v3636 = vand.u32 %v3635, 4294901760
    %v3637 = vsub.f32 %v3635, %v3636
    %v3638 = vand.u32 %v3637, 4294901760
    %3639 = vmatpush.msra.mxu0 %v3638
    %v3640 = vand.u32 %v3575, 4294901760
    %v3641 = vsub.f32 %v3575, %v3640
    %v3642 = vand.u32 %v3641, 4294901760
    %v3643 = vsub.f32 %v3641, %v3642
    %v3644 = vand.u32 %v3643, 4294901760
    %3645 = vmatpush.msra.mxu0 %v3644
    %v3646 = vand.u32 %v3574, 4294901760
    %v3647 = vsub.f32 %v3574, %v3646
    %v3648 = vand.u32 %v3647, 4294901760
    %v3649 = vsub.f32 %v3647, %v3648
    %v3650 = vand.u32 %v3649, 4294901760
    %3651 = vmatpush.msra.mxu0 %v3650
    %v3652 = vand.u32 %v3573, 4294901760
    %v3653 = vsub.f32 %v3573, %v3652
    %v3654 = vand.u32 %v3653, 4294901760
    %v3655 = vsub.f32 %v3653, %v3654
    %v3656 = vand.u32 %v3655, 4294901760
    %3657 = vmatpush.msra.mxu0 %v3656
    %v3658 = vand.u32 %v3572, 4294901760
    %v3659 = vsub.f32 %v3572, %v3658
    %v3660 = vand.u32 %v3659, 4294901760
    %v3661 = vsub.f32 %v3659, %v3660
    %v3662 = vand.u32 %v3661, 4294901760
    %3663 = vmatpush.msra.mxu0 %v3662
    %v3664 = vand.u32 %v3571, 4294901760
    %v3665 = vsub.f32 %v3571, %v3664
    %v3666 = vand.u32 %v3665, 4294901760
    %v3667 = vsub.f32 %v3665, %v3666
    %v3668 = vand.u32 %v3667, 4294901760
    %3669 = vmatpush.msra.mxu0 %v3668
    %v3670 = vand.u32 %v3570, 4294901760
    %v3671 = vsub.f32 %v3570, %v3670
    %v3672 = vand.u32 %v3671, 4294901760
    %v3673 = vsub.f32 %v3671, %v3672
    %v3674 = vand.u32 %v3673, 4294901760
    %3675 = vmatpush.msra.mxu0 %v3674
    %v3676 = vand.u32 %v3569, 4294901760
    %v3677 = vsub.f32 %v3569, %v3676
    %v3678 = vand.u32 %v3677, 4294901760
    %v3679 = vsub.f32 %v3677, %v3678
    %v3680 = vand.u32 %v3679, 4294901760
    %3681 = vmatpush.msra.mxu0 %v3680
    %v3682 = vand.u32 %v3580, 4294901760
    %3683 = vmatmul.f32.gmra.mxu0 %v3682
    %v3684 = vpop.f32.mrf.mxu0
    %v3685 = vadd.f32 %v3616, %v3684
    %v3686 = vand.u32 %v3583, 4294901760
    %3687 = vmatmul.f32.gmra.mxu0 %v3686
    %v3688 = vpop.f32.mrf.mxu0
    %v3689 = vadd.f32 %v3624, %v3688
    %3690 = vdwg.mxu0
    %3691 = vmatpush.msra.mxu0 0.0
    %3692 = vmatpush.msra.mxu0 0.0
    %3693 = vmatpush.msra.mxu0 0.0
    %3694 = vmatpush.msra.mxu0 0.0
    %3695 = vmatpush.msra.mxu0 0.0
    %3696 = vmatpush.msra.mxu0 0.0
    %3697 = vmatpush.msra.mxu0 0.0
    %3698 = vmatpush.msra.mxu0 0.0
    %v3699 = vand.u32 %v3576, 4294901760
    %v3700 = vsub.f32 %v3576, %v3699
    %3701 = vmatpush.msra.mxu0 %v3700
    %v3702 = vand.u32 %v3575, 4294901760
    %v3703 = vsub.f32 %v3575, %v3702
    %3704 = vmatpush.msra.mxu0 %v3703
    %v3705 = vand.u32 %v3574, 4294901760
    %v3706 = vsub.f32 %v3574, %v3705
    %3707 = vmatpush.msra.mxu0 %v3706
    %v3708 = vand.u32 %v3573, 4294901760
    %v3709 = vsub.f32 %v3573, %v3708
    %3710 = vmatpush.msra.mxu0 %v3709
    %v3711 = vand.u32 %v3572, 4294901760
    %v3712 = vsub.f32 %v3572, %v3711
    %3713 = vmatpush.msra.mxu0 %v3712
    %v3714 = vand.u32 %v3571, 4294901760
    %v3715 = vsub.f32 %v3571, %v3714
    %3716 = vmatpush.msra.mxu0 %v3715
    %v3717 = vand.u32 %v3570, 4294901760
    %v3718 = vsub.f32 %v3570, %v3717
    %3719 = vmatpush.msra.mxu0 %v3718
    %v3720 = vand.u32 %v3569, 4294901760
    %v3721 = vsub.f32 %v3569, %v3720
    %3722 = vmatpush.msra.mxu0 %v3721
    %v3723 = vand.u32 %v3580, 4294901760
    %v3724 = vsub.f32 %v3580, %v3723
    %3725 = vmatmul.f32.gmra.mxu0 %v3724
    %v3726 = vpop.f32.mrf.mxu0
    %v3727 = vadd.f32 %v3685, %v3726
    %v3728 = vand.u32 %v3583, 4294901760
    %v3729 = vsub.f32 %v3583, %v3728
    %3730 = vmatmul.f32.gmra.mxu0 %v3729
    %v3731 = vpop.f32.mrf.mxu0
    %v3732 = vadd.f32 %v3689, %v3731
    %3733 = vdwg.mxu0
    %3734 = vmatpush.msra.mxu0 0.0
    %3735 = vmatpush.msra.mxu0 0.0
    %3736 = vmatpush.msra.mxu0 0.0
    %3737 = vmatpush.msra.mxu0 0.0
    %3738 = vmatpush.msra.mxu0 0.0
    %3739 = vmatpush.msra.mxu0 0.0
    %3740 = vmatpush.msra.mxu0 0.0
    %3741 = vmatpush.msra.mxu0 0.0
    %v3742 = vand.u32 %v3576, 4294901760
    %3743 = vmatpush.msra.mxu0 %v3742
    %v3744 = vand.u32 %v3575, 4294901760
    %3745 = vmatpush.msra.mxu0 %v3744
    %v3746 = vand.u32 %v3574, 4294901760
    %3747 = vmatpush.msra.mxu0 %v3746
    %v3748 = vand.u32 %v3573, 4294901760
    %3749 = vmatpush.msra.mxu0 %v3748
    %v3750 = vand.u32 %v3572, 4294901760
    %3751 = vmatpush.msra.mxu0 %v3750
    %v3752 = vand.u32 %v3571, 4294901760
    %3753 = vmatpush.msra.mxu0 %v3752
    %v3754 = vand.u32 %v3570, 4294901760
    %3755 = vmatpush.msra.mxu0 %v3754
    %v3756 = vand.u32 %v3569, 4294901760
    %3757 = vmatpush.msra.mxu0 %v3756
    %v3758 = vand.u32 %v3580, 4294901760
    %v3759 = vsub.f32 %v3580, %v3758
    %v3760 = vand.u32 %v3759, 4294901760
    %3761 = vmatmul.f32.gmra.mxu0 %v3760
    %v3762 = vpop.f32.mrf.mxu0
    %v3763 = vadd.f32 %v3727, %v3762
    %v3764 = vand.u32 %v3583, 4294901760
    %v3765 = vsub.f32 %v3583, %v3764
    %v3766 = vand.u32 %v3765, 4294901760
    %3767 = vmatmul.f32.gmra.mxu0 %v3766
    %v3768 = vpop.f32.mrf.mxu0
    %v3769 = vadd.f32 %v3732, %v3768
    %3770 = vdwg.mxu0
    %3771 = vmatpush.msra.mxu0 0.0
    %3772 = vmatpush.msra.mxu0 0.0
    %3773 = vmatpush.msra.mxu0 0.0
    %3774 = vmatpush.msra.mxu0 0.0
    %3775 = vmatpush.msra.mxu0 0.0
    %3776 = vmatpush.msra.mxu0 0.0
    %3777 = vmatpush.msra.mxu0 0.0
    %3778 = vmatpush.msra.mxu0 0.0
    %v3779 = vand.u32 %v3576, 4294901760
    %v3780 = vsub.f32 %v3576, %v3779
    %v3781 = vand.u32 %v3780, 4294901760
    %3782 = vmatpush.msra.mxu0 %v3781
    %v3783 = vand.u32 %v3575, 4294901760
    %v3784 = vsub.f32 %v3575, %v3783
    %v3785 = vand.u32 %v3784, 4294901760
    %3786 = vmatpush.msra.mxu0 %v3785
    %v3787 = vand.u32 %v3574, 4294901760
    %v3788 = vsub.f32 %v3574, %v3787
    %v3789 = vand.u32 %v3788, 4294901760
    %3790 = vmatpush.msra.mxu0 %v3789
    %v3791 = vand.u32 %v3573, 4294901760
    %v3792 = vsub.f32 %v3573, %v3791
    %v3793 = vand.u32 %v3792, 4294901760
    %3794 = vmatpush.msra.mxu0 %v3793
    %v3795 = vand.u32 %v3572, 4294901760
    %v3796 = vsub.f32 %v3572, %v3795
    %v3797 = vand.u32 %v3796, 4294901760
    %3798 = vmatpush.msra.mxu0 %v3797
    %v3799 = vand.u32 %v3571, 4294901760
    %v3800 = vsub.f32 %v3571, %v3799
    %v3801 = vand.u32 %v3800, 4294901760
    %3802 = vmatpush.msra.mxu0 %v3801
    %v3803 = vand.u32 %v3570, 4294901760
    %v3804 = vsub.f32 %v3570, %v3803
    %v3805 = vand.u32 %v3804, 4294901760
    %3806 = vmatpush.msra.mxu0 %v3805
    %v3807 = vand.u32 %v3569, 4294901760
    %v3808 = vsub.f32 %v3569, %v3807
    %v3809 = vand.u32 %v3808, 4294901760
    %3810 = vmatpush.msra.mxu0 %v3809
    %v3811 = vand.u32 %v3580, 4294901760
    %3812 = vmatmul.f32.gmra.mxu0 %v3811
    %v3813 = vpop.f32.mrf.mxu0
    %v3814 = vadd.f32 %v3763, %v3813
    %v3815 = vand.u32 %v3583, 4294901760
    %3816 = vmatmul.f32.gmra.mxu0 %v3815
    %v3817 = vpop.f32.mrf.mxu0
    %v3818 = vadd.f32 %v3769, %v3817
    %3819 = vdwg.mxu0
    %3820 = vmatpush.msra.mxu0 0.0
    %3821 = vmatpush.msra.mxu0 0.0
    %3822 = vmatpush.msra.mxu0 0.0
    %3823 = vmatpush.msra.mxu0 0.0
    %3824 = vmatpush.msra.mxu0 0.0
    %3825 = vmatpush.msra.mxu0 0.0
    %3826 = vmatpush.msra.mxu0 0.0
    %3827 = vmatpush.msra.mxu0 0.0
    %v3828 = vand.u32 %v3576, 4294901760
    %3829 = vmatpush.msra.mxu0 %v3828
    %v3830 = vand.u32 %v3575, 4294901760
    %3831 = vmatpush.msra.mxu0 %v3830
    %v3832 = vand.u32 %v3574, 4294901760
    %3833 = vmatpush.msra.mxu0 %v3832
    %v3834 = vand.u32 %v3573, 4294901760
    %3835 = vmatpush.msra.mxu0 %v3834
    %v3836 = vand.u32 %v3572, 4294901760
    %3837 = vmatpush.msra.mxu0 %v3836
    %v3838 = vand.u32 %v3571, 4294901760
    %3839 = vmatpush.msra.mxu0 %v3838
    %v3840 = vand.u32 %v3570, 4294901760
    %3841 = vmatpush.msra.mxu0 %v3840
    %v3842 = vand.u32 %v3569, 4294901760
    %3843 = vmatpush.msra.mxu0 %v3842
    %v3844 = vand.u32 %v3580, 4294901760
    %3845 = vmatmul.f32.gmra.mxu0 %v3844
    %v3846 = vpop.f32.mrf.mxu0
    %v3847 = vadd.f32 %v3814, %v3846
    %v3848 = vand.u32 %v3583, 4294901760
    %3849 = vmatmul.f32.gmra.mxu0 %v3848
    %v3850 = vpop.f32.mrf.mxu0
    %v3851 = vadd.f32 %v3818, %v3850
    %3852 = vdwg.mxu0
    %v3853 = vadd.f32 %v3288, %v3847
    %v3854 = vadd.f32 %v3289, %v3851
    %3855 = vst.msk [vmem:[#allocation8] sm:$0xff] %vm82, %v3853
    %3856 = vst.msk [vmem:[#allocation8 + $0x8] sm:$0xff] %vm82, %v3854
    // Predicated region
    $region42: #{encoder_block.1} parent=1 // pred_check
      _
    $region43: #{encoder_block.1} parent=1 // pred_check_branch
      %3858 = sbr.rel (0) target = $region45
    $region44: #{encoder_block.1} parent=1 // pred_region
      %3860 = vsyncadd [#allocation4], 0
      %s3861 = sshll.u32 [#allocation8], 4
      %s3862 = int_to_ptr.vmem [resolvable:$true] %s3861
      %s3863 = sshll.u32 %s7, 4
      %s3864 = int_to_ptr.hbm [resolvable:$true] %s3863
      %3869 = dma.vmem_to_hbm [thread:$0]  %s3862, 256, %s3864, [#allocation4], 128, 128, 8
    $region45: #{encoder_block.1} parent=1 // pred_fallthru
      _
    // Predicated region
    $region46: #{encoder_block.1} parent=1 // pred_check
      _
    $region47: #{encoder_block.1} parent=1 // pred_check_branch
      %3871 = sbr.rel (0) target = $region49
    $region48: #{encoder_block.1} parent=1 // pred_region
      %3873 = dma.done [#allocation4], 256
    $region49: #{encoder_block.1} parent=1 // pred_fallthru
      _
    %3874 = vsyncpa [#allocation3], 1
    %3875 = vsyncpa [#allocation6], 1
    %3876 = vsyncpa [#allocation4], 1

</llo_original>
